<compile_context>
chip_gen: v6e
topology: v6e:2x2x1
jax: 0.10.0
libtpu: 0.0.40
codegen_flags: <defaults>
</compile_context>

<pallas_src>
import functools
import math

import jax
import jax.numpy as jnp
from jax.experimental import pallas as pl
from jax.experimental.pallas import tpu as pltpu


# ----------------------------- numerics helpers -----------------------------

def _layernorm(x, g, b, eps):
    # PyTorch LayerNorm: biased variance over the last dim, math in f32.
    mean = jnp.mean(x, axis=-1, keepdims=True)
    xc = x - mean
    var = jnp.mean(xc * xc, axis=-1, keepdims=True)
    return xc * jax.lax.rsqrt(var + eps) * g + b


def _gelu_exact(x):
    # nn.GELU() default (exact, erf-based); erf lowers to the EUP slot.
    # TODO(synk): switch to tanh-approx GELU if profiling shows the EUP binding
    #             on v6e/v7x and the accuracy budget allows it.
    return 0.5 * x * (1.0 + jax.lax.erf(x * (1.0 / math.sqrt(2.0))))


def _vmem_limit(est_bytes):
    # Generation-aware scoped-VMEM budget: ~85% of physical per-core VMEM
    # (v5e/v6e: 128 MiB -> ~108 MiB cap, v7x: 64 MiB -> ~54 MiB cap, leaving
    # Mosaic internal-scratch headroom), with a 32 MiB floor for tiny shapes.
    try:
        phys = int(pltpu.get_tpu_info().vmem_capacity_bytes)
    except Exception:  # info unavailable at trace time -> assume 128 MiB part
        phys = 128 * 1024 * 1024
    cap = int(phys * 0.85)
    return int(min(max(int(est_bytes), 32 * 1024 * 1024), cap))


# ----------------------------- fused per-layer Pallas kernel -----------------------------

def transformer_layer_kernel(x_ref, mask_ref, embg_ref, embb_ref,
                             wqkv_ref, bqkv_ref, wo_ref, bo_ref,
                             lnag_ref, lnab_ref,
                             w1_ref, b1_ref, w2_ref, b2_ref,
                             lnfg_ref, lnfb_ref, o_ref, *,
                             n_heads, head_dim, eps_block, eps_emb, fuse_emb_ln):
    # One full TransformerBlock (plus, for layer 0, the embedding LayerNorm) for
    # a single batch element; x1 stays in VMEM between the two residual halves.
    x = x_ref[0]                                                        # (S, D) f32
    if fuse_emb_ln:
        # Embeddings.LayerNorm (eps=1e-12) folded into the first layer's kernel.
        x = _layernorm(x, embg_ref[...], embb_ref[...], eps_emb)

    D = n_heads * head_dim
    scale = jnp.float32(1.0 / math.sqrt(head_dim))

    # ---- multi-head self-attention ----
    # Fused QKV projection: one bf16 MXU pass (K=D, N=3D), f32 accumulation.
    qkv = jnp.dot(x.astype(jnp.bfloat16), wqkv_ref[...],
                  preferred_element_type=jnp.float32) + bqkv_ref[...]   # (S, 3D) f32
    qkv_bf = qkv.astype(jnp.bfloat16)                                   # cast once

    mask_row = mask_ref[0]                                              # (1, S) int32

    ctx_parts = []
    for h in range(n_heads):                                            # static, unrolled
        qh = qkv_bf[:, h * head_dim:(h + 1) * head_dim]                 # (S, hd) bf16
        kh = qkv_bf[:, D + h * head_dim:D + (h + 1) * head_dim]
        vh = qkv_bf[:, 2 * D + h * head_dim:2 * D + (h + 1) * head_dim]

        # scores = (qh @ kh^T) / sqrt(hd); masked_fill(mask == 0, -1e9); softmax (f32).
        scores = jax.lax.dot_general(qh, kh, (((1,), (1,)), ((), ())),
                                     preferred_element_type=jnp.float32) * scale
        scores = jnp.where(mask_row == 0, jnp.float32(-1e9), scores)    # (S, S) f32
        m = jnp.max(scores, axis=-1, keepdims=True)
        p = jnp.exp(scores - m)
        attn = p / jnp.sum(p, axis=-1, keepdims=True)                   # exact f32
        ctx_parts.append(jnp.dot(attn.astype(jnp.bfloat16), vh,
                                 preferred_element_type=jnp.float32))   # (S, hd) f32

    # Lane-concat all heads, then ONE K=D output projection (near-peak MXU depth).
    ctx = jnp.concatenate(ctx_parts, axis=-1).astype(jnp.bfloat16)      # (S, D) bf16
    attn_out = jnp.dot(ctx, wo_ref[...],
                       preferred_element_type=jnp.float32) + bo_ref[...]

    x1 = _layernorm(x + attn_out, lnag_ref[...], lnab_ref[...], eps_block)

    # ---- feed-forward ----
    h1 = jnp.dot(x1.astype(jnp.bfloat16), w1_ref[...],
                 preferred_element_type=jnp.float32) + b1_ref[...]      # (S, H) f32
    h1 = _gelu_exact(h1)
    y = jnp.dot(h1.astype(jnp.bfloat16), w2_ref[...],
                preferred_element_type=jnp.float32) + b2_ref[...]       # (S, D) f32

    o_ref[0] = _layernorm(x1 + y, lnfg_ref[...], lnfb_ref[...], eps_block)


# ----------------------------- Pallas wrapper -----------------------------

def transformer_layer_pallas(x, mask, lp, emb_g, emb_b, *, n_heads, fuse_emb_ln,
                             eps_block=1e-5, eps_emb=1e-12):
    B, S, D = x.shape
    H = lp["w1"].shape[1]
    head_dim = D // n_heads
    kernel = functools.partial(transformer_layer_kernel,
                               n_heads=n_heads, head_dim=head_dim,
                               eps_block=eps_block, eps_emb=eps_emb,
                               fuse_emb_ln=fuse_emb_ln)

    # Per-grid-step VMEM estimate (double-buffered blocks + f32 intermediates).
    io_bytes = 2 * S * D * 4 + S * 4                                   # x + out + mask
    w_bytes = (3 * D * D + D * D + 2 * D * H) * 2 + (11 * D + H) * 4   # bf16 weights + f32 vecs
    inter_bytes = S * 3 * D * 6 + 4 * S * S * 4 + 4 * S * D * 4 + S * H * 6
    vmem = _vmem_limit(2 * (io_bytes + w_bytes) + inter_bytes)

    flops = B * (2 * S * D * 3 * D      # QKV projection
                 + 4 * S * S * D        # scores + attn @ V (all heads)
                 + 2 * S * D * D        # output projection
                 + 4 * S * D * H)       # FFN
    cost = pl.CostEstimate(flops=int(flops),
                           transcendentals=int(B * (n_heads * S * S + S * H)),
                           bytes_accessed=int(B * io_bytes + w_bytes))

    return pl.pallas_call(
        kernel,
        out_shape=jax.ShapeDtypeStruct((B, S, D), jnp.float32),
        grid_spec=pltpu.PrefetchScalarGridSpec(
            num_scalar_prefetch=0,
            grid=(B,),
            in_specs=[
                pl.BlockSpec((1, S, D), lambda b: (b, 0, 0)),       # x
                pl.BlockSpec((1, 1, S), lambda b: (b, 0, 0)),       # mask
                pl.BlockSpec((1, D), lambda b: (0, 0)),             # emb LN gamma (layer 0)
                pl.BlockSpec((1, D), lambda b: (0, 0)),             # emb LN beta  (layer 0)
                pl.BlockSpec((D, 3 * D), lambda b: (0, 0)),         # wqkv (bf16, fused)
                pl.BlockSpec((1, 3 * D), lambda b: (0, 0)),         # bqkv
                pl.BlockSpec((D, D), lambda b: (0, 0)),             # wo (bf16)
                pl.BlockSpec((1, D), lambda b: (0, 0)),             # bo
                pl.BlockSpec((1, D), lambda b: (0, 0)),             # LN_attn gamma
                pl.BlockSpec((1, D), lambda b: (0, 0)),             # LN_attn beta
                pl.BlockSpec((D, H), lambda b: (0, 0)),             # w1 (bf16)
                pl.BlockSpec((1, H), lambda b: (0, 0)),             # b1
                pl.BlockSpec((H, D), lambda b: (0, 0)),             # w2 (bf16)
                pl.BlockSpec((1, D), lambda b: (0, 0)),             # b2
                pl.BlockSpec((1, D), lambda b: (0, 0)),             # LN_ffn gamma
                pl.BlockSpec((1, D), lambda b: (0, 0)),             # LN_ffn beta
            ],
            out_specs=pl.BlockSpec((1, S, D), lambda b: (b, 0, 0)),
        ),
        compiler_params=pltpu.CompilerParams(
            dimension_semantics=("parallel",), vmem_limit_bytes=vmem),
        cost_estimate=cost,
    )(x, mask, emb_g, emb_b,
      lp["wqkv"], lp["bqkv"], lp["wo"], lp["bo"], lp["lna_g"], lp["lna_b"],
      lp["w1"], lp["b1"], lp["w2"], lp["b2"], lp["lnf_g"], lp["lnf_b"])


# ----------------------------- model glue -----------------------------

def init_params(key, cfg):
    std = cfg["initializer_range"]
    D, H = cfg["dim"], cfg["hidden_dim"]

    def normal(k, shape):
        return std * jax.random.normal(k, shape, dtype=jnp.float32)

    keys = jax.random.split(key, 2 + 6 * cfg["n_layers"])
    ki = iter(keys)

    word_emb = normal(next(ki), (cfg["vocab_size"], D))
    word_emb = word_emb.at[cfg["pad_token_id"]].set(0.0)     # padding_idx row zeroed
    pos_emb = normal(next(ki), (cfg["max_position_embeddings"], D))

    params = {
        "word_emb": word_emb,
        "pos_emb": pos_emb,
        "emb_ln_g": jnp.ones((1, D), jnp.float32),
        "emb_ln_b": jnp.zeros((1, D), jnp.float32),
        "layers": [],
    }
    for _ in range(cfg["n_layers"]):
        wq = normal(next(ki), (D, D))
        wk = normal(next(ki), (D, D))
        wv = normal(next(ki), (D, D))
        wo = normal(next(ki), (D, D))
        w1 = normal(next(ki), (D, H))
        w2 = normal(next(ki), (H, D))
        lp = {
            # fused QKV weight, bf16 for the MXU + halved weight DMA
            "wqkv": jnp.concatenate([wq, wk, wv], axis=1).astype(jnp.bfloat16),
            "bqkv": jnp.zeros((1, 3 * D), jnp.float32),
            "wo": wo.astype(jnp.bfloat16), "bo": jnp.zeros((1, D), jnp.float32),
            # output_layer_norm (after attention) -- nn.LayerNorm default eps=1e-5
            "lna_g": jnp.ones((1, D), jnp.float32), "lna_b": jnp.zeros((1, D), jnp.float32),
            "w1": w1.astype(jnp.bfloat16), "b1": jnp.zeros((1, H), jnp.float32),
            "w2": w2.astype(jnp.bfloat16), "b2": jnp.zeros((1, D), jnp.float32),
            # sa_layer_norm (after FFN) -- nn.LayerNorm default eps=1e-5
            "lnf_g": jnp.ones((1, D), jnp.float32), "lnf_b": jnp.zeros((1, D), jnp.float32),
        }
        params["layers"].append(lp)
    return params


def distilbert_forward(params, input_ids, attention_mask, cfg):
    B, S = input_ids.shape
    # Vocabulary gather + positional add are XLA glue (the gather has no clean
    # rectangular-tile BlockSpec and XLA fuses the add into it); the embedding
    # LayerNorm is fused into the first transformer layer's Pallas kernel.
    x = jnp.take(params["word_emb"], input_ids, axis=0) + params["pos_emb"][:S]

    if attention_mask is None:
        attention_mask = jnp.ones((B, S), jnp.int32)            # mask=None semantics
    mask = attention_mask.astype(jnp.int32).reshape(B, 1, S)

    if not params["layers"]:
        # Degenerate config (no layers): just the embedding LayerNorm.
        return _layernorm(x, params["emb_ln_g"], params["emb_ln_b"], 1e-12)

    # Note: the spec's block LayerNorms use nn.LayerNorm defaults -> eps=1e-5
    # (HF's pretrained DistilBERT uses 1e-12; we follow the given spec module).
    for i, lp in enumerate(params["layers"]):
        x = transformer_layer_pallas(x, mask, lp,
                                     params["emb_ln_g"], params["emb_ln_b"],
                                     n_heads=cfg["n_heads"],
                                     fuse_emb_ln=(i == 0))
    return x


# ----------------------------- demo -----------------------------

if __name__ == "__main__":
    cfg = dict(
        vocab_size=50,
        max_position_embeddings=32,
        n_layers=2,
        n_heads=4,
        dim=32,
        hidden_dim=64,
        initializer_range=0.02,
        pad_token_id=0,
    )
    B, S = 2, 8

    key = jax.random.PRNGKey(0)
    k_param, k_ids = jax.random.split(key)
    params = init_params(k_param, cfg)

    input_ids = jax.random.randint(k_ids, (B, S), 1, cfg["vocab_size"], dtype=jnp.int32)
    input_ids = input_ids.at[1, -2:].set(cfg["pad_token_id"])            # some padding tokens
    attention_mask = jnp.ones((B, S), jnp.int32).at[1, -2:].set(0)       # mask padded positions

    @jax.jit
    def forward(p, ids, am):
        return distilbert_forward(p, ids, am, cfg)

    out = forward(params, input_ids, attention_mask)
    out = jax.block_until_ready(out)
    assert out.shape == (B, S, cfg["dim"]) and out.dtype == jnp.float32
    print("KERNEL_OK")
</pallas_src>

<mosaic_0001>
module attributes {stable_mosaic.version = 11 : i64} {
  func.func @transformer_layer_kernel(%arg0: i32, %arg1: memref<1x8x32xf32, #tpu.memory_space<vmem>>, %arg2: memref<1x1x8xi32, #tpu.memory_space<vmem>>, %arg3: memref<1x32xf32, #tpu.memory_space<vmem>>, %arg4: memref<1x32xf32, #tpu.memory_space<vmem>>, %arg5: memref<32x96xbf16, #tpu.memory_space<vmem>>, %arg6: memref<1x96xf32, #tpu.memory_space<vmem>>, %arg7: memref<32x32xbf16, #tpu.memory_space<vmem>>, %arg8: memref<1x32xf32, #tpu.memory_space<vmem>>, %arg9: memref<1x32xf32, #tpu.memory_space<vmem>>, %arg10: memref<1x32xf32, #tpu.memory_space<vmem>>, %arg11: memref<32x64xbf16, #tpu.memory_space<vmem>>, %arg12: memref<1x64xf32, #tpu.memory_space<vmem>>, %arg13: memref<64x32xbf16, #tpu.memory_space<vmem>>, %arg14: memref<1x32xf32, #tpu.memory_space<vmem>>, %arg15: memref<1x32xf32, #tpu.memory_space<vmem>>, %arg16: memref<1x32xf32, #tpu.memory_space<vmem>>, %arg17: memref<1x8x32xf32, #tpu.memory_space<vmem>>) attributes {dimension_semantics = [#tpu.dimension_semantics<parallel>], iteration_bounds = array<i64: 2>, scalar_prefetch = 0 : i64, scratch_operands = 0 : i64, tpu.core_type = #tpu.core_type<tc>, window_params = [{transform_indices = @transform_0, window_bounds = array<i64: 1, 8, 32>}, {transform_indices = @transform_1, window_bounds = array<i64: 1, 1, 8>}, {pipeline_mode = #tpu.pipeline_mode<synchronous>, transform_indices = @transform_2, window_bounds = array<i64: 1, 32>}, {pipeline_mode = #tpu.pipeline_mode<synchronous>, transform_indices = @transform_3, window_bounds = array<i64: 1, 32>}, {pipeline_mode = #tpu.pipeline_mode<synchronous>, transform_indices = @transform_4, window_bounds = array<i64: 32, 96>}, {pipeline_mode = #tpu.pipeline_mode<synchronous>, transform_indices = @transform_5, window_bounds = array<i64: 1, 96>}, {pipeline_mode = #tpu.pipeline_mode<synchronous>, transform_indices = @transform_6, window_bounds = array<i64: 32, 32>}, {pipeline_mode = #tpu.pipeline_mode<synchronous>, transform_indices = @transform_7, window_bounds = array<i64: 1, 32>}, {pipeline_mode = #tpu.pipeline_mode<synchronous>, transform_indices = @transform_8, window_bounds = array<i64: 1, 32>}, {pipeline_mode = #tpu.pipeline_mode<synchronous>, transform_indices = @transform_9, window_bounds = array<i64: 1, 32>}, {pipeline_mode = #tpu.pipeline_mode<synchronous>, transform_indices = @transform_10, window_bounds = array<i64: 32, 64>}, {pipeline_mode = #tpu.pipeline_mode<synchronous>, transform_indices = @transform_11, window_bounds = array<i64: 1, 64>}, {pipeline_mode = #tpu.pipeline_mode<synchronous>, transform_indices = @transform_12, window_bounds = array<i64: 64, 32>}, {pipeline_mode = #tpu.pipeline_mode<synchronous>, transform_indices = @transform_13, window_bounds = array<i64: 1, 32>}, {pipeline_mode = #tpu.pipeline_mode<synchronous>, transform_indices = @transform_14, window_bounds = array<i64: 1, 32>}, {pipeline_mode = #tpu.pipeline_mode<synchronous>, transform_indices = @transform_15, window_bounds = array<i64: 1, 32>}, {transform_indices = @transform_16, window_bounds = array<i64: 1, 8, 32>}]} {
    %c0 = arith.constant 0 : index
    %c0_0 = arith.constant 0 : index
    %c0_1 = arith.constant 0 : index
    %0 = vector.load %arg1[%c0, %c0_0, %c0_1] : memref<1x8x32xf32, #tpu.memory_space<vmem>>, vector<1x8x32xf32>
    %1 = vector.shape_cast %0 : vector<1x8x32xf32> to vector<8x32xf32>
    %2 = arith.truncf %1 : vector<8x32xf32> to vector<8x32xbf16>
    %c0_2 = arith.constant 0 : index
    %c0_3 = arith.constant 0 : index
    %3 = vector.load %arg5[%c0_2, %c0_3] : memref<32x96xbf16, #tpu.memory_space<vmem>>, vector<32x96xbf16>
    %cst = arith.constant dense<0.000000e+00> : vector<8x96xf32>
    %4 = tpu.matmul %2, %3, %cst {dimension_numbers = #tpu.dot_dimension_numbers<[1], [0], [0], [1], [0, 0, 1, 1], [], []>} : vector<8x32xbf16>, vector<32x96xbf16>, vector<8x96xf32> -> vector<8x96xf32>
    %c0_4 = arith.constant 0 : index
    %c0_5 = arith.constant 0 : index
    %5 = vector.load %arg6[%c0_4, %c0_5] : memref<1x96xf32, #tpu.memory_space<vmem>>, vector<1x96xf32>
    %6 = vector.broadcast %5 : vector<1x96xf32> to vector<8x96xf32>
    %7 = arith.addf %4, %6 : vector<8x96xf32>
    %8 = arith.truncf %7 : vector<8x96xf32> to vector<8x96xbf16>
    %c0_6 = arith.constant 0 : index
    %c0_7 = arith.constant 0 : index
    %c0_8 = arith.constant 0 : index
    %9 = vector.load %arg2[%c0_6, %c0_7, %c0_8] : memref<1x1x8xi32, #tpu.memory_space<vmem>>, vector<1x1x8xi32>
    %10 = vector.shape_cast %9 : vector<1x1x8xi32> to vector<1x8xi32>
    %11 = vector.extract_strided_slice %8 {offsets = [0, 0], sizes = [8, 8], strides = [1, 1]} : vector<8x96xbf16> to vector<8x8xbf16>
    %12 = vector.extract_strided_slice %8 {offsets = [0, 32], sizes = [8, 8], strides = [1, 1]} : vector<8x96xbf16> to vector<8x8xbf16>
    %13 = vector.extract_strided_slice %8 {offsets = [0, 64], sizes = [8, 8], strides = [1, 1]} : vector<8x96xbf16> to vector<8x8xbf16>
    %cst_9 = arith.constant dense<0.000000e+00> : vector<8x8xf32>
    %14 = tpu.matmul %11, %12, %cst_9 {dimension_numbers = #tpu.dot_dimension_numbers<[1], [1], [0], [0], [0, 0, 1, 0], [], []>} : vector<8x8xbf16>, vector<8x8xbf16>, vector<8x8xf32> -> vector<8x8xf32>
    %cst_10 = arith.constant 0.353553385 : f32
    %15 = vector.broadcast %cst_10 : f32 to vector<8x8xf32>
    %16 = arith.mulf %14, %15 : vector<8x8xf32>
    %c0_i32 = arith.constant 0 : i32
    %17 = vector.broadcast %c0_i32 : i32 to vector<1x8xi32>
    %18 = arith.cmpi eq, %10, %17 : vector<1x8xi32>
    %cst_11 = arith.constant -1.000000e+09 : f32
    %19 = vector.shape_cast %18 : vector<1x8xi1> to vector<1x8xi1>
    %20 = vector.broadcast %19 : vector<1x8xi1> to vector<8x8xi1>
    %21 = vector.broadcast %cst_11 : f32 to vector<8x8xf32>
    %22 = arith.select %20, %21, %16 : vector<8x8xi1>, vector<8x8xf32>
    %cst_12 = arith.constant dense<0xFF800000> : vector<8xf32>
    %23 = vector.multi_reduction <maximumf>, %22, %cst_12 [1] : vector<8x8xf32> to vector<8xf32>
    %24 = vector.shape_cast %23 : vector<8xf32> to vector<8x1xf32>
    %25 = vector.broadcast %24 : vector<8x1xf32> to vector<8x8xf32>
    %26 = arith.subf %22, %25 : vector<8x8xf32>
    %27 = math.exp %26 : vector<8x8xf32>
    %cst_13 = arith.constant dense<0.000000e+00> : vector<8xf32>
    %28 = vector.multi_reduction <add>, %27, %cst_13 [1] : vector<8x8xf32> to vector<8xf32>
    %29 = vector.shape_cast %28 : vector<8xf32> to vector<8x1xf32>
    %30 = vector.broadcast %29 : vector<8x1xf32> to vector<8x8xf32>
    %31 = arith.divf %27, %30 : vector<8x8xf32>
    %32 = arith.truncf %31 : vector<8x8xf32> to vector<8x8xbf16>
    %cst_14 = arith.constant dense<0.000000e+00> : vector<8x8xf32>
    %33 = tpu.matmul %32, %13, %cst_14 {dimension_numbers = #tpu.dot_dimension_numbers<[1], [0], [0], [1], [0, 0, 1, 1], [], []>} : vector<8x8xbf16>, vector<8x8xbf16>, vector<8x8xf32> -> vector<8x8xf32>
    %34 = vector.extract_strided_slice %8 {offsets = [0, 8], sizes = [8, 8], strides = [1, 1]} : vector<8x96xbf16> to vector<8x8xbf16>
    %35 = vector.extract_strided_slice %8 {offsets = [0, 40], sizes = [8, 8], strides = [1, 1]} : vector<8x96xbf16> to vector<8x8xbf16>
    %36 = vector.extract_strided_slice %8 {offsets = [0, 72], sizes = [8, 8], strides = [1, 1]} : vector<8x96xbf16> to vector<8x8xbf16>
    %cst_15 = arith.constant dense<0.000000e+00> : vector<8x8xf32>
    %37 = tpu.matmul %34, %35, %cst_15 {dimension_numbers = #tpu.dot_dimension_numbers<[1], [1], [0], [0], [0, 0, 1, 0], [], []>} : vector<8x8xbf16>, vector<8x8xbf16>, vector<8x8xf32> -> vector<8x8xf32>
    %cst_16 = arith.constant 0.353553385 : f32
    %38 = vector.broadcast %cst_16 : f32 to vector<8x8xf32>
    %39 = arith.mulf %37, %38 : vector<8x8xf32>
    %c0_i32_17 = arith.constant 0 : i32
    %40 = vector.broadcast %c0_i32_17 : i32 to vector<1x8xi32>
    %41 = arith.cmpi eq, %10, %40 : vector<1x8xi32>
    %cst_18 = arith.constant -1.000000e+09 : f32
    %42 = vector.shape_cast %41 : vector<1x8xi1> to vector<1x8xi1>
    %43 = vector.broadcast %42 : vector<1x8xi1> to vector<8x8xi1>
    %44 = vector.broadcast %cst_18 : f32 to vector<8x8xf32>
    %45 = arith.select %43, %44, %39 : vector<8x8xi1>, vector<8x8xf32>
    %cst_19 = arith.constant dense<0xFF800000> : vector<8xf32>
    %46 = vector.multi_reduction <maximumf>, %45, %cst_19 [1] : vector<8x8xf32> to vector<8xf32>
    %47 = vector.shape_cast %46 : vector<8xf32> to vector<8x1xf32>
    %48 = vector.broadcast %47 : vector<8x1xf32> to vector<8x8xf32>
    %49 = arith.subf %45, %48 : vector<8x8xf32>
    %50 = math.exp %49 : vector<8x8xf32>
    %cst_20 = arith.constant dense<0.000000e+00> : vector<8xf32>
    %51 = vector.multi_reduction <add>, %50, %cst_20 [1] : vector<8x8xf32> to vector<8xf32>
    %52 = vector.shape_cast %51 : vector<8xf32> to vector<8x1xf32>
    %53 = vector.broadcast %52 : vector<8x1xf32> to vector<8x8xf32>
    %54 = arith.divf %50, %53 : vector<8x8xf32>
    %55 = arith.truncf %54 : vector<8x8xf32> to vector<8x8xbf16>
    %cst_21 = arith.constant dense<0.000000e+00> : vector<8x8xf32>
    %56 = tpu.matmul %55, %36, %cst_21 {dimension_numbers = #tpu.dot_dimension_numbers<[1], [0], [0], [1], [0, 0, 1, 1], [], []>} : vector<8x8xbf16>, vector<8x8xbf16>, vector<8x8xf32> -> vector<8x8xf32>
    %57 = vector.extract_strided_slice %8 {offsets = [0, 16], sizes = [8, 8], strides = [1, 1]} : vector<8x96xbf16> to vector<8x8xbf16>
    %58 = vector.extract_strided_slice %8 {offsets = [0, 48], sizes = [8, 8], strides = [1, 1]} : vector<8x96xbf16> to vector<8x8xbf16>
    %59 = vector.extract_strided_slice %8 {offsets = [0, 80], sizes = [8, 8], strides = [1, 1]} : vector<8x96xbf16> to vector<8x8xbf16>
    %cst_22 = arith.constant dense<0.000000e+00> : vector<8x8xf32>
    %60 = tpu.matmul %57, %58, %cst_22 {dimension_numbers = #tpu.dot_dimension_numbers<[1], [1], [0], [0], [0, 0, 1, 0], [], []>} : vector<8x8xbf16>, vector<8x8xbf16>, vector<8x8xf32> -> vector<8x8xf32>
    %cst_23 = arith.constant 0.353553385 : f32
    %61 = vector.broadcast %cst_23 : f32 to vector<8x8xf32>
    %62 = arith.mulf %60, %61 : vector<8x8xf32>
    %c0_i32_24 = arith.constant 0 : i32
    %63 = vector.broadcast %c0_i32_24 : i32 to vector<1x8xi32>
    %64 = arith.cmpi eq, %10, %63 : vector<1x8xi32>
    %cst_25 = arith.constant -1.000000e+09 : f32
    %65 = vector.shape_cast %64 : vector<1x8xi1> to vector<1x8xi1>
    %66 = vector.broadcast %65 : vector<1x8xi1> to vector<8x8xi1>
    %67 = vector.broadcast %cst_25 : f32 to vector<8x8xf32>
    %68 = arith.select %66, %67, %62 : vector<8x8xi1>, vector<8x8xf32>
    %cst_26 = arith.constant dense<0xFF800000> : vector<8xf32>
    %69 = vector.multi_reduction <maximumf>, %68, %cst_26 [1] : vector<8x8xf32> to vector<8xf32>
    %70 = vector.shape_cast %69 : vector<8xf32> to vector<8x1xf32>
    %71 = vector.broadcast %70 : vector<8x1xf32> to vector<8x8xf32>
    %72 = arith.subf %68, %71 : vector<8x8xf32>
    %73 = math.exp %72 : vector<8x8xf32>
    %cst_27 = arith.constant dense<0.000000e+00> : vector<8xf32>
    %74 = vector.multi_reduction <add>, %73, %cst_27 [1] : vector<8x8xf32> to vector<8xf32>
    %75 = vector.shape_cast %74 : vector<8xf32> to vector<8x1xf32>
    %76 = vector.broadcast %75 : vector<8x1xf32> to vector<8x8xf32>
    %77 = arith.divf %73, %76 : vector<8x8xf32>
    %78 = arith.truncf %77 : vector<8x8xf32> to vector<8x8xbf16>
    %cst_28 = arith.constant dense<0.000000e+00> : vector<8x8xf32>
    %79 = tpu.matmul %78, %59, %cst_28 {dimension_numbers = #tpu.dot_dimension_numbers<[1], [0], [0], [1], [0, 0, 1, 1], [], []>} : vector<8x8xbf16>, vector<8x8xbf16>, vector<8x8xf32> -> vector<8x8xf32>
    %80 = vector.extract_strided_slice %8 {offsets = [0, 24], sizes = [8, 8], strides = [1, 1]} : vector<8x96xbf16> to vector<8x8xbf16>
    %81 = vector.extract_strided_slice %8 {offsets = [0, 56], sizes = [8, 8], strides = [1, 1]} : vector<8x96xbf16> to vector<8x8xbf16>
    %82 = vector.extract_strided_slice %8 {offsets = [0, 88], sizes = [8, 8], strides = [1, 1]} : vector<8x96xbf16> to vector<8x8xbf16>
    %cst_29 = arith.constant dense<0.000000e+00> : vector<8x8xf32>
    %83 = tpu.matmul %80, %81, %cst_29 {dimension_numbers = #tpu.dot_dimension_numbers<[1], [1], [0], [0], [0, 0, 1, 0], [], []>} : vector<8x8xbf16>, vector<8x8xbf16>, vector<8x8xf32> -> vector<8x8xf32>
    %cst_30 = arith.constant 0.353553385 : f32
    %84 = vector.broadcast %cst_30 : f32 to vector<8x8xf32>
    %85 = arith.mulf %83, %84 : vector<8x8xf32>
    %c0_i32_31 = arith.constant 0 : i32
    %86 = vector.broadcast %c0_i32_31 : i32 to vector<1x8xi32>
    %87 = arith.cmpi eq, %10, %86 : vector<1x8xi32>
    %cst_32 = arith.constant -1.000000e+09 : f32
    %88 = vector.shape_cast %87 : vector<1x8xi1> to vector<1x8xi1>
    %89 = vector.broadcast %88 : vector<1x8xi1> to vector<8x8xi1>
    %90 = vector.broadcast %cst_32 : f32 to vector<8x8xf32>
    %91 = arith.select %89, %90, %85 : vector<8x8xi1>, vector<8x8xf32>
    %cst_33 = arith.constant dense<0xFF800000> : vector<8xf32>
    %92 = vector.multi_reduction <maximumf>, %91, %cst_33 [1] : vector<8x8xf32> to vector<8xf32>
    %93 = vector.shape_cast %92 : vector<8xf32> to vector<8x1xf32>
    %94 = vector.broadcast %93 : vector<8x1xf32> to vector<8x8xf32>
    %95 = arith.subf %91, %94 : vector<8x8xf32>
    %96 = math.exp %95 : vector<8x8xf32>
    %cst_34 = arith.constant dense<0.000000e+00> : vector<8xf32>
    %97 = vector.multi_reduction <add>, %96, %cst_34 [1] : vector<8x8xf32> to vector<8xf32>
    %98 = vector.shape_cast %97 : vector<8xf32> to vector<8x1xf32>
    %99 = vector.broadcast %98 : vector<8x1xf32> to vector<8x8xf32>
    %100 = arith.divf %96, %99 : vector<8x8xf32>
    %101 = arith.truncf %100 : vector<8x8xf32> to vector<8x8xbf16>
    %cst_35 = arith.constant dense<0.000000e+00> : vector<8x8xf32>
    %102 = tpu.matmul %101, %82, %cst_35 {dimension_numbers = #tpu.dot_dimension_numbers<[1], [0], [0], [1], [0, 0, 1, 1], [], []>} : vector<8x8xbf16>, vector<8x8xbf16>, vector<8x8xf32> -> vector<8x8xf32>
    %103 = tpu.concatenate %33, %56, %79, %102 in 1 : vector<8x8xf32>, vector<8x8xf32>, vector<8x8xf32>, vector<8x8xf32> -> vector<8x32xf32>
    %104 = arith.truncf %103 : vector<8x32xf32> to vector<8x32xbf16>
    %c0_36 = arith.constant 0 : index
    %c0_37 = arith.constant 0 : index
    %105 = vector.load %arg7[%c0_36, %c0_37] : memref<32x32xbf16, #tpu.memory_space<vmem>>, vector<32x32xbf16>
    %cst_38 = arith.constant dense<0.000000e+00> : vector<8x32xf32>
    %106 = tpu.matmul %104, %105, %cst_38 {dimension_numbers = #tpu.dot_dimension_numbers<[1], [0], [0], [1], [0, 0, 1, 1], [], []>} : vector<8x32xbf16>, vector<32x32xbf16>, vector<8x32xf32> -> vector<8x32xf32>
    %c0_39 = arith.constant 0 : index
    %c0_40 = arith.constant 0 : index
    %107 = vector.load %arg8[%c0_39, %c0_40] : memref<1x32xf32, #tpu.memory_space<vmem>>, vector<1x32xf32>
    %108 = vector.broadcast %107 : vector<1x32xf32> to vector<8x32xf32>
    %109 = arith.addf %106, %108 : vector<8x32xf32>
    %110 = arith.addf %1, %109 : vector<8x32xf32>
    %c0_41 = arith.constant 0 : index
    %c0_42 = arith.constant 0 : index
    %111 = vector.load %arg9[%c0_41, %c0_42] : memref<1x32xf32, #tpu.memory_space<vmem>>, vector<1x32xf32>
    %c0_43 = arith.constant 0 : index
    %c0_44 = arith.constant 0 : index
    %112 = vector.load %arg10[%c0_43, %c0_44] : memref<1x32xf32, #tpu.memory_space<vmem>>, vector<1x32xf32>
    %cst_45 = arith.constant dense<0.000000e+00> : vector<8xf32>
    %113 = vector.multi_reduction <add>, %110, %cst_45 [1] : vector<8x32xf32> to vector<8xf32>
    %114 = vector.shape_cast %113 : vector<8xf32> to vector<8x1xf32>
    %cst_46 = arith.constant 3.200000e+01 : f32
    %115 = vector.broadcast %cst_46 : f32 to vector<8x1xf32>
    %116 = arith.divf %114, %115 : vector<8x1xf32>
    %117 = vector.broadcast %116 : vector<8x1xf32> to vector<8x32xf32>
    %118 = arith.subf %110, %117 : vector<8x32xf32>
    %119 = arith.mulf %118, %118 : vector<8x32xf32>
    %cst_47 = arith.constant dense<0.000000e+00> : vector<8xf32>
    %120 = vector.multi_reduction <add>, %119, %cst_47 [1] : vector<8x32xf32> to vector<8xf32>
    %121 = vector.shape_cast %120 : vector<8xf32> to vector<8x1xf32>
    %cst_48 = arith.constant 3.200000e+01 : f32
    %122 = vector.broadcast %cst_48 : f32 to vector<8x1xf32>
    %123 = arith.divf %121, %122 : vector<8x1xf32>
    %cst_49 = arith.constant 9.99999974E-6 : f32
    %124 = vector.broadcast %cst_49 : f32 to vector<8x1xf32>
    %125 = arith.addf %123, %124 : vector<8x1xf32>
    %126 = math.rsqrt %125 : vector<8x1xf32>
    %127 = vector.broadcast %126 : vector<8x1xf32> to vector<8x32xf32>
    %128 = arith.mulf %118, %127 : vector<8x32xf32>
    %129 = vector.broadcast %111 : vector<1x32xf32> to vector<8x32xf32>
    %130 = arith.mulf %128, %129 : vector<8x32xf32>
    %131 = vector.broadcast %112 : vector<1x32xf32> to vector<8x32xf32>
    %132 = arith.addf %130, %131 : vector<8x32xf32>
    %133 = arith.truncf %132 : vector<8x32xf32> to vector<8x32xbf16>
    %c0_50 = arith.constant 0 : index
    %c0_51 = arith.constant 0 : index
    %134 = vector.load %arg11[%c0_50, %c0_51] : memref<32x64xbf16, #tpu.memory_space<vmem>>, vector<32x64xbf16>
    %cst_52 = arith.constant dense<0.000000e+00> : vector<8x64xf32>
    %135 = tpu.matmul %133, %134, %cst_52 {dimension_numbers = #tpu.dot_dimension_numbers<[1], [0], [0], [1], [0, 0, 1, 1], [], []>} : vector<8x32xbf16>, vector<32x64xbf16>, vector<8x64xf32> -> vector<8x64xf32>
    %c0_53 = arith.constant 0 : index
    %c0_54 = arith.constant 0 : index
    %136 = vector.load %arg12[%c0_53, %c0_54] : memref<1x64xf32, #tpu.memory_space<vmem>>, vector<1x64xf32>
    %137 = vector.broadcast %136 : vector<1x64xf32> to vector<8x64xf32>
    %138 = arith.addf %135, %137 : vector<8x64xf32>
    %cst_55 = arith.constant 5.000000e-01 : f32
    %139 = vector.broadcast %cst_55 : f32 to vector<8x64xf32>
    %140 = arith.mulf %139, %138 : vector<8x64xf32>
    %cst_56 = arith.constant 0.707106769 : f32
    %141 = vector.broadcast %cst_56 : f32 to vector<8x64xf32>
    %142 = arith.mulf %138, %141 : vector<8x64xf32>
    %143 = math.erf %142 : vector<8x64xf32>
    %cst_57 = arith.constant 1.000000e+00 : f32
    %144 = vector.broadcast %cst_57 : f32 to vector<8x64xf32>
    %145 = arith.addf %144, %143 : vector<8x64xf32>
    %146 = arith.mulf %140, %145 : vector<8x64xf32>
    %147 = arith.truncf %146 : vector<8x64xf32> to vector<8x64xbf16>
    %c0_58 = arith.constant 0 : index
    %c0_59 = arith.constant 0 : index
    %148 = vector.load %arg13[%c0_58, %c0_59] : memref<64x32xbf16, #tpu.memory_space<vmem>>, vector<64x32xbf16>
    %cst_60 = arith.constant dense<0.000000e+00> : vector<8x32xf32>
    %149 = tpu.matmul %147, %148, %cst_60 {dimension_numbers = #tpu.dot_dimension_numbers<[1], [0], [0], [1], [0, 0, 1, 1], [], []>} : vector<8x64xbf16>, vector<64x32xbf16>, vector<8x32xf32> -> vector<8x32xf32>
    %c0_61 = arith.constant 0 : index
    %c0_62 = arith.constant 0 : index
    %150 = vector.load %arg14[%c0_61, %c0_62] : memref<1x32xf32, #tpu.memory_space<vmem>>, vector<1x32xf32>
    %151 = vector.broadcast %150 : vector<1x32xf32> to vector<8x32xf32>
    %152 = arith.addf %149, %151 : vector<8x32xf32>
    %153 = arith.addf %132, %152 : vector<8x32xf32>
    %c0_63 = arith.constant 0 : index
    %c0_64 = arith.constant 0 : index
    %154 = vector.load %arg15[%c0_63, %c0_64] : memref<1x32xf32, #tpu.memory_space<vmem>>, vector<1x32xf32>
    %c0_65 = arith.constant 0 : index
    %c0_66 = arith.constant 0 : index
    %155 = vector.load %arg16[%c0_65, %c0_66] : memref<1x32xf32, #tpu.memory_space<vmem>>, vector<1x32xf32>
    %cst_67 = arith.constant dense<0.000000e+00> : vector<8xf32>
    %156 = vector.multi_reduction <add>, %153, %cst_67 [1] : vector<8x32xf32> to vector<8xf32>
    %157 = vector.shape_cast %156 : vector<8xf32> to vector<8x1xf32>
    %cst_68 = arith.constant 3.200000e+01 : f32
    %158 = vector.broadcast %cst_68 : f32 to vector<8x1xf32>
    %159 = arith.divf %157, %158 : vector<8x1xf32>
    %160 = vector.broadcast %159 : vector<8x1xf32> to vector<8x32xf32>
    %161 = arith.subf %153, %160 : vector<8x32xf32>
    %162 = arith.mulf %161, %161 : vector<8x32xf32>
    %cst_69 = arith.constant dense<0.000000e+00> : vector<8xf32>
    %163 = vector.multi_reduction <add>, %162, %cst_69 [1] : vector<8x32xf32> to vector<8xf32>
    %164 = vector.shape_cast %163 : vector<8xf32> to vector<8x1xf32>
    %cst_70 = arith.constant 3.200000e+01 : f32
    %165 = vector.broadcast %cst_70 : f32 to vector<8x1xf32>
    %166 = arith.divf %164, %165 : vector<8x1xf32>
    %cst_71 = arith.constant 9.99999974E-6 : f32
    %167 = vector.broadcast %cst_71 : f32 to vector<8x1xf32>
    %168 = arith.addf %166, %167 : vector<8x1xf32>
    %169 = math.rsqrt %168 : vector<8x1xf32>
    %170 = vector.broadcast %169 : vector<8x1xf32> to vector<8x32xf32>
    %171 = arith.mulf %161, %170 : vector<8x32xf32>
    %172 = vector.broadcast %154 : vector<1x32xf32> to vector<8x32xf32>
    %173 = arith.mulf %171, %172 : vector<8x32xf32>
    %174 = vector.broadcast %155 : vector<1x32xf32> to vector<8x32xf32>
    %175 = arith.addf %173, %174 : vector<8x32xf32>
    %c0_72 = arith.constant 0 : index
    %c0_73 = arith.constant 0 : index
    %c0_74 = arith.constant 0 : index
    %176 = vector.load %arg17[%c0_72, %c0_73, %c0_74] : memref<1x8x32xf32, #tpu.memory_space<vmem>>, vector<1x8x32xf32>
    %177 = vector.shape_cast %176 : vector<1x8x32xf32> to vector<8x32xf32>
    %178 = vector.shape_cast %175 : vector<8x32xf32> to vector<1x8x32xf32>
    tpu.vector_store %arg17[%c0_72, %c0_73, %c0_74], %178 {strides = array<i32>} : memref<1x8x32xf32, #tpu.memory_space<vmem>>, vector<1x8x32xf32>,
    return
  }
  func.func @transform_0(%arg0: i32) -> (i32, i32, i32) {
    %c0_i32 = arith.constant 0 : i32
    %c0_i32_0 = arith.constant 0 : i32
    %c0_i32_1 = arith.constant 0 : i32
    return %arg0, %c0_i32, %c0_i32_0 : i32, i32, i32
  }
  func.func @transform_1(%arg0: i32) -> (i32, i32, i32) {
    %c0_i32 = arith.constant 0 : i32
    %c0_i32_0 = arith.constant 0 : i32
    %c0_i32_1 = arith.constant 0 : i32
    return %arg0, %c0_i32, %c0_i32_0 : i32, i32, i32
  }
  func.func @transform_2(%arg0: i32) -> (i32, i32) {
    %c0_i32 = arith.constant 0 : i32
    %c0_i32_0 = arith.constant 0 : i32
    %c0_i32_1 = arith.constant 0 : i32
    return %c0_i32, %c0_i32_0 : i32, i32
  }
  func.func @transform_3(%arg0: i32) -> (i32, i32) {
    %c0_i32 = arith.constant 0 : i32
    %c0_i32_0 = arith.constant 0 : i32
    %c0_i32_1 = arith.constant 0 : i32
    return %c0_i32, %c0_i32_0 : i32, i32
  }
  func.func @transform_4(%arg0: i32) -> (i32, i32) {
    %c0_i32 = arith.constant 0 : i32
    %c0_i32_0 = arith.constant 0 : i32
    %c0_i32_1 = arith.constant 0 : i32
    return %c0_i32, %c0_i32_0 : i32, i32
  }
  func.func @transform_5(%arg0: i32) -> (i32, i32) {
    %c0_i32 = arith.constant 0 : i32
    %c0_i32_0 = arith.constant 0 : i32
    %c0_i32_1 = arith.constant 0 : i32
    return %c0_i32, %c0_i32_0 : i32, i32
  }
  func.func @transform_6(%arg0: i32) -> (i32, i32) {
    %c0_i32 = arith.constant 0 : i32
    %c0_i32_0 = arith.constant 0 : i32
    %c0_i32_1 = arith.constant 0 : i32
    return %c0_i32, %c0_i32_0 : i32, i32
  }
  func.func @transform_7(%arg0: i32) -> (i32, i32) {
    %c0_i32 = arith.constant 0 : i32
    %c0_i32_0 = arith.constant 0 : i32
    %c0_i32_1 = arith.constant 0 : i32
    return %c0_i32, %c0_i32_0 : i32, i32
  }
  func.func @transform_8(%arg0: i32) -> (i32, i32) {
    %c0_i32 = arith.constant 0 : i32
    %c0_i32_0 = arith.constant 0 : i32
    %c0_i32_1 = arith.constant 0 : i32
    return %c0_i32, %c0_i32_0 : i32, i32
  }
  func.func @transform_9(%arg0: i32) -> (i32, i32) {
    %c0_i32 = arith.constant 0 : i32
    %c0_i32_0 = arith.constant 0 : i32
    %c0_i32_1 = arith.constant 0 : i32
    return %c0_i32, %c0_i32_0 : i32, i32
  }
  func.func @transform_10(%arg0: i32) -> (i32, i32) {
    %c0_i32 = arith.constant 0 : i32
    %c0_i32_0 = arith.constant 0 : i32
    %c0_i32_1 = arith.constant 0 : i32
    return %c0_i32, %c0_i32_0 : i32, i32
  }
  func.func @transform_11(%arg0: i32) -> (i32, i32) {
    %c0_i32 = arith.constant 0 : i32
    %c0_i32_0 = arith.constant 0 : i32
    %c0_i32_1 = arith.constant 0 : i32
    return %c0_i32, %c0_i32_0 : i32, i32
  }
  func.func @transform_12(%arg0: i32) -> (i32, i32) {
    %c0_i32 = arith.constant 0 : i32
    %c0_i32_0 = arith.constant 0 : i32
    %c0_i32_1 = arith.constant 0 : i32
    return %c0_i32, %c0_i32_0 : i32, i32
  }
  func.func @transform_13(%arg0: i32) -> (i32, i32) {
    %c0_i32 = arith.constant 0 : i32
    %c0_i32_0 = arith.constant 0 : i32
    %c0_i32_1 = arith.constant 0 : i32
    return %c0_i32, %c0_i32_0 : i32, i32
  }
  func.func @transform_14(%arg0: i32) -> (i32, i32) {
    %c0_i32 = arith.constant 0 : i32
    %c0_i32_0 = arith.constant 0 : i32
    %c0_i32_1 = arith.constant 0 : i32
    return %c0_i32, %c0_i32_0 : i32, i32
  }
  func.func @transform_15(%arg0: i32) -> (i32, i32) {
    %c0_i32 = arith.constant 0 : i32
    %c0_i32_0 = arith.constant 0 : i32
    %c0_i32_1 = arith.constant 0 : i32
    return %c0_i32, %c0_i32_0 : i32, i32
  }
  func.func @transform_16(%arg0: i32) -> (i32, i32, i32) {
    %c0_i32 = arith.constant 0 : i32
    %c0_i32_0 = arith.constant 0 : i32
    %c0_i32_1 = arith.constant 0 : i32
    return %arg0, %c0_i32, %c0_i32_0 : i32, i32, i32
  }
}

module attributes {stable_mosaic.version = 11 : i64} {
  func.func @transformer_layer_kernel(%arg0: i32, %arg1: memref<1x8x32xf32, #tpu.memory_space<vmem>>, %arg2: memref<1x1x8xi32, #tpu.memory_space<vmem>>, %arg3: memref<1x32xf32, #tpu.memory_space<vmem>>, %arg4: memref<1x32xf32, #tpu.memory_space<vmem>>, %arg5: memref<32x96xbf16, #tpu.memory_space<vmem>>, %arg6: memref<1x96xf32, #tpu.memory_space<vmem>>, %arg7: memref<32x32xbf16, #tpu.memory_space<vmem>>, %arg8: memref<1x32xf32, #tpu.memory_space<vmem>>, %arg9: memref<1x32xf32, #tpu.memory_space<vmem>>, %arg10: memref<1x32xf32, #tpu.memory_space<vmem>>, %arg11: memref<32x64xbf16, #tpu.memory_space<vmem>>, %arg12: memref<1x64xf32, #tpu.memory_space<vmem>>, %arg13: memref<64x32xbf16, #tpu.memory_space<vmem>>, %arg14: memref<1x32xf32, #tpu.memory_space<vmem>>, %arg15: memref<1x32xf32, #tpu.memory_space<vmem>>, %arg16: memref<1x32xf32, #tpu.memory_space<vmem>>, %arg17: memref<1x8x32xf32, #tpu.memory_space<vmem>>) attributes {dimension_semantics = [#tpu.dimension_semantics<parallel>], iteration_bounds = array<i64: 2>, scalar_prefetch = 0 : i64, scratch_operands = 0 : i64, tpu.core_type = #tpu.core_type<tc>, window_params = [{transform_indices = @transform_0, window_bounds = array<i64: 1, 8, 32>}, {transform_indices = @transform_1, window_bounds = array<i64: 1, 1, 8>}, {pipeline_mode = #tpu.pipeline_mode<synchronous>, transform_indices = @transform_2, window_bounds = array<i64: 1, 32>}, {pipeline_mode = #tpu.pipeline_mode<synchronous>, transform_indices = @transform_3, window_bounds = array<i64: 1, 32>}, {pipeline_mode = #tpu.pipeline_mode<synchronous>, transform_indices = @transform_4, window_bounds = array<i64: 32, 96>}, {pipeline_mode = #tpu.pipeline_mode<synchronous>, transform_indices = @transform_5, window_bounds = array<i64: 1, 96>}, {pipeline_mode = #tpu.pipeline_mode<synchronous>, transform_indices = @transform_6, window_bounds = array<i64: 32, 32>}, {pipeline_mode = #tpu.pipeline_mode<synchronous>, transform_indices = @transform_7, window_bounds = array<i64: 1, 32>}, {pipeline_mode = #tpu.pipeline_mode<synchronous>, transform_indices = @transform_8, window_bounds = array<i64: 1, 32>}, {pipeline_mode = #tpu.pipeline_mode<synchronous>, transform_indices = @transform_9, window_bounds = array<i64: 1, 32>}, {pipeline_mode = #tpu.pipeline_mode<synchronous>, transform_indices = @transform_10, window_bounds = array<i64: 32, 64>}, {pipeline_mode = #tpu.pipeline_mode<synchronous>, transform_indices = @transform_11, window_bounds = array<i64: 1, 64>}, {pipeline_mode = #tpu.pipeline_mode<synchronous>, transform_indices = @transform_12, window_bounds = array<i64: 64, 32>}, {pipeline_mode = #tpu.pipeline_mode<synchronous>, transform_indices = @transform_13, window_bounds = array<i64: 1, 32>}, {pipeline_mode = #tpu.pipeline_mode<synchronous>, transform_indices = @transform_14, window_bounds = array<i64: 1, 32>}, {pipeline_mode = #tpu.pipeline_mode<synchronous>, transform_indices = @transform_15, window_bounds = array<i64: 1, 32>}, {transform_indices = @transform_16, window_bounds = array<i64: 1, 8, 32>}]} {
    %c0 = arith.constant 0 : index
    %c0_0 = arith.constant 0 : index
    %c0_1 = arith.constant 0 : index
    %0 = vector.load %arg1[%c0, %c0_0, %c0_1] : memref<1x8x32xf32, #tpu.memory_space<vmem>>, vector<1x8x32xf32>
    %1 = vector.shape_cast %0 : vector<1x8x32xf32> to vector<8x32xf32>
    %c0_2 = arith.constant 0 : index
    %c0_3 = arith.constant 0 : index
    %2 = vector.load %arg3[%c0_2, %c0_3] : memref<1x32xf32, #tpu.memory_space<vmem>>, vector<1x32xf32>
    %c0_4 = arith.constant 0 : index
    %c0_5 = arith.constant 0 : index
    %3 = vector.load %arg4[%c0_4, %c0_5] : memref<1x32xf32, #tpu.memory_space<vmem>>, vector<1x32xf32>
    %cst = arith.constant dense<0.000000e+00> : vector<8xf32>
    %4 = vector.multi_reduction <add>, %1, %cst [1] : vector<8x32xf32> to vector<8xf32>
    %5 = vector.shape_cast %4 : vector<8xf32> to vector<8x1xf32>
    %cst_6 = arith.constant 3.200000e+01 : f32
    %6 = vector.broadcast %cst_6 : f32 to vector<8x1xf32>
    %7 = arith.divf %5, %6 : vector<8x1xf32>
    %8 = vector.broadcast %7 : vector<8x1xf32> to vector<8x32xf32>
    %9 = arith.subf %1, %8 : vector<8x32xf32>
    %10 = arith.mulf %9, %9 : vector<8x32xf32>
    %cst_7 = arith.constant dense<0.000000e+00> : vector<8xf32>
    %11 = vector.multi_reduction <add>, %10, %cst_7 [1] : vector<8x32xf32> to vector<8xf32>
    %12 = vector.shape_cast %11 : vector<8xf32> to vector<8x1xf32>
    %cst_8 = arith.constant 3.200000e+01 : f32
    %13 = vector.broadcast %cst_8 : f32 to vector<8x1xf32>
    %14 = arith.divf %12, %13 : vector<8x1xf32>
    %cst_9 = arith.constant 9.99999996E-13 : f32
    %15 = vector.broadcast %cst_9 : f32 to vector<8x1xf32>
    %16 = arith.addf %14, %15 : vector<8x1xf32>
    %17 = math.rsqrt %16 : vector<8x1xf32>
    %18 = vector.broadcast %17 : vector<8x1xf32> to vector<8x32xf32>
    %19 = arith.mulf %9, %18 : vector<8x32xf32>
    %20 = vector.broadcast %2 : vector<1x32xf32> to vector<8x32xf32>
    %21 = arith.mulf %19, %20 : vector<8x32xf32>
    %22 = vector.broadcast %3 : vector<1x32xf32> to vector<8x32xf32>
    %23 = arith.addf %21, %22 : vector<8x32xf32>
    %24 = arith.truncf %23 : vector<8x32xf32> to vector<8x32xbf16>
    %c0_10 = arith.constant 0 : index
    %c0_11 = arith.constant 0 : index
    %25 = vector.load %arg5[%c0_10, %c0_11] : memref<32x96xbf16, #tpu.memory_space<vmem>>, vector<32x96xbf16>
    %cst_12 = arith.constant dense<0.000000e+00> : vector<8x96xf32>
    %26 = tpu.matmul %24, %25, %cst_12 {dimension_numbers = #tpu.dot_dimension_numbers<[1], [0], [0], [1], [0, 0, 1, 1], [], []>} : vector<8x32xbf16>, vector<32x96xbf16>, vector<8x96xf32> -> vector<8x96xf32>
    %c0_13 = arith.constant 0 : index
    %c0_14 = arith.constant 0 : index
    %27 = vector.load %arg6[%c0_13, %c0_14] : memref<1x96xf32, #tpu.memory_space<vmem>>, vector<1x96xf32>
    %28 = vector.broadcast %27 : vector<1x96xf32> to vector<8x96xf32>
    %29 = arith.addf %26, %28 : vector<8x96xf32>
    %30 = arith.truncf %29 : vector<8x96xf32> to vector<8x96xbf16>
    %c0_15 = arith.constant 0 : index
    %c0_16 = arith.constant 0 : index
    %c0_17 = arith.constant 0 : index
    %31 = vector.load %arg2[%c0_15, %c0_16, %c0_17] : memref<1x1x8xi32, #tpu.memory_space<vmem>>, vector<1x1x8xi32>
    %32 = vector.shape_cast %31 : vector<1x1x8xi32> to vector<1x8xi32>
    %33 = vector.extract_strided_slice %30 {offsets = [0, 0], sizes = [8, 8], strides = [1, 1]} : vector<8x96xbf16> to vector<8x8xbf16>
    %34 = vector.extract_strided_slice %30 {offsets = [0, 32], sizes = [8, 8], strides = [1, 1]} : vector<8x96xbf16> to vector<8x8xbf16>
    %35 = vector.extract_strided_slice %30 {offsets = [0, 64], sizes = [8, 8], strides = [1, 1]} : vector<8x96xbf16> to vector<8x8xbf16>
    %cst_18 = arith.constant dense<0.000000e+00> : vector<8x8xf32>
    %36 = tpu.matmul %33, %34, %cst_18 {dimension_numbers = #tpu.dot_dimension_numbers<[1], [1], [0], [0], [0, 0, 1, 0], [], []>} : vector<8x8xbf16>, vector<8x8xbf16>, vector<8x8xf32> -> vector<8x8xf32>
    %cst_19 = arith.constant 0.353553385 : f32
    %37 = vector.broadcast %cst_19 : f32 to vector<8x8xf32>
    %38 = arith.mulf %36, %37 : vector<8x8xf32>
    %c0_i32 = arith.constant 0 : i32
    %39 = vector.broadcast %c0_i32 : i32 to vector<1x8xi32>
    %40 = arith.cmpi eq, %32, %39 : vector<1x8xi32>
    %cst_20 = arith.constant -1.000000e+09 : f32
    %41 = vector.shape_cast %40 : vector<1x8xi1> to vector<1x8xi1>
    %42 = vector.broadcast %41 : vector<1x8xi1> to vector<8x8xi1>
    %43 = vector.broadcast %cst_20 : f32 to vector<8x8xf32>
    %44 = arith.select %42, %43, %38 : vector<8x8xi1>, vector<8x8xf32>
    %cst_21 = arith.constant dense<0xFF800000> : vector<8xf32>
    %45 = vector.multi_reduction <maximumf>, %44, %cst_21 [1] : vector<8x8xf32> to vector<8xf32>
    %46 = vector.shape_cast %45 : vector<8xf32> to vector<8x1xf32>
    %47 = vector.broadcast %46 : vector<8x1xf32> to vector<8x8xf32>
    %48 = arith.subf %44, %47 : vector<8x8xf32>
    %49 = math.exp %48 : vector<8x8xf32>
    %cst_22 = arith.constant dense<0.000000e+00> : vector<8xf32>
    %50 = vector.multi_reduction <add>, %49, %cst_22 [1] : vector<8x8xf32> to vector<8xf32>
    %51 = vector.shape_cast %50 : vector<8xf32> to vector<8x1xf32>
    %52 = vector.broadcast %51 : vector<8x1xf32> to vector<8x8xf32>
    %53 = arith.divf %49, %52 : vector<8x8xf32>
    %54 = arith.truncf %53 : vector<8x8xf32> to vector<8x8xbf16>
    %cst_23 = arith.constant dense<0.000000e+00> : vector<8x8xf32>
    %55 = tpu.matmul %54, %35, %cst_23 {dimension_numbers = #tpu.dot_dimension_numbers<[1], [0], [0], [1], [0, 0, 1, 1], [], []>} : vector<8x8xbf16>, vector<8x8xbf16>, vector<8x8xf32> -> vector<8x8xf32>
    %56 = vector.extract_strided_slice %30 {offsets = [0, 8], sizes = [8, 8], strides = [1, 1]} : vector<8x96xbf16> to vector<8x8xbf16>
    %57 = vector.extract_strided_slice %30 {offsets = [0, 40], sizes = [8, 8], strides = [1, 1]} : vector<8x96xbf16> to vector<8x8xbf16>
    %58 = vector.extract_strided_slice %30 {offsets = [0, 72], sizes = [8, 8], strides = [1, 1]} : vector<8x96xbf16> to vector<8x8xbf16>
    %cst_24 = arith.constant dense<0.000000e+00> : vector<8x8xf32>
    %59 = tpu.matmul %56, %57, %cst_24 {dimension_numbers = #tpu.dot_dimension_numbers<[1], [1], [0], [0], [0, 0, 1, 0], [], []>} : vector<8x8xbf16>, vector<8x8xbf16>, vector<8x8xf32> -> vector<8x8xf32>
    %cst_25 = arith.constant 0.353553385 : f32
    %60 = vector.broadcast %cst_25 : f32 to vector<8x8xf32>
    %61 = arith.mulf %59, %60 : vector<8x8xf32>
    %c0_i32_26 = arith.constant 0 : i32
    %62 = vector.broadcast %c0_i32_26 : i32 to vector<1x8xi32>
    %63 = arith.cmpi eq, %32, %62 : vector<1x8xi32>
    %cst_27 = arith.constant -1.000000e+09 : f32
    %64 = vector.shape_cast %63 : vector<1x8xi1> to vector<1x8xi1>
    %65 = vector.broadcast %64 : vector<1x8xi1> to vector<8x8xi1>
    %66 = vector.broadcast %cst_27 : f32 to vector<8x8xf32>
    %67 = arith.select %65, %66, %61 : vector<8x8xi1>, vector<8x8xf32>
    %cst_28 = arith.constant dense<0xFF800000> : vector<8xf32>
    %68 = vector.multi_reduction <maximumf>, %67, %cst_28 [1] : vector<8x8xf32> to vector<8xf32>
    %69 = vector.shape_cast %68 : vector<8xf32> to vector<8x1xf32>
    %70 = vector.broadcast %69 : vector<8x1xf32> to vector<8x8xf32>
    %71 = arith.subf %67, %70 : vector<8x8xf32>
    %72 = math.exp %71 : vector<8x8xf32>
    %cst_29 = arith.constant dense<0.000000e+00> : vector<8xf32>
    %73 = vector.multi_reduction <add>, %72, %cst_29 [1] : vector<8x8xf32> to vector<8xf32>
    %74 = vector.shape_cast %73 : vector<8xf32> to vector<8x1xf32>
    %75 = vector.broadcast %74 : vector<8x1xf32> to vector<8x8xf32>
    %76 = arith.divf %72, %75 : vector<8x8xf32>
    %77 = arith.truncf %76 : vector<8x8xf32> to vector<8x8xbf16>
    %cst_30 = arith.constant dense<0.000000e+00> : vector<8x8xf32>
    %78 = tpu.matmul %77, %58, %cst_30 {dimension_numbers = #tpu.dot_dimension_numbers<[1], [0], [0], [1], [0, 0, 1, 1], [], []>} : vector<8x8xbf16>, vector<8x8xbf16>, vector<8x8xf32> -> vector<8x8xf32>
    %79 = vector.extract_strided_slice %30 {offsets = [0, 16], sizes = [8, 8], strides = [1, 1]} : vector<8x96xbf16> to vector<8x8xbf16>
    %80 = vector.extract_strided_slice %30 {offsets = [0, 48], sizes = [8, 8], strides = [1, 1]} : vector<8x96xbf16> to vector<8x8xbf16>
    %81 = vector.extract_strided_slice %30 {offsets = [0, 80], sizes = [8, 8], strides = [1, 1]} : vector<8x96xbf16> to vector<8x8xbf16>
    %cst_31 = arith.constant dense<0.000000e+00> : vector<8x8xf32>
    %82 = tpu.matmul %79, %80, %cst_31 {dimension_numbers = #tpu.dot_dimension_numbers<[1], [1], [0], [0], [0, 0, 1, 0], [], []>} : vector<8x8xbf16>, vector<8x8xbf16>, vector<8x8xf32> -> vector<8x8xf32>
    %cst_32 = arith.constant 0.353553385 : f32
    %83 = vector.broadcast %cst_32 : f32 to vector<8x8xf32>
    %84 = arith.mulf %82, %83 : vector<8x8xf32>
    %c0_i32_33 = arith.constant 0 : i32
    %85 = vector.broadcast %c0_i32_33 : i32 to vector<1x8xi32>
    %86 = arith.cmpi eq, %32, %85 : vector<1x8xi32>
    %cst_34 = arith.constant -1.000000e+09 : f32
    %87 = vector.shape_cast %86 : vector<1x8xi1> to vector<1x8xi1>
    %88 = vector.broadcast %87 : vector<1x8xi1> to vector<8x8xi1>
    %89 = vector.broadcast %cst_34 : f32 to vector<8x8xf32>
    %90 = arith.select %88, %89, %84 : vector<8x8xi1>, vector<8x8xf32>
    %cst_35 = arith.constant dense<0xFF800000> : vector<8xf32>
    %91 = vector.multi_reduction <maximumf>, %90, %cst_35 [1] : vector<8x8xf32> to vector<8xf32>
    %92 = vector.shape_cast %91 : vector<8xf32> to vector<8x1xf32>
    %93 = vector.broadcast %92 : vector<8x1xf32> to vector<8x8xf32>
    %94 = arith.subf %90, %93 : vector<8x8xf32>
    %95 = math.exp %94 : vector<8x8xf32>
    %cst_36 = arith.constant dense<0.000000e+00> : vector<8xf32>
    %96 = vector.multi_reduction <add>, %95, %cst_36 [1] : vector<8x8xf32> to vector<8xf32>
    %97 = vector.shape_cast %96 : vector<8xf32> to vector<8x1xf32>
    %98 = vector.broadcast %97 : vector<8x1xf32> to vector<8x8xf32>
    %99 = arith.divf %95, %98 : vector<8x8xf32>
    %100 = arith.truncf %99 : vector<8x8xf32> to vector<8x8xbf16>
    %cst_37 = arith.constant dense<0.000000e+00> : vector<8x8xf32>
    %101 = tpu.matmul %100, %81, %cst_37 {dimension_numbers = #tpu.dot_dimension_numbers<[1], [0], [0], [1], [0, 0, 1, 1], [], []>} : vector<8x8xbf16>, vector<8x8xbf16>, vector<8x8xf32> -> vector<8x8xf32>
    %102 = vector.extract_strided_slice %30 {offsets = [0, 24], sizes = [8, 8], strides = [1, 1]} : vector<8x96xbf16> to vector<8x8xbf16>
    %103 = vector.extract_strided_slice %30 {offsets = [0, 56], sizes = [8, 8], strides = [1, 1]} : vector<8x96xbf16> to vector<8x8xbf16>
    %104 = vector.extract_strided_slice %30 {offsets = [0, 88], sizes = [8, 8], strides = [1, 1]} : vector<8x96xbf16> to vector<8x8xbf16>
    %cst_38 = arith.constant dense<0.000000e+00> : vector<8x8xf32>
    %105 = tpu.matmul %102, %103, %cst_38 {dimension_numbers = #tpu.dot_dimension_numbers<[1], [1], [0], [0], [0, 0, 1, 0], [], []>} : vector<8x8xbf16>, vector<8x8xbf16>, vector<8x8xf32> -> vector<8x8xf32>
    %cst_39 = arith.constant 0.353553385 : f32
    %106 = vector.broadcast %cst_39 : f32 to vector<8x8xf32>
    %107 = arith.mulf %105, %106 : vector<8x8xf32>
    %c0_i32_40 = arith.constant 0 : i32
    %108 = vector.broadcast %c0_i32_40 : i32 to vector<1x8xi32>
    %109 = arith.cmpi eq, %32, %108 : vector<1x8xi32>
    %cst_41 = arith.constant -1.000000e+09 : f32
    %110 = vector.shape_cast %109 : vector<1x8xi1> to vector<1x8xi1>
    %111 = vector.broadcast %110 : vector<1x8xi1> to vector<8x8xi1>
    %112 = vector.broadcast %cst_41 : f32 to vector<8x8xf32>
    %113 = arith.select %111, %112, %107 : vector<8x8xi1>, vector<8x8xf32>
    %cst_42 = arith.constant dense<0xFF800000> : vector<8xf32>
    %114 = vector.multi_reduction <maximumf>, %113, %cst_42 [1] : vector<8x8xf32> to vector<8xf32>
    %115 = vector.shape_cast %114 : vector<8xf32> to vector<8x1xf32>
    %116 = vector.broadcast %115 : vector<8x1xf32> to vector<8x8xf32>
    %117 = arith.subf %113, %116 : vector<8x8xf32>
    %118 = math.exp %117 : vector<8x8xf32>
    %cst_43 = arith.constant dense<0.000000e+00> : vector<8xf32>
    %119 = vector.multi_reduction <add>, %118, %cst_43 [1] : vector<8x8xf32> to vector<8xf32>
    %120 = vector.shape_cast %119 : vector<8xf32> to vector<8x1xf32>
    %121 = vector.broadcast %120 : vector<8x1xf32> to vector<8x8xf32>
    %122 = arith.divf %118, %121 : vector<8x8xf32>
    %123 = arith.truncf %122 : vector<8x8xf32> to vector<8x8xbf16>
    %cst_44 = arith.constant dense<0.000000e+00> : vector<8x8xf32>
    %124 = tpu.matmul %123, %104, %cst_44 {dimension_numbers = #tpu.dot_dimension_numbers<[1], [0], [0], [1], [0, 0, 1, 1], [], []>} : vector<8x8xbf16>, vector<8x8xbf16>, vector<8x8xf32> -> vector<8x8xf32>
    %125 = tpu.concatenate %55, %78, %101, %124 in 1 : vector<8x8xf32>, vector<8x8xf32>, vector<8x8xf32>, vector<8x8xf32> -> vector<8x32xf32>
    %126 = arith.truncf %125 : vector<8x32xf32> to vector<8x32xbf16>
    %c0_45 = arith.constant 0 : index
    %c0_46 = arith.constant 0 : index
    %127 = vector.load %arg7[%c0_45, %c0_46] : memref<32x32xbf16, #tpu.memory_space<vmem>>, vector<32x32xbf16>
    %cst_47 = arith.constant dense<0.000000e+00> : vector<8x32xf32>
    %128 = tpu.matmul %126, %127, %cst_47 {dimension_numbers = #tpu.dot_dimension_numbers<[1], [0], [0], [1], [0, 0, 1, 1], [], []>} : vector<8x32xbf16>, vector<32x32xbf16>, vector<8x32xf32> -> vector<8x32xf32>
    %c0_48 = arith.constant 0 : index
    %c0_49 = arith.constant 0 : index
    %129 = vector.load %arg8[%c0_48, %c0_49] : memref<1x32xf32, #tpu.memory_space<vmem>>, vector<1x32xf32>
    %130 = vector.broadcast %129 : vector<1x32xf32> to vector<8x32xf32>
    %131 = arith.addf %128, %130 : vector<8x32xf32>
    %132 = arith.addf %23, %131 : vector<8x32xf32>
    %c0_50 = arith.constant 0 : index
    %c0_51 = arith.constant 0 : index
    %133 = vector.load %arg9[%c0_50, %c0_51] : memref<1x32xf32, #tpu.memory_space<vmem>>, vector<1x32xf32>
    %c0_52 = arith.constant 0 : index
    %c0_53 = arith.constant 0 : index
    %134 = vector.load %arg10[%c0_52, %c0_53] : memref<1x32xf32, #tpu.memory_space<vmem>>, vector<1x32xf32>
    %cst_54 = arith.constant dense<0.000000e+00> : vector<8xf32>
    %135 = vector.multi_reduction <add>, %132, %cst_54 [1] : vector<8x32xf32> to vector<8xf32>
    %136 = vector.shape_cast %135 : vector<8xf32> to vector<8x1xf32>
    %cst_55 = arith.constant 3.200000e+01 : f32
    %137 = vector.broadcast %cst_55 : f32 to vector<8x1xf32>
    %138 = arith.divf %136, %137 : vector<8x1xf32>
    %139 = vector.broadcast %138 : vector<8x1xf32> to vector<8x32xf32>
    %140 = arith.subf %132, %139 : vector<8x32xf32>
    %141 = arith.mulf %140, %140 : vector<8x32xf32>
    %cst_56 = arith.constant dense<0.000000e+00> : vector<8xf32>
    %142 = vector.multi_reduction <add>, %141, %cst_56 [1] : vector<8x32xf32> to vector<8xf32>
    %143 = vector.shape_cast %142 : vector<8xf32> to vector<8x1xf32>
    %cst_57 = arith.constant 3.200000e+01 : f32
    %144 = vector.broadcast %cst_57 : f32 to vector<8x1xf32>
    %145 = arith.divf %143, %144 : vector<8x1xf32>
    %cst_58 = arith.constant 9.99999974E-6 : f32
    %146 = vector.broadcast %cst_58 : f32 to vector<8x1xf32>
    %147 = arith.addf %145, %146 : vector<8x1xf32>
    %148 = math.rsqrt %147 : vector<8x1xf32>
    %149 = vector.broadcast %148 : vector<8x1xf32> to vector<8x32xf32>
    %150 = arith.mulf %140, %149 : vector<8x32xf32>
    %151 = vector.broadcast %133 : vector<1x32xf32> to vector<8x32xf32>
    %152 = arith.mulf %150, %151 : vector<8x32xf32>
    %153 = vector.broadcast %134 : vector<1x32xf32> to vector<8x32xf32>
    %154 = arith.addf %152, %153 : vector<8x32xf32>
    %155 = arith.truncf %154 : vector<8x32xf32> to vector<8x32xbf16>
    %c0_59 = arith.constant 0 : index
    %c0_60 = arith.constant 0 : index
    %156 = vector.load %arg11[%c0_59, %c0_60] : memref<32x64xbf16, #tpu.memory_space<vmem>>, vector<32x64xbf16>
    %cst_61 = arith.constant dense<0.000000e+00> : vector<8x64xf32>
    %157 = tpu.matmul %155, %156, %cst_61 {dimension_numbers = #tpu.dot_dimension_numbers<[1], [0], [0], [1], [0, 0, 1, 1], [], []>} : vector<8x32xbf16>, vector<32x64xbf16>, vector<8x64xf32> -> vector<8x64xf32>
    %c0_62 = arith.constant 0 : index
    %c0_63 = arith.constant 0 : index
    %158 = vector.load %arg12[%c0_62, %c0_63] : memref<1x64xf32, #tpu.memory_space<vmem>>, vector<1x64xf32>
    %159 = vector.broadcast %158 : vector<1x64xf32> to vector<8x64xf32>
    %160 = arith.addf %157, %159 : vector<8x64xf32>
    %cst_64 = arith.constant 5.000000e-01 : f32
    %161 = vector.broadcast %cst_64 : f32 to vector<8x64xf32>
    %162 = arith.mulf %161, %160 : vector<8x64xf32>
    %cst_65 = arith.constant 0.707106769 : f32
    %163 = vector.broadcast %cst_65 : f32 to vector<8x64xf32>
    %164 = arith.mulf %160, %163 : vector<8x64xf32>
    %165 = math.erf %164 : vector<8x64xf32>
    %cst_66 = arith.constant 1.000000e+00 : f32
    %166 = vector.broadcast %cst_66 : f32 to vector<8x64xf32>
    %167 = arith.addf %166, %165 : vector<8x64xf32>
    %168 = arith.mulf %162, %167 : vector<8x64xf32>
    %169 = arith.truncf %168 : vector<8x64xf32> to vector<8x64xbf16>
    %c0_67 = arith.constant 0 : index
    %c0_68 = arith.constant 0 : index
    %170 = vector.load %arg13[%c0_67, %c0_68] : memref<64x32xbf16, #tpu.memory_space<vmem>>, vector<64x32xbf16>
    %cst_69 = arith.constant dense<0.000000e+00> : vector<8x32xf32>
    %171 = tpu.matmul %169, %170, %cst_69 {dimension_numbers = #tpu.dot_dimension_numbers<[1], [0], [0], [1], [0, 0, 1, 1], [], []>} : vector<8x64xbf16>, vector<64x32xbf16>, vector<8x32xf32> -> vector<8x32xf32>
    %c0_70 = arith.constant 0 : index
    %c0_71 = arith.constant 0 : index
    %172 = vector.load %arg14[%c0_70, %c0_71] : memref<1x32xf32, #tpu.memory_space<vmem>>, vector<1x32xf32>
    %173 = vector.broadcast %172 : vector<1x32xf32> to vector<8x32xf32>
    %174 = arith.addf %171, %173 : vector<8x32xf32>
    %175 = arith.addf %154, %174 : vector<8x32xf32>
    %c0_72 = arith.constant 0 : index
    %c0_73 = arith.constant 0 : index
    %176 = vector.load %arg15[%c0_72, %c0_73] : memref<1x32xf32, #tpu.memory_space<vmem>>, vector<1x32xf32>
    %c0_74 = arith.constant 0 : index
    %c0_75 = arith.constant 0 : index
    %177 = vector.load %arg16[%c0_74, %c0_75] : memref<1x32xf32, #tpu.memory_space<vmem>>, vector<1x32xf32>
    %cst_76 = arith.constant dense<0.000000e+00> : vector<8xf32>
    %178 = vector.multi_reduction <add>, %175, %cst_76 [1] : vector<8x32xf32> to vector<8xf32>
    %179 = vector.shape_cast %178 : vector<8xf32> to vector<8x1xf32>
    %cst_77 = arith.constant 3.200000e+01 : f32
    %180 = vector.broadcast %cst_77 : f32 to vector<8x1xf32>
    %181 = arith.divf %179, %180 : vector<8x1xf32>
    %182 = vector.broadcast %181 : vector<8x1xf32> to vector<8x32xf32>
    %183 = arith.subf %175, %182 : vector<8x32xf32>
    %184 = arith.mulf %183, %183 : vector<8x32xf32>
    %cst_78 = arith.constant dense<0.000000e+00> : vector<8xf32>
    %185 = vector.multi_reduction <add>, %184, %cst_78 [1] : vector<8x32xf32> to vector<8xf32>
    %186 = vector.shape_cast %185 : vector<8xf32> to vector<8x1xf32>
    %cst_79 = arith.constant 3.200000e+01 : f32
    %187 = vector.broadcast %cst_79 : f32 to vector<8x1xf32>
    %188 = arith.divf %186, %187 : vector<8x1xf32>
    %cst_80 = arith.constant 9.99999974E-6 : f32
    %189 = vector.broadcast %cst_80 : f32 to vector<8x1xf32>
    %190 = arith.addf %188, %189 : vector<8x1xf32>
    %191 = math.rsqrt %190 : vector<8x1xf32>
    %192 = vector.broadcast %191 : vector<8x1xf32> to vector<8x32xf32>
    %193 = arith.mulf %183, %192 : vector<8x32xf32>
    %194 = vector.broadcast %176 : vector<1x32xf32> to vector<8x32xf32>
    %195 = arith.mulf %193, %194 : vector<8x32xf32>
    %196 = vector.broadcast %177 : vector<1x32xf32> to vector<8x32xf32>
    %197 = arith.addf %195, %196 : vector<8x32xf32>
    %c0_81 = arith.constant 0 : index
    %c0_82 = arith.constant 0 : index
    %c0_83 = arith.constant 0 : index
    %198 = vector.load %arg17[%c0_81, %c0_82, %c0_83] : memref<1x8x32xf32, #tpu.memory_space<vmem>>, vector<1x8x32xf32>
    %199 = vector.shape_cast %198 : vector<1x8x32xf32> to vector<8x32xf32>
    %200 = vector.shape_cast %197 : vector<8x32xf32> to vector<1x8x32xf32>
    tpu.vector_store %arg17[%c0_81, %c0_82, %c0_83], %200 {strides = array<i32>} : memref<1x8x32xf32, #tpu.memory_space<vmem>>, vector<1x8x32xf32>,
    return
  }
  func.func @transform_0(%arg0: i32) -> (i32, i32, i32) {
    %c0_i32 = arith.constant 0 : i32
    %c0_i32_0 = arith.constant 0 : i32
    %c0_i32_1 = arith.constant 0 : i32
    return %arg0, %c0_i32, %c0_i32_0 : i32, i32, i32
  }
  func.func @transform_1(%arg0: i32) -> (i32, i32, i32) {
    %c0_i32 = arith.constant 0 : i32
    %c0_i32_0 = arith.constant 0 : i32
    %c0_i32_1 = arith.constant 0 : i32
    return %arg0, %c0_i32, %c0_i32_0 : i32, i32, i32
  }
  func.func @transform_2(%arg0: i32) -> (i32, i32) {
    %c0_i32 = arith.constant 0 : i32
    %c0_i32_0 = arith.constant 0 : i32
    %c0_i32_1 = arith.constant 0 : i32
    return %c0_i32, %c0_i32_0 : i32, i32
  }
  func.func @transform_3(%arg0: i32) -> (i32, i32) {
    %c0_i32 = arith.constant 0 : i32
    %c0_i32_0 = arith.constant 0 : i32
    %c0_i32_1 = arith.constant 0 : i32
    return %c0_i32, %c0_i32_0 : i32, i32
  }
  func.func @transform_4(%arg0: i32) -> (i32, i32) {
    %c0_i32 = arith.constant 0 : i32
    %c0_i32_0 = arith.constant 0 : i32
    %c0_i32_1 = arith.constant 0 : i32
    return %c0_i32, %c0_i32_0 : i32, i32
  }
  func.func @transform_5(%arg0: i32) -> (i32, i32) {
    %c0_i32 = arith.constant 0 : i32
    %c0_i32_0 = arith.constant 0 : i32
    %c0_i32_1 = arith.constant 0 : i32
    return %c0_i32, %c0_i32_0 : i32, i32
  }
  func.func @transform_6(%arg0: i32) -> (i32, i32) {
    %c0_i32 = arith.constant 0 : i32
    %c0_i32_0 = arith.constant 0 : i32
    %c0_i32_1 = arith.constant 0 : i32
    return %c0_i32, %c0_i32_0 : i32, i32
  }
  func.func @transform_7(%arg0: i32) -> (i32, i32) {
    %c0_i32 = arith.constant 0 : i32
    %c0_i32_0 = arith.constant 0 : i32
    %c0_i32_1 = arith.constant 0 : i32
    return %c0_i32, %c0_i32_0 : i32, i32
  }
  func.func @transform_8(%arg0: i32) -> (i32, i32) {
    %c0_i32 = arith.constant 0 : i32
    %c0_i32_0 = arith.constant 0 : i32
    %c0_i32_1 = arith.constant 0 : i32
    return %c0_i32, %c0_i32_0 : i32, i32
  }
  func.func @transform_9(%arg0: i32) -> (i32, i32) {
    %c0_i32 = arith.constant 0 : i32
    %c0_i32_0 = arith.constant 0 : i32
    %c0_i32_1 = arith.constant 0 : i32
    return %c0_i32, %c0_i32_0 : i32, i32
  }
  func.func @transform_10(%arg0: i32) -> (i32, i32) {
    %c0_i32 = arith.constant 0 : i32
    %c0_i32_0 = arith.constant 0 : i32
    %c0_i32_1 = arith.constant 0 : i32
    return %c0_i32, %c0_i32_0 : i32, i32
  }
  func.func @transform_11(%arg0: i32) -> (i32, i32) {
    %c0_i32 = arith.constant 0 : i32
    %c0_i32_0 = arith.constant 0 : i32
    %c0_i32_1 = arith.constant 0 : i32
    return %c0_i32, %c0_i32_0 : i32, i32
  }
  func.func @transform_12(%arg0: i32) -> (i32, i32) {
    %c0_i32 = arith.constant 0 : i32
    %c0_i32_0 = arith.constant 0 : i32
    %c0_i32_1 = arith.constant 0 : i32
    return %c0_i32, %c0_i32_0 : i32, i32
  }
  func.func @transform_13(%arg0: i32) -> (i32, i32) {
    %c0_i32 = arith.constant 0 : i32
    %c0_i32_0 = arith.constant 0 : i32
    %c0_i32_1 = arith.constant 0 : i32
    return %c0_i32, %c0_i32_0 : i32, i32
  }
  func.func @transform_14(%arg0: i32) -> (i32, i32) {
    %c0_i32 = arith.constant 0 : i32
    %c0_i32_0 = arith.constant 0 : i32
    %c0_i32_1 = arith.constant 0 : i32
    return %c0_i32, %c0_i32_0 : i32, i32
  }
  func.func @transform_15(%arg0: i32) -> (i32, i32) {
    %c0_i32 = arith.constant 0 : i32
    %c0_i32_0 = arith.constant 0 : i32
    %c0_i32_1 = arith.constant 0 : i32
    return %c0_i32, %c0_i32_0 : i32, i32
  }
  func.func @transform_16(%arg0: i32) -> (i32, i32, i32) {
    %c0_i32 = arith.constant 0 : i32
    %c0_i32_0 = arith.constant 0 : i32
    %c0_i32_1 = arith.constant 0 : i32
    return %arg0, %c0_i32, %c0_i32_0 : i32, i32, i32
  }
}

</mosaic_0001>

<llo_original>
// kernel: forward.3
$region0: #{forward.3}
  #allocation0 [shape = 'u32[]', space=smem, size = 0x4, offset = 0x4, fixed_abs, tag = 'smem constant byte address 0x4 - core index']
  #allocation1 [shape = 'u32[144,128]{1,0:T(1,128)}', space=vmem, size = 0x12000, scoped, tag = 'internal scratch']
  %s0 = inlined_call_operand.vmem [shape: f32[2,8,32], index: 0, kind: input, shape index: {}]
  %s1 = inlined_call_operand.vmem [shape: s32[2,1,8], index: 1, kind: input, shape index: {}]
  %s2 = inlined_call_operand.vmem [shape: f32[1,32], index: 2, kind: input, shape index: {}]
  %s3 = inlined_call_operand.vmem [shape: f32[1,32], index: 3, kind: input, shape index: {}]
  %s4 = inlined_call_operand.vmem [shape: bf16[32,96], index: 4, kind: input, shape index: {}]
  %s5 = inlined_call_operand.vmem [shape: f32[1,96], index: 5, kind: input, shape index: {}]
  %s6 = inlined_call_operand.vmem [shape: bf16[32,32], index: 6, kind: input, shape index: {}]
  %s7 = inlined_call_operand.vmem [shape: f32[1,32], index: 7, kind: input, shape index: {}]
  %s8 = inlined_call_operand.vmem [shape: f32[1,32], index: 8, kind: input, shape index: {}]
  %s9 = inlined_call_operand.vmem [shape: f32[1,32], index: 9, kind: input, shape index: {}]
  %s10 = inlined_call_operand.vmem [shape: bf16[32,64], index: 10, kind: input, shape index: {}]
  %s11 = inlined_call_operand.vmem [shape: f32[1,64], index: 11, kind: input, shape index: {}]
  %s12 = inlined_call_operand.vmem [shape: bf16[64,32], index: 12, kind: input, shape index: {}]
  %s13 = inlined_call_operand.vmem [shape: f32[1,32], index: 13, kind: input, shape index: {}]
  %s14 = inlined_call_operand.vmem [shape: f32[1,32], index: 14, kind: input, shape index: {}]
  %s15 = inlined_call_operand.vmem [shape: f32[1,32], index: 15, kind: input, shape index: {}]
  %s16 = inlined_call_operand.hbm [shape: f32[2,8,32], index: 16, kind: output, shape index: {}]
  %s17 = sld [smem:[#allocation0]]
  $region97: #{forward.3} parent=0
    _
  %s19 = ssub.s32 1, %s17
  %s20 = scalar_select 0, %s19, %s17
  $region1: #{forward.3} parent=0
    #allocation2 [shape = 'u8[8192]{0}', space=vmem, size = 0x2000, scoped, tag = 'output window, operand 0']
    #allocation3 [shape = 's32[2]{0}', space=sflag, size = 0x8, scoped, tag = 'scoped memory for forward.3']
    %21 = vsyncpa [#allocation3], 0
    %s22 = scalar_lea.sflag [#allocation3], 1
    %23 = vsyncpa %s22, 0
    loop: start=0, step=1, limit=4
    $region2: #{forward.3} parent=1 // loop_pre_header
      _
    $region3: #{forward.3} parent=1 // loop_header
      %s25 = sphi 0, %s29
      %p26 = scmp.ge.s32.totalorder %s25, 4
      %s35 = sphi 0, %s37
      %s38 = sphi 0, %s35
      %s39 = sphi 0, %s38
      %s55 = sphi 0, %s39
      %s61 = sphi 0, %s63
      %s64 = sphi 0, %s61
      %s65 = sphi 0, %s64
      %s81 = sphi 0, %s65
      %s85 = sphi 0, %s85
      %s87 = sphi 0, %s85
      %s88 = sphi 0, %s87
      %s102 = sphi 0, %s88
      %s106 = sphi 0, %s106
      %s108 = sphi 0, %s106
      %s109 = sphi 0, %s108
      %s123 = sphi 0, %s109
      %s127 = sphi 0, %s127
      %s129 = sphi 0, %s127
      %s130 = sphi 0, %s129
      %s144 = sphi 0, %s130
      %s148 = sphi 0, %s148
      %s150 = sphi 0, %s148
      %s151 = sphi 0, %s150
      %s165 = sphi 0, %s151
      %s169 = sphi 0, %s169
      %s171 = sphi 0, %s169
      %s172 = sphi 0, %s171
      %s186 = sphi 0, %s172
      %s190 = sphi 0, %s190
      %s192 = sphi 0, %s190
      %s193 = sphi 0, %s192
      %s207 = sphi 0, %s193
      %s211 = sphi 0, %s211
      %s213 = sphi 0, %s211
      %s214 = sphi 0, %s213
      %s228 = sphi 0, %s214
      %s232 = sphi 0, %s232
      %s234 = sphi 0, %s232
      %s235 = sphi 0, %s234
      %s249 = sphi 0, %s235
      %s253 = sphi 0, %s253
      %s255 = sphi 0, %s253
      %s256 = sphi 0, %s255
      %s270 = sphi 0, %s256
      %s274 = sphi 0, %s274
      %s276 = sphi 0, %s274
      %s277 = sphi 0, %s276
      %s291 = sphi 0, %s277
      %s295 = sphi 0, %s295
      %s297 = sphi 0, %s295
      %s298 = sphi 0, %s297
      %s312 = sphi 0, %s298
      %s316 = sphi 0, %s316
      %s318 = sphi 0, %s316
      %s319 = sphi 0, %s318
      %s333 = sphi 0, %s319
      %s337 = sphi 0, %s337
      %s339 = sphi 0, %s337
      %s340 = sphi 0, %s339
      %s354 = sphi 0, %s340
      %s358 = sphi 0, %s358
      %s360 = sphi 0, %s358
      %s361 = sphi 0, %s360
      %s375 = sphi 0, %s361
      %s381 = sphi 0, %s383
      %s384 = sphi 0, %s381
      %s385 = sphi 0, %s384
      %s401 = sphi 0, %s385
    $region4: #{forward.3} parent=1 // loop_header_branch
      %28 = sbr.rel (%p26) target = $region8
    $region5: #{forward.3} parent=1 // loop_body
      %s30 = ssub.s32 %s25, 1
      %s31 = ssub.s32 %s25, 2
      %s32 = sadd.s32 %s25, 1
      %s33 = ssub.s32 %s25, %s32
      %p34 = scmp.eq.s32.totalorder %s33, 0
      %s36 = sadd.s32 %s35, 1
      %s37 = scalar_select %p34, %s35, %s36
      %p40 = pneg %p34
      %p41 = scmp.eq.s32.totalorder %s25, 1
      %p42 = por %p40, %p41
      %p43 = scmp.ne.s32.totalorder %s35, %s38
      %p44 = scmp.eq.s32.totalorder %s25, 0
      %p45 = por %p43, %p44
      %p46 = scmp.ne.s32.totalorder %s35, %s38
      %p47 = scmp.eq.s32.totalorder %s30, 1
      %p48 = por %p46, %p47
      %p49 = scmp.ne.s32.totalorder %s38, %s39
      %p50 = scmp.eq.s32.totalorder %s30, 0
      %p51 = por %p49, %p50
      %p52 = scmp.ne.s32.totalorder %s38, %s39
      %p53 = scmp.eq.s32.totalorder %s31, 1
      %p54 = por %p52, %p53
      %p56 = scmp.ne.s32.totalorder %s39, %s55
      %p57 = scmp.eq.s32.totalorder %s31, 0
      %p58 = por %p56, %p57
      %s59 = ssub.s32 %s25, %s32
      %p60 = scmp.eq.s32.totalorder %s59, 0
      %s62 = sadd.s32 %s61, 1
      %s63 = scalar_select %p60, %s61, %s62
      %p66 = pneg %p60
      %p67 = scmp.eq.s32.totalorder %s25, 1
      %p68 = por %p66, %p67
      %p69 = scmp.ne.s32.totalorder %s61, %s64
      %p70 = scmp.eq.s32.totalorder %s25, 0
      %p71 = por %p69, %p70
      %p72 = scmp.ne.s32.totalorder %s61, %s64
      %p73 = scmp.eq.s32.totalorder %s30, 1
      %p74 = por %p72, %p73
      %p75 = scmp.ne.s32.totalorder %s64, %s65
      %p76 = scmp.eq.s32.totalorder %s30, 0
      %p77 = por %p75, %p76
      %p78 = scmp.ne.s32.totalorder %s64, %s65
      %p79 = scmp.eq.s32.totalorder %s31, 1
      %p80 = por %p78, %p79
      %p82 = scmp.ne.s32.totalorder %s65, %s81
      %p83 = scmp.eq.s32.totalorder %s31, 0
      %p84 = por %p82, %p83
      %s86 = sadd.s32 %s85, 1
      %p89 = scmp.eq.s32.totalorder %s25, 1
      %p90 = scmp.ne.s32.totalorder %s85, %s87
      %p91 = scmp.eq.s32.totalorder %s25, 0
      %p92 = por %p90, %p91
      %p93 = scmp.ne.s32.totalorder %s85, %s87
      %p94 = scmp.eq.s32.totalorder %s30, 1
      %p95 = por %p93, %p94
      %p96 = scmp.ne.s32.totalorder %s87, %s88
      %p97 = scmp.eq.s32.totalorder %s30, 0
      %p98 = por %p96, %p97
      %p99 = scmp.ne.s32.totalorder %s87, %s88
      %p100 = scmp.eq.s32.totalorder %s31, 1
      %p101 = por %p99, %p100
      %p103 = scmp.ne.s32.totalorder %s88, %s102
      %p104 = scmp.eq.s32.totalorder %s31, 0
      %p105 = por %p103, %p104
      %s107 = sadd.s32 %s106, 1
      %p110 = scmp.eq.s32.totalorder %s25, 1
      %p111 = scmp.ne.s32.totalorder %s106, %s108
      %p112 = scmp.eq.s32.totalorder %s25, 0
      %p113 = por %p111, %p112
      %p114 = scmp.ne.s32.totalorder %s106, %s108
      %p115 = scmp.eq.s32.totalorder %s30, 1
      %p116 = por %p114, %p115
      %p117 = scmp.ne.s32.totalorder %s108, %s109
      %p118 = scmp.eq.s32.totalorder %s30, 0
      %p119 = por %p117, %p118
      %p120 = scmp.ne.s32.totalorder %s108, %s109
      %p121 = scmp.eq.s32.totalorder %s31, 1
      %p122 = por %p120, %p121
      %p124 = scmp.ne.s32.totalorder %s109, %s123
      %p125 = scmp.eq.s32.totalorder %s31, 0
      %p126 = por %p124, %p125
      %s128 = sadd.s32 %s127, 1
      %p131 = scmp.eq.s32.totalorder %s25, 1
      %p132 = scmp.ne.s32.totalorder %s127, %s129
      %p133 = scmp.eq.s32.totalorder %s25, 0
      %p134 = por %p132, %p133
      %p135 = scmp.ne.s32.totalorder %s127, %s129
      %p136 = scmp.eq.s32.totalorder %s30, 1
      %p137 = por %p135, %p136
      %p138 = scmp.ne.s32.totalorder %s129, %s130
      %p139 = scmp.eq.s32.totalorder %s30, 0
      %p140 = por %p138, %p139
      %p141 = scmp.ne.s32.totalorder %s129, %s130
      %p142 = scmp.eq.s32.totalorder %s31, 1
      %p143 = por %p141, %p142
      %p145 = scmp.ne.s32.totalorder %s130, %s144
      %p146 = scmp.eq.s32.totalorder %s31, 0
      %p147 = por %p145, %p146
      %s149 = sadd.s32 %s148, 1
      %p152 = scmp.eq.s32.totalorder %s25, 1
      %p153 = scmp.ne.s32.totalorder %s148, %s150
      %p154 = scmp.eq.s32.totalorder %s25, 0
      %p155 = por %p153, %p154
      %p156 = scmp.ne.s32.totalorder %s148, %s150
      %p157 = scmp.eq.s32.totalorder %s30, 1
      %p158 = por %p156, %p157
      %p159 = scmp.ne.s32.totalorder %s150, %s151
      %p160 = scmp.eq.s32.totalorder %s30, 0
      %p161 = por %p159, %p160
      %p162 = scmp.ne.s32.totalorder %s150, %s151
      %p163 = scmp.eq.s32.totalorder %s31, 1
      %p164 = por %p162, %p163
      %p166 = scmp.ne.s32.totalorder %s151, %s165
      %p167 = scmp.eq.s32.totalorder %s31, 0
      %p168 = por %p166, %p167
      %s170 = sadd.s32 %s169, 1
      %p173 = scmp.eq.s32.totalorder %s25, 1
      %p174 = scmp.ne.s32.totalorder %s169, %s171
      %p175 = scmp.eq.s32.totalorder %s25, 0
      %p176 = por %p174, %p175
      %p177 = scmp.ne.s32.totalorder %s169, %s171
      %p178 = scmp.eq.s32.totalorder %s30, 1
      %p179 = por %p177, %p178
      %p180 = scmp.ne.s32.totalorder %s171, %s172
      %p181 = scmp.eq.s32.totalorder %s30, 0
      %p182 = por %p180, %p181
      %p183 = scmp.ne.s32.totalorder %s171, %s172
      %p184 = scmp.eq.s32.totalorder %s31, 1
      %p185 = por %p183, %p184
      %p187 = scmp.ne.s32.totalorder %s172, %s186
      %p188 = scmp.eq.s32.totalorder %s31, 0
      %p189 = por %p187, %p188
      %s191 = sadd.s32 %s190, 1
      %p194 = scmp.eq.s32.totalorder %s25, 1
      %p195 = scmp.ne.s32.totalorder %s190, %s192
      %p196 = scmp.eq.s32.totalorder %s25, 0
      %p197 = por %p195, %p196
      %p198 = scmp.ne.s32.totalorder %s190, %s192
      %p199 = scmp.eq.s32.totalorder %s30, 1
      %p200 = por %p198, %p199
      %p201 = scmp.ne.s32.totalorder %s192, %s193
      %p202 = scmp.eq.s32.totalorder %s30, 0
      %p203 = por %p201, %p202
      %p204 = scmp.ne.s32.totalorder %s192, %s193
      %p205 = scmp.eq.s32.totalorder %s31, 1
      %p206 = por %p204, %p205
      %p208 = scmp.ne.s32.totalorder %s193, %s207
      %p209 = scmp.eq.s32.totalorder %s31, 0
      %p210 = por %p208, %p209
      %s212 = sadd.s32 %s211, 1
      %p215 = scmp.eq.s32.totalorder %s25, 1
      %p216 = scmp.ne.s32.totalorder %s211, %s213
      %p217 = scmp.eq.s32.totalorder %s25, 0
      %p218 = por %p216, %p217
      %p219 = scmp.ne.s32.totalorder %s211, %s213
      %p220 = scmp.eq.s32.totalorder %s30, 1
      %p221 = por %p219, %p220
      %p222 = scmp.ne.s32.totalorder %s213, %s214
      %p223 = scmp.eq.s32.totalorder %s30, 0
      %p224 = por %p222, %p223
      %p225 = scmp.ne.s32.totalorder %s213, %s214
      %p226 = scmp.eq.s32.totalorder %s31, 1
      %p227 = por %p225, %p226
      %p229 = scmp.ne.s32.totalorder %s214, %s228
      %p230 = scmp.eq.s32.totalorder %s31, 0
      %p231 = por %p229, %p230
      %s233 = sadd.s32 %s232, 1
      %p236 = scmp.eq.s32.totalorder %s25, 1
      %p237 = scmp.ne.s32.totalorder %s232, %s234
      %p238 = scmp.eq.s32.totalorder %s25, 0
      %p239 = por %p237, %p238
      %p240 = scmp.ne.s32.totalorder %s232, %s234
      %p241 = scmp.eq.s32.totalorder %s30, 1
      %p242 = por %p240, %p241
      %p243 = scmp.ne.s32.totalorder %s234, %s235
      %p244 = scmp.eq.s32.totalorder %s30, 0
      %p245 = por %p243, %p244
      %p246 = scmp.ne.s32.totalorder %s234, %s235
      %p247 = scmp.eq.s32.totalorder %s31, 1
      %p248 = por %p246, %p247
      %p250 = scmp.ne.s32.totalorder %s235, %s249
      %p251 = scmp.eq.s32.totalorder %s31, 0
      %p252 = por %p250, %p251
      %s254 = sadd.s32 %s253, 1
      %p257 = scmp.eq.s32.totalorder %s25, 1
      %p258 = scmp.ne.s32.totalorder %s253, %s255
      %p259 = scmp.eq.s32.totalorder %s25, 0
      %p260 = por %p258, %p259
      %p261 = scmp.ne.s32.totalorder %s253, %s255
      %p262 = scmp.eq.s32.totalorder %s30, 1
      %p263 = por %p261, %p262
      %p264 = scmp.ne.s32.totalorder %s255, %s256
      %p265 = scmp.eq.s32.totalorder %s30, 0
      %p266 = por %p264, %p265
      %p267 = scmp.ne.s32.totalorder %s255, %s256
      %p268 = scmp.eq.s32.totalorder %s31, 1
      %p269 = por %p267, %p268
      %p271 = scmp.ne.s32.totalorder %s256, %s270
      %p272 = scmp.eq.s32.totalorder %s31, 0
      %p273 = por %p271, %p272
      %s275 = sadd.s32 %s274, 1
      %p278 = scmp.eq.s32.totalorder %s25, 1
      %p279 = scmp.ne.s32.totalorder %s274, %s276
      %p280 = scmp.eq.s32.totalorder %s25, 0
      %p281 = por %p279, %p280
      %p282 = scmp.ne.s32.totalorder %s274, %s276
      %p283 = scmp.eq.s32.totalorder %s30, 1
      %p284 = por %p282, %p283
      %p285 = scmp.ne.s32.totalorder %s276, %s277
      %p286 = scmp.eq.s32.totalorder %s30, 0
      %p287 = por %p285, %p286
      %p288 = scmp.ne.s32.totalorder %s276, %s277
      %p289 = scmp.eq.s32.totalorder %s31, 1
      %p290 = por %p288, %p289
      %p292 = scmp.ne.s32.totalorder %s277, %s291
      %p293 = scmp.eq.s32.totalorder %s31, 0
      %p294 = por %p292, %p293
      %s296 = sadd.s32 %s295, 1
      %p299 = scmp.eq.s32.totalorder %s25, 1
      %p300 = scmp.ne.s32.totalorder %s295, %s297
      %p301 = scmp.eq.s32.totalorder %s25, 0
      %p302 = por %p300, %p301
      %p303 = scmp.ne.s32.totalorder %s295, %s297
      %p304 = scmp.eq.s32.totalorder %s30, 1
      %p305 = por %p303, %p304
      %p306 = scmp.ne.s32.totalorder %s297, %s298
      %p307 = scmp.eq.s32.totalorder %s30, 0
      %p308 = por %p306, %p307
      %p309 = scmp.ne.s32.totalorder %s297, %s298
      %p310 = scmp.eq.s32.totalorder %s31, 1
      %p311 = por %p309, %p310
      %p313 = scmp.ne.s32.totalorder %s298, %s312
      %p314 = scmp.eq.s32.totalorder %s31, 0
      %p315 = por %p313, %p314
      %s317 = sadd.s32 %s316, 1
      %p320 = scmp.eq.s32.totalorder %s25, 1
      %p321 = scmp.ne.s32.totalorder %s316, %s318
      %p322 = scmp.eq.s32.totalorder %s25, 0
      %p323 = por %p321, %p322
      %p324 = scmp.ne.s32.totalorder %s316, %s318
      %p325 = scmp.eq.s32.totalorder %s30, 1
      %p326 = por %p324, %p325
      %p327 = scmp.ne.s32.totalorder %s318, %s319
      %p328 = scmp.eq.s32.totalorder %s30, 0
      %p329 = por %p327, %p328
      %p330 = scmp.ne.s32.totalorder %s318, %s319
      %p331 = scmp.eq.s32.totalorder %s31, 1
      %p332 = por %p330, %p331
      %p334 = scmp.ne.s32.totalorder %s319, %s333
      %p335 = scmp.eq.s32.totalorder %s31, 0
      %p336 = por %p334, %p335
      %s338 = sadd.s32 %s337, 1
      %p341 = scmp.eq.s32.totalorder %s25, 1
      %p342 = scmp.ne.s32.totalorder %s337, %s339
      %p343 = scmp.eq.s32.totalorder %s25, 0
      %p344 = por %p342, %p343
      %p345 = scmp.ne.s32.totalorder %s337, %s339
      %p346 = scmp.eq.s32.totalorder %s30, 1
      %p347 = por %p345, %p346
      %p348 = scmp.ne.s32.totalorder %s339, %s340
      %p349 = scmp.eq.s32.totalorder %s30, 0
      %p350 = por %p348, %p349
      %p351 = scmp.ne.s32.totalorder %s339, %s340
      %p352 = scmp.eq.s32.totalorder %s31, 1
      %p353 = por %p351, %p352
      %p355 = scmp.ne.s32.totalorder %s340, %s354
      %p356 = scmp.eq.s32.totalorder %s31, 0
      %p357 = por %p355, %p356
      %s359 = sadd.s32 %s358, 1
      %p362 = scmp.eq.s32.totalorder %s25, 1
      %p363 = scmp.ne.s32.totalorder %s358, %s360
      %p364 = scmp.eq.s32.totalorder %s25, 0
      %p365 = por %p363, %p364
      %p366 = scmp.ne.s32.totalorder %s358, %s360
      %p367 = scmp.eq.s32.totalorder %s30, 1
      %p368 = por %p366, %p367
      %p369 = scmp.ne.s32.totalorder %s360, %s361
      %p370 = scmp.eq.s32.totalorder %s30, 0
      %p371 = por %p369, %p370
      %p372 = scmp.ne.s32.totalorder %s360, %s361
      %p373 = scmp.eq.s32.totalorder %s31, 1
      %p374 = por %p372, %p373
      %p376 = scmp.ne.s32.totalorder %s361, %s375
      %p377 = scmp.eq.s32.totalorder %s31, 0
      %p378 = por %p376, %p377
      %s379 = ssub.s32 %s25, %s32
      %p380 = scmp.eq.s32.totalorder %s379, 0
      %s382 = sadd.s32 %s381, 1
      %s383 = scalar_select %p380, %s381, %s382
      %p386 = pneg %p380
      %p387 = scmp.eq.s32.totalorder %s25, 1
      %p388 = por %p386, %p387
      %p389 = scmp.ne.s32.totalorder %s381, %s384
      %p390 = scmp.eq.s32.totalorder %s25, 0
      %p391 = por %p389, %p390
      %p392 = scmp.ne.s32.totalorder %s381, %s384
      %p393 = scmp.eq.s32.totalorder %s30, 1
      %p394 = por %p392, %p393
      %p395 = scmp.ne.s32.totalorder %s384, %s385
      %p396 = scmp.eq.s32.totalorder %s30, 0
      %p397 = por %p395, %p396
      %p398 = scmp.ne.s32.totalorder %s384, %s385
      %p399 = scmp.eq.s32.totalorder %s31, 1
      %p400 = por %p398, %p399
      %p402 = scmp.ne.s32.totalorder %s385, %s401
      %p403 = scmp.eq.s32.totalorder %s31, 0
      %p404 = por %p402, %p403
      %p405 = scmp.le.s32.totalorder 1, %s25
      %p406 = scmp.lt.s32.totalorder %s25, 3
      %p407 = pnand %p405, %p406
      %p408 = pneg %p407
      // Predicated region
      $region9: #{forward.3} parent=5 // pred_check
        _
      $region10: #{forward.3} parent=5 // pred_check_branch
        %410 = sbr.rel (%p407) target = $region12
      $region11: #{forward.3} parent=5 // pred_region
        %s411 = ssub.s32 %s25, 1
        // Predicated region
        $region13: #{forward.3} parent=11 // pred_check
          %p412 = pneg %p98
        $region14: #{forward.3} parent=11 // pred_check_branch
          %414 = sbr.rel (%p412) target = $region16
        $region15: #{forward.3} parent=11 // pred_region
          _
        $region16: #{forward.3} parent=11 // pred_fallthru
          _
        // Predicated region
        $region17: #{forward.3} parent=11 // pred_check
          %p415 = pneg %p119
        $region18: #{forward.3} parent=11 // pred_check_branch
          %417 = sbr.rel (%p415) target = $region20
        $region19: #{forward.3} parent=11 // pred_region
          _
        $region20: #{forward.3} parent=11 // pred_fallthru
          _
        // Predicated region
        $region21: #{forward.3} parent=11 // pred_check
          %p418 = pneg %p140
        $region22: #{forward.3} parent=11 // pred_check_branch
          %420 = sbr.rel (%p418) target = $region24
        $region23: #{forward.3} parent=11 // pred_region
          _
        $region24: #{forward.3} parent=11 // pred_fallthru
          _
        // Predicated region
        $region25: #{forward.3} parent=11 // pred_check
          %p421 = pneg %p161
        $region26: #{forward.3} parent=11 // pred_check_branch
          %423 = sbr.rel (%p421) target = $region28
        $region27: #{forward.3} parent=11 // pred_region
          _
        $region28: #{forward.3} parent=11 // pred_fallthru
          _
        // Predicated region
        $region29: #{forward.3} parent=11 // pred_check
          %p424 = pneg %p182
        $region30: #{forward.3} parent=11 // pred_check_branch
          %426 = sbr.rel (%p424) target = $region32
        $region31: #{forward.3} parent=11 // pred_region
          _
        $region32: #{forward.3} parent=11 // pred_fallthru
          _
        // Predicated region
        $region33: #{forward.3} parent=11 // pred_check
          %p427 = pneg %p203
        $region34: #{forward.3} parent=11 // pred_check_branch
          %429 = sbr.rel (%p427) target = $region36
        $region35: #{forward.3} parent=11 // pred_region
          _
        $region36: #{forward.3} parent=11 // pred_fallthru
          _
        // Predicated region
        $region37: #{forward.3} parent=11 // pred_check
          %p430 = pneg %p224
        $region38: #{forward.3} parent=11 // pred_check_branch
          %432 = sbr.rel (%p430) target = $region40
        $region39: #{forward.3} parent=11 // pred_region
          _
        $region40: #{forward.3} parent=11 // pred_fallthru
          _
        // Predicated region
        $region41: #{forward.3} parent=11 // pred_check
          %p433 = pneg %p245
        $region42: #{forward.3} parent=11 // pred_check_branch
          %435 = sbr.rel (%p433) target = $region44
        $region43: #{forward.3} parent=11 // pred_region
          _
        $region44: #{forward.3} parent=11 // pred_fallthru
          _
        // Predicated region
        $region45: #{forward.3} parent=11 // pred_check
          %p436 = pneg %p266
        $region46: #{forward.3} parent=11 // pred_check_branch
          %438 = sbr.rel (%p436) target = $region48
        $region47: #{forward.3} parent=11 // pred_region
          _
        $region48: #{forward.3} parent=11 // pred_fallthru
          _
        // Predicated region
        $region49: #{forward.3} parent=11 // pred_check
          %p439 = pneg %p287
        $region50: #{forward.3} parent=11 // pred_check_branch
          %441 = sbr.rel (%p439) target = $region52
        $region51: #{forward.3} parent=11 // pred_region
          _
        $region52: #{forward.3} parent=11 // pred_fallthru
          _
        // Predicated region
        $region53: #{forward.3} parent=11 // pred_check
          %p442 = pneg %p308
        $region54: #{forward.3} parent=11 // pred_check_branch
          %444 = sbr.rel (%p442) target = $region56
        $region55: #{forward.3} parent=11 // pred_region
          _
        $region56: #{forward.3} parent=11 // pred_fallthru
          _
        // Predicated region
        $region57: #{forward.3} parent=11 // pred_check
          %p445 = pneg %p329
        $region58: #{forward.3} parent=11 // pred_check_branch
          %447 = sbr.rel (%p445) target = $region60
        $region59: #{forward.3} parent=11 // pred_region
          _
        $region60: #{forward.3} parent=11 // pred_fallthru
          _
        // Predicated region
        $region61: #{forward.3} parent=11 // pred_check
          %p448 = pneg %p350
        $region62: #{forward.3} parent=11 // pred_check_branch
          %450 = sbr.rel (%p448) target = $region64
        $region63: #{forward.3} parent=11 // pred_region
          _
        $region64: #{forward.3} parent=11 // pred_fallthru
          _
        // Predicated region
        $region65: #{forward.3} parent=11 // pred_check
          %p451 = pneg %p371
        $region66: #{forward.3} parent=11 // pred_check_branch
          %453 = sbr.rel (%p451) target = $region68
        $region67: #{forward.3} parent=11 // pred_region
          _
        $region68: #{forward.3} parent=11 // pred_fallthru
          _
      $region12: #{forward.3} parent=5 // pred_fallthru
        _
      %p454 = scmp.lt.s32.totalorder %s25, 2
      // Predicated region
      $region69: #{forward.3} parent=5 // pred_check
        %p455 = pneg %p454
      $region70: #{forward.3} parent=5 // pred_check_branch
        %457 = sbr.rel (%p455) target = $region72
      $region71: #{forward.3} parent=5 // pred_region
        // Predicated region
        $region73: #{forward.3} parent=71 // pred_check
          %p458 = pneg %p45
        $region74: #{forward.3} parent=71 // pred_check_branch
          %460 = sbr.rel (%p458) target = $region76
        $region75: #{forward.3} parent=71 // pred_region
          %p461 = scmp.lt.s32.totalorder %s25, 1
          %s462 = scalar_select %p461, %s25, 1
          %s463 = smul.addr %s462, 8
          %s464 = scalar_lea.vmem %s0, %s463
        $region76: #{forward.3} parent=71 // pred_fallthru
          _
        // Predicated region
        $region77: #{forward.3} parent=71 // pred_check
          %p465 = pneg %p71
        $region78: #{forward.3} parent=71 // pred_check_branch
          %467 = sbr.rel (%p465) target = $region80
        $region79: #{forward.3} parent=71 // pred_region
          %p468 = scmp.lt.s32.totalorder %s25, 1
          %s469 = scalar_select %p468, %s25, 1
          %s470 = scalar_lea.vmem %s1, %s469
        $region80: #{forward.3} parent=71 // pred_fallthru
          _
      $region72: #{forward.3} parent=5 // pred_fallthru
        _
      %p471 = scmp.le.s32.totalorder 1, %s25
      %p472 = scmp.lt.s32.totalorder %s25, 3
      %p473 = pnand %p471, %p472
      %p474 = pneg %p473
      // Predicated region
      $region81: #{forward.3} parent=5 // pred_check
        _
      $region82: #{forward.3} parent=5 // pred_check_branch
        %476 = sbr.rel (%p473) target = $region84
      $region83: #{forward.3} parent=5 // pred_region
        %s477 = ssub.s32 %s25, 1
        %p478 = scmp.lt.s32.totalorder %s30, 1
        %s479 = scalar_select %p478, %s30, 1
        %s480 = smul.addr %s479, 8
        %s481 = scalar_lea.vmem %s0, %s480
        %p482 = pneg %p51
        %p483 = pneg %p48
        %p484 = scmp.lt.s32.totalorder %s30, 1
        %s485 = scalar_select %p484, %s30, 1
        %s486 = scalar_lea.vmem %s1, %s485
        %p487 = pneg %p77
        %p488 = pneg %p74
        %p489 = pneg %p98
        %p490 = pneg %p95
        %p491 = pneg %p119
        %p492 = pneg %p116
        %p493 = pneg %p140
        %p494 = pneg %p137
        %p495 = pneg %p161
        %p496 = pneg %p158
        %p497 = pneg %p182
        %p498 = pneg %p179
        %p499 = pneg %p203
        %p500 = pneg %p200
        %p501 = pneg %p224
        %p502 = pneg %p221
        %p503 = pneg %p245
        %p504 = pneg %p242
        %p505 = pneg %p266
        %p506 = pneg %p263
        %p507 = pneg %p287
        %p508 = pneg %p284
        %p509 = pneg %p308
        %p510 = pneg %p305
        %p511 = pneg %p329
        %p512 = pneg %p326
        %p513 = pneg %p350
        %p514 = pneg %p347
        %p515 = pneg %p371
        %p516 = pneg %p368
        %p517 = pneg %p397
        %p518 = pneg %p394
        %s519 = sand.u32 %s384, 1
        %s520 = scalar_lea.sflag [#allocation3], %s519
        %s521 = sand.u32 %s384, 1
        %s522 = smul.addr %s521, 8
        %s523 = scalar_lea.vmem [#allocation2], %s522
        %p524 = scmp.lt.s32.totalorder %s30, 1
        %s525 = scalar_select %p524, %s30, 1
        %s526 = smul.addr %s525, 8
        %s527 = scalar_lea.vmem %s0, %s526
        %p528 = scmp.lt.s32.totalorder %s30, 1
        %s529 = scalar_select %p528, %s30, 1
        %s530 = scalar_lea.vmem %s1, %s529
        %v532 = vld [vmem:[%s527] sm:$0xff]
        %v533 = vpack.c.bf16 %v532, %v532
        %v534 = vld [vmem:[%s4] sm:$0xf]
        %v535 = vld [vmem:[%s4 + $0x4] sm:$0xf]
        %v536 = vld [vmem:[%s4 + $0x8] sm:$0xf]
        %v537 = vld [vmem:[%s4 + $0xc] sm:$0xf]
        %v538 = vld [vmem:[%s5] sm:$0x1]
        %v540 = vlaneseq
        %v541 = vshrl.u32 %v540, 7
        %v542 = vsub.s32 0, %v541
        %v543 = vrot.slane %v538, %v542
        %v549 = vunpack.c.l.b16 %v534
        %v550 = vunpack.c.l.b16 %v535
        %v551 = vunpack.c.l.b16 %v536
        %v552 = vunpack.c.l.b16 %v537
        %v553 = vpack.c.b16 %v550, %v549
        %v554 = vpack.c.b16 %v552, %v551
        %vm557 = vcmask 261120
        %v559 = vsel %vm557, %v533, 0
        %561 = vmatprep.subr.bf16.mxu0 0
        %562 = vmatpush1.bf16.msra.mxu0 0
        %563 = vmatprep.subr.bf16.mxu0 0
        %564 = vmatpush1.bf16.msra.mxu0 0
        %565 = vmatprep.subr.bf16.mxu0 0
        %566 = vmatpush1.bf16.msra.mxu0 0
        %567 = vmatprep.subr.bf16.mxu0 0
        %568 = vmatpush1.bf16.msra.mxu0 0
        %569 = vmatprep.subr.bf16.mxu0 0
        %570 = vmatpush1.bf16.msra.mxu0 0
        %571 = vmatprep.subr.bf16.mxu0 0
        %572 = vmatpush1.bf16.msra.mxu0 0
        %573 = vmatprep.subr.bf16.mxu0 0
        %574 = vmatpush1.bf16.msra.mxu0 %v554
        %575 = vmatprep.subr.bf16.mxu0 0
        %576 = vmatpush1.bf16.msra.mxu0 %v553
        %577 = vmatprep.subr.bf16.mxu0 0
        %578 = vmatpush2.bf16.msra.mxu0 0
        %579 = vmatprep.subr.bf16.mxu0 0
        %580 = vmatpush2.bf16.msra.mxu0 0
        %581 = vmatprep.subr.bf16.mxu0 0
        %582 = vmatpush2.bf16.msra.mxu0 0
        %583 = vmatprep.subr.bf16.mxu0 0
        %584 = vmatpush2.bf16.msra.mxu0 0
        %585 = vmatprep.subr.bf16.mxu0 0
        %586 = vmatpush2.bf16.msra.mxu0 0
        %587 = vmatprep.subr.bf16.mxu0 0
        %588 = vmatpush2.bf16.msra.mxu0 0
        %589 = vmatprep.subr.bf16.mxu0 0
        %590 = vmatpush2.bf16.msra.mxu0 0
        %591 = vmatprep.subr.bf16.mxu0 0
        %592 = vmatpush2.bf16.msra.mxu0 0
        %593 = vmatprep.mubr.bf16.mxu0 0
        %594 = vmatmul.mubr.bf16.gmra.mxu0 %v559
        %v595 = vpop.f32.mrf.mxu0
        %v596 = vadd.f32 %v543, %v595
        %v597 = vpop.f32.mrf.mxu0
        %v598 = vpop.f32.mrf.mxu0
        %v599 = vpop.f32.mrf.mxu0
        %600 = vdwg.mxu0
        %v601 = vpack.c.bf16 %v596, %v596
        %v602 = vld [vmem:[%s530] sm:$0x1]
        %604 = vrot.lane.b32.xlu0 %v601, 96
        %v605 = vpop.permute.xlu0 %604
        %vm606 = vcmask 64512
        %v608 = vsel %vm606, %v601, 0
        %v611 = vsel %vm606, %v605, 0
        %613 = vmatprep.subr.bf16.mxu0 0
        %614 = vmatpush1.bf16.xpose.msra.mxu0 0
        %615 = vmatprep.subr.bf16.mxu0 0
        %616 = vmatpush1.bf16.xpose.msra.mxu0 0
        %617 = vmatprep.subr.bf16.mxu0 0
        %618 = vmatpush1.bf16.xpose.msra.mxu0 0
        %619 = vmatprep.subr.bf16.mxu0 0
        %620 = vmatpush1.bf16.xpose.msra.mxu0 0
        %621 = vmatprep.subr.bf16.mxu0 0
        %622 = vmatpush1.bf16.xpose.msra.mxu0 0
        %623 = vmatprep.subr.bf16.mxu0 0
        %624 = vmatpush1.bf16.xpose.msra.mxu0 0
        %625 = vmatprep.subr.bf16.mxu0 0
        %626 = vmatpush1.bf16.xpose.msra.mxu0 0
        %627 = vmatprep.subr.bf16.mxu0 0
        %628 = vmatpush1.bf16.xpose.msra.mxu0 %v611
        %629 = vmatprep.subr.bf16.mxu0 0
        %630 = vmatpush2.bf16.xpose.msra.mxu0 0
        %631 = vmatprep.subr.bf16.mxu0 0
        %632 = vmatpush2.bf16.xpose.msra.mxu0 0
        %633 = vmatprep.subr.bf16.mxu0 0
        %634 = vmatpush2.bf16.xpose.msra.mxu0 0
        %635 = vmatprep.subr.bf16.mxu0 0
        %636 = vmatpush2.bf16.xpose.msra.mxu0 0
        %637 = vmatprep.subr.bf16.mxu0 0
        %638 = vmatpush2.bf16.xpose.msra.mxu0 0
        %639 = vmatprep.subr.bf16.mxu0 0
        %640 = vmatpush2.bf16.xpose.msra.mxu0 0
        %641 = vmatprep.subr.bf16.mxu0 0
        %642 = vmatpush2.bf16.xpose.msra.mxu0 0
        %643 = vmatprep.subr.bf16.mxu0 0
        %644 = vmatpush2.bf16.xpose.msra.mxu0 0
        %645 = vmatprep.mubr.bf16.mxu0 0
        %646 = vmatmul.mubr.bf16.gmra.mxu0 %v608
        %v647 = vpop.f32.mrf.mxu0
        %v648 = vadd.f32 0.0, %v647
        %v649 = vpop.f32.mrf.mxu0
        %v650 = vpop.f32.mrf.mxu0
        %v651 = vpop.f32.mrf.mxu0
        %652 = vdwg.mxu0
        %v653 = vmul.f32 %v648, 0.35355338
        %vm654 = vcmp.eq.s32.totalorder %v602, 0
        %v655 = vsel %vm654, 1, 0
        %v656 = vlaneseq
        %v657 = vshrl.u32 %v656, 7
        %v658 = vsub.s32 0, %v657
        %v659 = vrot.slane %v655, %v658
        %vm660 = vcmp.eq.s32.totalorder %v659, 1
        %v661 = vsel %vm660, -1e+09, %v653
        %v662 = vsel %vm606, %v661, -inf
        %663 = vmax.xlane.f32.xlu0 %v662
        %v664 = vpop.xlane.xlu0 %663
        %v665 = vsub.f32 %v661, %v664
        %v666 = vmul.f32 %v665, 1.442695
        %v667 = vpow.pop %v666
        %v668 = vsel %vm606, %v667, 0.0
        %669 = vadd.xlane.f32.xlu0 %v668
        %v670 = vpop.xlane.xlu0 %669
        %v671 = vrcp.pop %v670
        %v672 = vmul.f32 %v667, %v671
        %v673 = vpack.c.bf16 %v672, %v672
        %674 = vrot.lane.b32.xlu0 %v601, 64
        %v675 = vpop.permute.xlu0 %674
        %v677 = vsel %vm606, %v673, 0
        %vm679 = vcmask 1043456
        %v681 = vsel %vm679, %v675, 0
        %683 = vmatprep.subr.bf16.mxu0 0
        %684 = vmatpush1.bf16.msra.mxu0 0
        %685 = vmatprep.subr.bf16.mxu0 0
        %686 = vmatpush1.bf16.msra.mxu0 0
        %687 = vmatprep.subr.bf16.mxu0 0
        %688 = vmatpush1.bf16.msra.mxu0 0
        %689 = vmatprep.subr.bf16.mxu0 0
        %690 = vmatpush1.bf16.msra.mxu0 0
        %691 = vmatprep.subr.bf16.mxu0 0
        %692 = vmatpush1.bf16.msra.mxu0 0
        %693 = vmatprep.subr.bf16.mxu0 0
        %694 = vmatpush1.bf16.msra.mxu0 0
        %695 = vmatprep.subr.bf16.mxu0 0
        %696 = vmatpush1.bf16.msra.mxu0 0
        %697 = vmatprep.subr.bf16.mxu0 0
        %698 = vmatpush1.bf16.msra.mxu0 %v681
        %699 = vmatprep.subr.bf16.mxu0 0
        %700 = vmatpush2.bf16.msra.mxu0 0
        %701 = vmatprep.subr.bf16.mxu0 0
        %702 = vmatpush2.bf16.msra.mxu0 0
        %703 = vmatprep.subr.bf16.mxu0 0
        %704 = vmatpush2.bf16.msra.mxu0 0
        %705 = vmatprep.subr.bf16.mxu0 0
        %706 = vmatpush2.bf16.msra.mxu0 0
        %707 = vmatprep.subr.bf16.mxu0 0
        %708 = vmatpush2.bf16.msra.mxu0 0
        %709 = vmatprep.subr.bf16.mxu0 0
        %710 = vmatpush2.bf16.msra.mxu0 0
        %711 = vmatprep.subr.bf16.mxu0 0
        %712 = vmatpush2.bf16.msra.mxu0 0
        %713 = vmatprep.subr.bf16.mxu0 0
        %714 = vmatpush2.bf16.msra.mxu0 0
        %715 = vmatprep.mubr.bf16.mxu0 0
        %716 = vmatmul.mubr.bf16.gmra.mxu0 %v677
        %v717 = vpop.f32.mrf.mxu0
        %v718 = vadd.f32 0.0, %v717
        %v719 = vpop.f32.mrf.mxu0
        %v720 = vpop.f32.mrf.mxu0
        %v721 = vpop.f32.mrf.mxu0
        %722 = vdwg.mxu0
        %723 = vrot.lane.b32.xlu0 %v601, 120
        %v724 = vpop.permute.xlu0 %723
        %725 = vrot.lane.b32.xlu0 %v601, 88
        %v726 = vpop.permute.xlu0 %725
        %v728 = vsel %vm606, %v724, 0
        %v731 = vsel %vm606, %v726, 0
        %733 = vmatprep.subr.bf16.mxu0 0
        %734 = vmatpush1.bf16.xpose.msra.mxu0 0
        %735 = vmatprep.subr.bf16.mxu0 0
        %736 = vmatpush1.bf16.xpose.msra.mxu0 0
        %737 = vmatprep.subr.bf16.mxu0 0
        %738 = vmatpush1.bf16.xpose.msra.mxu0 0
        %739 = vmatprep.subr.bf16.mxu0 0
        %740 = vmatpush1.bf16.xpose.msra.mxu0 0
        %741 = vmatprep.subr.bf16.mxu0 0
        %742 = vmatpush1.bf16.xpose.msra.mxu0 0
        %743 = vmatprep.subr.bf16.mxu0 0
        %744 = vmatpush1.bf16.xpose.msra.mxu0 0
        %745 = vmatprep.subr.bf16.mxu0 0
        %746 = vmatpush1.bf16.xpose.msra.mxu0 0
        %747 = vmatprep.subr.bf16.mxu0 0
        %748 = vmatpush1.bf16.xpose.msra.mxu0 %v731
        %749 = vmatprep.subr.bf16.mxu0 0
        %750 = vmatpush2.bf16.xpose.msra.mxu0 0
        %751 = vmatprep.subr.bf16.mxu0 0
        %752 = vmatpush2.bf16.xpose.msra.mxu0 0
        %753 = vmatprep.subr.bf16.mxu0 0
        %754 = vmatpush2.bf16.xpose.msra.mxu0 0
        %755 = vmatprep.subr.bf16.mxu0 0
        %756 = vmatpush2.bf16.xpose.msra.mxu0 0
        %757 = vmatprep.subr.bf16.mxu0 0
        %758 = vmatpush2.bf16.xpose.msra.mxu0 0
        %759 = vmatprep.subr.bf16.mxu0 0
        %760 = vmatpush2.bf16.xpose.msra.mxu0 0
        %761 = vmatprep.subr.bf16.mxu0 0
        %762 = vmatpush2.bf16.xpose.msra.mxu0 0
        %763 = vmatprep.subr.bf16.mxu0 0
        %764 = vmatpush2.bf16.xpose.msra.mxu0 0
        %765 = vmatprep.mubr.bf16.mxu0 0
        %766 = vmatmul.mubr.bf16.gmra.mxu0 %v728
        %v767 = vpop.f32.mrf.mxu0
        %v768 = vadd.f32 0.0, %v767
        %v769 = vpop.f32.mrf.mxu0
        %v770 = vpop.f32.mrf.mxu0
        %v771 = vpop.f32.mrf.mxu0
        %772 = vdwg.mxu0
        %v773 = vmul.f32 %v768, 0.35355338
        %v774 = vsel %vm660, -1e+09, %v773
        %v775 = vsel %vm606, %v774, -inf
        %776 = vmax.xlane.f32.xlu0 %v775
        %v777 = vpop.xlane.xlu0 %776
        %v778 = vsub.f32 %v774, %v777
        %v779 = vmul.f32 %v778, 1.442695
        %v780 = vpow.pop %v779
        %v781 = vsel %vm606, %v780, 0.0
        %782 = vadd.xlane.f32.xlu0 %v781
        %v783 = vpop.xlane.xlu0 %782
        %v784 = vrcp.pop %v783
        %v785 = vmul.f32 %v780, %v784
        %v786 = vpack.c.bf16 %v785, %v785
        %787 = vrot.lane.b32.xlu0 %v601, 56
        %v788 = vpop.permute.xlu0 %787
        %v790 = vsel %vm606, %v786, 0
        %v793 = vsel %vm679, %v788, 0
        %795 = vmatprep.subr.bf16.mxu0 0
        %796 = vmatpush1.bf16.msra.mxu0 0
        %797 = vmatprep.subr.bf16.mxu0 0
        %798 = vmatpush1.bf16.msra.mxu0 0
        %799 = vmatprep.subr.bf16.mxu0 0
        %800 = vmatpush1.bf16.msra.mxu0 0
        %801 = vmatprep.subr.bf16.mxu0 0
        %802 = vmatpush1.bf16.msra.mxu0 0
        %803 = vmatprep.subr.bf16.mxu0 0
        %804 = vmatpush1.bf16.msra.mxu0 0
        %805 = vmatprep.subr.bf16.mxu0 0
        %806 = vmatpush1.bf16.msra.mxu0 0
        %807 = vmatprep.subr.bf16.mxu0 0
        %808 = vmatpush1.bf16.msra.mxu0 0
        %809 = vmatprep.subr.bf16.mxu0 0
        %810 = vmatpush1.bf16.msra.mxu0 %v793
        %811 = vmatprep.subr.bf16.mxu0 0
        %812 = vmatpush2.bf16.msra.mxu0 0
        %813 = vmatprep.subr.bf16.mxu0 0
        %814 = vmatpush2.bf16.msra.mxu0 0
        %815 = vmatprep.subr.bf16.mxu0 0
        %816 = vmatpush2.bf16.msra.mxu0 0
        %817 = vmatprep.subr.bf16.mxu0 0
        %818 = vmatpush2.bf16.msra.mxu0 0
        %819 = vmatprep.subr.bf16.mxu0 0
        %820 = vmatpush2.bf16.msra.mxu0 0
        %821 = vmatprep.subr.bf16.mxu0 0
        %822 = vmatpush2.bf16.msra.mxu0 0
        %823 = vmatprep.subr.bf16.mxu0 0
        %824 = vmatpush2.bf16.msra.mxu0 0
        %825 = vmatprep.subr.bf16.mxu0 0
        %826 = vmatpush2.bf16.msra.mxu0 0
        %827 = vmatprep.mubr.bf16.mxu0 0
        %828 = vmatmul.mubr.bf16.gmra.mxu0 %v790
        %v829 = vpop.f32.mrf.mxu0
        %v830 = vadd.f32 0.0, %v829
        %v831 = vpop.f32.mrf.mxu0
        %v832 = vpop.f32.mrf.mxu0
        %v833 = vpop.f32.mrf.mxu0
        %834 = vdwg.mxu0
        %835 = vrot.lane.b32.xlu0 %v601, 112
        %v836 = vpop.permute.xlu0 %835
        %837 = vrot.lane.b32.xlu0 %v601, 80
        %v838 = vpop.permute.xlu0 %837
        %v840 = vsel %vm606, %v836, 0
        %v843 = vsel %vm606, %v838, 0
        %845 = vmatprep.subr.bf16.mxu0 0
        %846 = vmatpush1.bf16.xpose.msra.mxu0 0
        %847 = vmatprep.subr.bf16.mxu0 0
        %848 = vmatpush1.bf16.xpose.msra.mxu0 0
        %849 = vmatprep.subr.bf16.mxu0 0
        %850 = vmatpush1.bf16.xpose.msra.mxu0 0
        %851 = vmatprep.subr.bf16.mxu0 0
        %852 = vmatpush1.bf16.xpose.msra.mxu0 0
        %853 = vmatprep.subr.bf16.mxu0 0
        %854 = vmatpush1.bf16.xpose.msra.mxu0 0
        %855 = vmatprep.subr.bf16.mxu0 0
        %856 = vmatpush1.bf16.xpose.msra.mxu0 0
        %857 = vmatprep.subr.bf16.mxu0 0
        %858 = vmatpush1.bf16.xpose.msra.mxu0 0
        %859 = vmatprep.subr.bf16.mxu0 0
        %860 = vmatpush1.bf16.xpose.msra.mxu0 %v843
        %861 = vmatprep.subr.bf16.mxu0 0
        %862 = vmatpush2.bf16.xpose.msra.mxu0 0
        %863 = vmatprep.subr.bf16.mxu0 0
        %864 = vmatpush2.bf16.xpose.msra.mxu0 0
        %865 = vmatprep.subr.bf16.mxu0 0
        %866 = vmatpush2.bf16.xpose.msra.mxu0 0
        %867 = vmatprep.subr.bf16.mxu0 0
        %868 = vmatpush2.bf16.xpose.msra.mxu0 0
        %869 = vmatprep.subr.bf16.mxu0 0
        %870 = vmatpush2.bf16.xpose.msra.mxu0 0
        %871 = vmatprep.subr.bf16.mxu0 0
        %872 = vmatpush2.bf16.xpose.msra.mxu0 0
        %873 = vmatprep.subr.bf16.mxu0 0
        %874 = vmatpush2.bf16.xpose.msra.mxu0 0
        %875 = vmatprep.subr.bf16.mxu0 0
        %876 = vmatpush2.bf16.xpose.msra.mxu0 0
        %877 = vmatprep.mubr.bf16.mxu0 0
        %878 = vmatmul.mubr.bf16.gmra.mxu0 %v840
        %v879 = vpop.f32.mrf.mxu0
        %v880 = vadd.f32 0.0, %v879
        %v881 = vpop.f32.mrf.mxu0
        %v882 = vpop.f32.mrf.mxu0
        %v883 = vpop.f32.mrf.mxu0
        %884 = vdwg.mxu0
        %v885 = vmul.f32 %v880, 0.35355338
        %v886 = vsel %vm660, -1e+09, %v885
        %v887 = vsel %vm606, %v886, -inf
        %888 = vmax.xlane.f32.xlu0 %v887
        %v889 = vpop.xlane.xlu0 %888
        %v890 = vsub.f32 %v886, %v889
        %v891 = vmul.f32 %v890, 1.442695
        %v892 = vpow.pop %v891
        %v893 = vsel %vm606, %v892, 0.0
        %894 = vadd.xlane.f32.xlu0 %v893
        %v895 = vpop.xlane.xlu0 %894
        %v896 = vrcp.pop %v895
        %v897 = vmul.f32 %v892, %v896
        %v898 = vpack.c.bf16 %v897, %v897
        %899 = vrot.lane.b32.xlu0 %v601, 48
        %v900 = vpop.permute.xlu0 %899
        %v902 = vsel %vm606, %v898, 0
        %v905 = vsel %vm679, %v900, 0
        %907 = vmatprep.subr.bf16.mxu0 0
        %908 = vmatpush1.bf16.msra.mxu0 0
        %909 = vmatprep.subr.bf16.mxu0 0
        %910 = vmatpush1.bf16.msra.mxu0 0
        %911 = vmatprep.subr.bf16.mxu0 0
        %912 = vmatpush1.bf16.msra.mxu0 0
        %913 = vmatprep.subr.bf16.mxu0 0
        %914 = vmatpush1.bf16.msra.mxu0 0
        %915 = vmatprep.subr.bf16.mxu0 0
        %916 = vmatpush1.bf16.msra.mxu0 0
        %917 = vmatprep.subr.bf16.mxu0 0
        %918 = vmatpush1.bf16.msra.mxu0 0
        %919 = vmatprep.subr.bf16.mxu0 0
        %920 = vmatpush1.bf16.msra.mxu0 0
        %921 = vmatprep.subr.bf16.mxu0 0
        %922 = vmatpush1.bf16.msra.mxu0 %v905
        %923 = vmatprep.subr.bf16.mxu0 0
        %924 = vmatpush2.bf16.msra.mxu0 0
        %925 = vmatprep.subr.bf16.mxu0 0
        %926 = vmatpush2.bf16.msra.mxu0 0
        %927 = vmatprep.subr.bf16.mxu0 0
        %928 = vmatpush2.bf16.msra.mxu0 0
        %929 = vmatprep.subr.bf16.mxu0 0
        %930 = vmatpush2.bf16.msra.mxu0 0
        %931 = vmatprep.subr.bf16.mxu0 0
        %932 = vmatpush2.bf16.msra.mxu0 0
        %933 = vmatprep.subr.bf16.mxu0 0
        %934 = vmatpush2.bf16.msra.mxu0 0
        %935 = vmatprep.subr.bf16.mxu0 0
        %936 = vmatpush2.bf16.msra.mxu0 0
        %937 = vmatprep.subr.bf16.mxu0 0
        %938 = vmatpush2.bf16.msra.mxu0 0
        %939 = vmatprep.mubr.bf16.mxu0 0
        %940 = vmatmul.mubr.bf16.gmra.mxu0 %v902
        %v941 = vpop.f32.mrf.mxu0
        %v942 = vadd.f32 0.0, %v941
        %v943 = vpop.f32.mrf.mxu0
        %v944 = vpop.f32.mrf.mxu0
        %v945 = vpop.f32.mrf.mxu0
        %946 = vdwg.mxu0
        %947 = vrot.lane.b32.xlu0 %v601, 104
        %v948 = vpop.permute.xlu0 %947
        %949 = vrot.lane.b32.xlu0 %v601, 72
        %v950 = vpop.permute.xlu0 %949
        %v952 = vsel %vm606, %v948, 0
        %v955 = vsel %vm606, %v950, 0
        %957 = vmatprep.subr.bf16.mxu0 0
        %958 = vmatpush1.bf16.xpose.msra.mxu0 0
        %959 = vmatprep.subr.bf16.mxu0 0
        %960 = vmatpush1.bf16.xpose.msra.mxu0 0
        %961 = vmatprep.subr.bf16.mxu0 0
        %962 = vmatpush1.bf16.xpose.msra.mxu0 0
        %963 = vmatprep.subr.bf16.mxu0 0
        %964 = vmatpush1.bf16.xpose.msra.mxu0 0
        %965 = vmatprep.subr.bf16.mxu0 0
        %966 = vmatpush1.bf16.xpose.msra.mxu0 0
        %967 = vmatprep.subr.bf16.mxu0 0
        %968 = vmatpush1.bf16.xpose.msra.mxu0 0
        %969 = vmatprep.subr.bf16.mxu0 0
        %970 = vmatpush1.bf16.xpose.msra.mxu0 0
        %971 = vmatprep.subr.bf16.mxu0 0
        %972 = vmatpush1.bf16.xpose.msra.mxu0 %v955
        %973 = vmatprep.subr.bf16.mxu0 0
        %974 = vmatpush2.bf16.xpose.msra.mxu0 0
        %975 = vmatprep.subr.bf16.mxu0 0
        %976 = vmatpush2.bf16.xpose.msra.mxu0 0
        %977 = vmatprep.subr.bf16.mxu0 0
        %978 = vmatpush2.bf16.xpose.msra.mxu0 0
        %979 = vmatprep.subr.bf16.mxu0 0
        %980 = vmatpush2.bf16.xpose.msra.mxu0 0
        %981 = vmatprep.subr.bf16.mxu0 0
        %982 = vmatpush2.bf16.xpose.msra.mxu0 0
        %983 = vmatprep.subr.bf16.mxu0 0
        %984 = vmatpush2.bf16.xpose.msra.mxu0 0
        %985 = vmatprep.subr.bf16.mxu0 0
        %986 = vmatpush2.bf16.xpose.msra.mxu0 0
        %987 = vmatprep.subr.bf16.mxu0 0
        %988 = vmatpush2.bf16.xpose.msra.mxu0 0
        %989 = vmatprep.mubr.bf16.mxu0 0
        %990 = vmatmul.mubr.bf16.gmra.mxu0 %v952
        %v991 = vpop.f32.mrf.mxu0
        %v992 = vadd.f32 0.0, %v991
        %v993 = vpop.f32.mrf.mxu0
        %v994 = vpop.f32.mrf.mxu0
        %v995 = vpop.f32.mrf.mxu0
        %996 = vdwg.mxu0
        %v997 = vmul.f32 %v992, 0.35355338
        %v998 = vsel %vm660, -1e+09, %v997
        %v999 = vsel %vm606, %v998, -inf
        %1000 = vmax.xlane.f32.xlu0 %v999
        %v1001 = vpop.xlane.xlu0 %1000
        %v1002 = vsub.f32 %v998, %v1001
        %v1003 = vmul.f32 %v1002, 1.442695
        %v1004 = vpow.pop %v1003
        %v1005 = vsel %vm606, %v1004, 0.0
        %1006 = vadd.xlane.f32.xlu0 %v1005
        %v1007 = vpop.xlane.xlu0 %1006
        %v1008 = vrcp.pop %v1007
        %v1009 = vmul.f32 %v1004, %v1008
        %v1010 = vpack.c.bf16 %v1009, %v1009
        %1011 = vrot.lane.b32.xlu0 %v601, 40
        %v1012 = vpop.permute.xlu0 %1011
        %v1014 = vsel %vm606, %v1010, 0
        %v1017 = vsel %vm679, %v1012, 0
        %1019 = vmatprep.subr.bf16.mxu0 0
        %1020 = vmatpush1.bf16.msra.mxu0 0
        %1021 = vmatprep.subr.bf16.mxu0 0
        %1022 = vmatpush1.bf16.msra.mxu0 0
        %1023 = vmatprep.subr.bf16.mxu0 0
        %1024 = vmatpush1.bf16.msra.mxu0 0
        %1025 = vmatprep.subr.bf16.mxu0 0
        %1026 = vmatpush1.bf16.msra.mxu0 0
        %1027 = vmatprep.subr.bf16.mxu0 0
        %1028 = vmatpush1.bf16.msra.mxu0 0
        %1029 = vmatprep.subr.bf16.mxu0 0
        %1030 = vmatpush1.bf16.msra.mxu0 0
        %1031 = vmatprep.subr.bf16.mxu0 0
        %1032 = vmatpush1.bf16.msra.mxu0 0
        %1033 = vmatprep.subr.bf16.mxu0 0
        %1034 = vmatpush1.bf16.msra.mxu0 %v1017
        %1035 = vmatprep.subr.bf16.mxu0 0
        %1036 = vmatpush2.bf16.msra.mxu0 0
        %1037 = vmatprep.subr.bf16.mxu0 0
        %1038 = vmatpush2.bf16.msra.mxu0 0
        %1039 = vmatprep.subr.bf16.mxu0 0
        %1040 = vmatpush2.bf16.msra.mxu0 0
        %1041 = vmatprep.subr.bf16.mxu0 0
        %1042 = vmatpush2.bf16.msra.mxu0 0
        %1043 = vmatprep.subr.bf16.mxu0 0
        %1044 = vmatpush2.bf16.msra.mxu0 0
        %1045 = vmatprep.subr.bf16.mxu0 0
        %1046 = vmatpush2.bf16.msra.mxu0 0
        %1047 = vmatprep.subr.bf16.mxu0 0
        %1048 = vmatpush2.bf16.msra.mxu0 0
        %1049 = vmatprep.subr.bf16.mxu0 0
        %1050 = vmatpush2.bf16.msra.mxu0 0
        %1051 = vmatprep.mubr.bf16.mxu0 0
        %1052 = vmatmul.mubr.bf16.gmra.mxu0 %v1014
        %v1053 = vpop.f32.mrf.mxu0
        %v1054 = vadd.f32 0.0, %v1053
        %v1055 = vpop.f32.mrf.mxu0
        %v1056 = vpop.f32.mrf.mxu0
        %v1057 = vpop.f32.mrf.mxu0
        %1058 = vdwg.mxu0
        %1060 = vrot.lane.b32.xlu0 %v830, 8
        %v1061 = vpop.permute.xlu0 %1060
        %1064 = vrot.lane.b32.xlu0 %v942, 16
        %v1065 = vpop.permute.xlu0 %1064
        %1068 = vrot.lane.b32.xlu0 %v1054, 24
        %v1069 = vpop.permute.xlu0 %1068
        %v1071 = vsel %vm606, %v718, %v1061
        %vm1072 = vcmask 130048
        %v1073 = vsel %vm1072, %v1071, %v1065
        %vm1074 = vcmask 195584
        %v1075 = vsel %vm1074, %v1073, %v1069
        %v1076 = vpack.c.bf16 %v1075, %v1075
        %v1077 = vld [vmem:[%s6] sm:$0xf]
        %v1078 = vld [vmem:[%s6 + $0x4] sm:$0xf]
        %v1079 = vld [vmem:[%s6 + $0x8] sm:$0xf]
        %v1080 = vld [vmem:[%s6 + $0xc] sm:$0xf]
        %v1081 = vld [vmem:[%s7] sm:$0x1]
        %v1083 = vlaneseq
        %v1084 = vshrl.u32 %v1083, 7
        %v1085 = vsub.s32 0, %v1084
        %v1086 = vrot.slane %v1081, %v1085
        %v1092 = vunpack.c.l.b16 %v1077
        %v1093 = vunpack.c.l.b16 %v1078
        %v1094 = vunpack.c.l.b16 %v1079
        %v1095 = vunpack.c.l.b16 %v1080
        %v1096 = vpack.c.b16 %v1093, %v1092
        %v1097 = vpack.c.b16 %v1095, %v1094
        %v1101 = vsel %vm557, %v1076, 0
        %1103 = vmatprep.subr.bf16.mxu0 0
        %1104 = vmatpush1.bf16.msra.mxu0 0
        %1105 = vmatprep.subr.bf16.mxu0 0
        %1106 = vmatpush1.bf16.msra.mxu0 0
        %1107 = vmatprep.subr.bf16.mxu0 0
        %1108 = vmatpush1.bf16.msra.mxu0 0
        %1109 = vmatprep.subr.bf16.mxu0 0
        %1110 = vmatpush1.bf16.msra.mxu0 0
        %1111 = vmatprep.subr.bf16.mxu0 0
        %1112 = vmatpush1.bf16.msra.mxu0 0
        %1113 = vmatprep.subr.bf16.mxu0 0
        %1114 = vmatpush1.bf16.msra.mxu0 0
        %1115 = vmatprep.subr.bf16.mxu0 0
        %1116 = vmatpush1.bf16.msra.mxu0 %v1097
        %1117 = vmatprep.subr.bf16.mxu0 0
        %1118 = vmatpush1.bf16.msra.mxu0 %v1096
        %1119 = vmatprep.subr.bf16.mxu0 0
        %1120 = vmatpush2.bf16.msra.mxu0 0
        %1121 = vmatprep.subr.bf16.mxu0 0
        %1122 = vmatpush2.bf16.msra.mxu0 0
        %1123 = vmatprep.subr.bf16.mxu0 0
        %1124 = vmatpush2.bf16.msra.mxu0 0
        %1125 = vmatprep.subr.bf16.mxu0 0
        %1126 = vmatpush2.bf16.msra.mxu0 0
        %1127 = vmatprep.subr.bf16.mxu0 0
        %1128 = vmatpush2.bf16.msra.mxu0 0
        %1129 = vmatprep.subr.bf16.mxu0 0
        %1130 = vmatpush2.bf16.msra.mxu0 0
        %1131 = vmatprep.subr.bf16.mxu0 0
        %1132 = vmatpush2.bf16.msra.mxu0 0
        %1133 = vmatprep.subr.bf16.mxu0 0
        %1134 = vmatpush2.bf16.msra.mxu0 0
        %1135 = vmatprep.mubr.bf16.mxu0 0
        %1136 = vmatmul.mubr.bf16.gmra.mxu0 %v1101
        %v1137 = vpop.f32.mrf.mxu0
        %v1138 = vadd.f32 %v1086, %v1137
        %v1139 = vpop.f32.mrf.mxu0
        %v1140 = vpop.f32.mrf.mxu0
        %v1141 = vpop.f32.mrf.mxu0
        %1142 = vdwg.mxu0
        %v1143 = vadd.f32 %v532, %v1138
        %v1144 = vld [vmem:[%s8] sm:$0x1]
        %v1145 = vld [vmem:[%s9] sm:$0x1]
        %v1146 = vsel %vm557, %v1143, 0.0
        %1147 = vadd.xlane.f32.xlu0 %v1146
        %v1148 = vpop.xlane.xlu0 %1147
        %v1149 = vrcp.pop 32.0
        %v1150 = vmul.f32 %v1148, %v1149
        %v1151 = vsub.f32 %v1143, %v1150
        %v1152 = vmul.f32 %v1151, %v1151
        %v1153 = vsel %vm557, %v1152, 0.0
        %1154 = vadd.xlane.f32.xlu0 %v1153
        %v1155 = vpop.xlane.xlu0 %1154
        %v1156 = vmul.f32 %v1155, %v1149
        %v1157 = vadd.f32 %v1156, 1e-05
        %v1158 = vrsqrt.pop %v1157
        %v1159 = vmul.f32 %v1151, %v1158
        %v1161 = vlaneseq
        %v1162 = vshrl.u32 %v1161, 7
        %v1163 = vsub.s32 0, %v1162
        %v1164 = vrot.slane %v1144, %v1163
        %v1166 = vmul.f32 %v1159, %v1164
        %v1168 = vlaneseq
        %v1169 = vshrl.u32 %v1168, 7
        %v1170 = vsub.s32 0, %v1169
        %v1171 = vrot.slane %v1145, %v1170
        %v1173 = vadd.f32 %v1166, %v1171
        %v1174 = vpack.c.bf16 %v1173, %v1173
        %v1175 = vld [vmem:[%s10] sm:$0xf]
        %v1176 = vld [vmem:[%s10 + $0x4] sm:$0xf]
        %v1177 = vld [vmem:[%s10 + $0x8] sm:$0xf]
        %v1178 = vld [vmem:[%s10 + $0xc] sm:$0xf]
        %v1179 = vld [vmem:[%s11] sm:$0x1]
        %v1181 = vlaneseq
        %v1182 = vshrl.u32 %v1181, 7
        %v1183 = vsub.s32 0, %v1182
        %v1184 = vrot.slane %v1179, %v1183
        %v1190 = vunpack.c.l.b16 %v1175
        %v1191 = vunpack.c.l.b16 %v1176
        %v1192 = vunpack.c.l.b16 %v1177
        %v1193 = vunpack.c.l.b16 %v1178
        %v1194 = vpack.c.b16 %v1191, %v1190
        %v1195 = vpack.c.b16 %v1193, %v1192
        %v1199 = vsel %vm557, %v1174, 0
        %1201 = vmatprep.subr.bf16.mxu0 0
        %1202 = vmatpush1.bf16.msra.mxu0 0
        %1203 = vmatprep.subr.bf16.mxu0 0
        %1204 = vmatpush1.bf16.msra.mxu0 0
        %1205 = vmatprep.subr.bf16.mxu0 0
        %1206 = vmatpush1.bf16.msra.mxu0 0
        %1207 = vmatprep.subr.bf16.mxu0 0
        %1208 = vmatpush1.bf16.msra.mxu0 0
        %1209 = vmatprep.subr.bf16.mxu0 0
        %1210 = vmatpush1.bf16.msra.mxu0 0
        %1211 = vmatprep.subr.bf16.mxu0 0
        %1212 = vmatpush1.bf16.msra.mxu0 0
        %1213 = vmatprep.subr.bf16.mxu0 0
        %1214 = vmatpush1.bf16.msra.mxu0 %v1195
        %1215 = vmatprep.subr.bf16.mxu0 0
        %1216 = vmatpush1.bf16.msra.mxu0 %v1194
        %1217 = vmatprep.subr.bf16.mxu0 0
        %1218 = vmatpush2.bf16.msra.mxu0 0
        %1219 = vmatprep.subr.bf16.mxu0 0
        %1220 = vmatpush2.bf16.msra.mxu0 0
        %1221 = vmatprep.subr.bf16.mxu0 0
        %1222 = vmatpush2.bf16.msra.mxu0 0
        %1223 = vmatprep.subr.bf16.mxu0 0
        %1224 = vmatpush2.bf16.msra.mxu0 0
        %1225 = vmatprep.subr.bf16.mxu0 0
        %1226 = vmatpush2.bf16.msra.mxu0 0
        %1227 = vmatprep.subr.bf16.mxu0 0
        %1228 = vmatpush2.bf16.msra.mxu0 0
        %1229 = vmatprep.subr.bf16.mxu0 0
        %1230 = vmatpush2.bf16.msra.mxu0 0
        %1231 = vmatprep.subr.bf16.mxu0 0
        %1232 = vmatpush2.bf16.msra.mxu0 0
        %1233 = vmatprep.mubr.bf16.mxu0 0
        %1234 = vmatmul.mubr.bf16.gmra.mxu0 %v1199
        %v1235 = vpop.f32.mrf.mxu0
        %v1236 = vadd.f32 %v1184, %v1235
        %v1237 = vpop.f32.mrf.mxu0
        %v1238 = vpop.f32.mrf.mxu0
        %v1239 = vpop.f32.mrf.mxu0
        %1240 = vdwg.mxu0
        %v1241 = vmul.f32 %v1236, 0.5
        %v1242 = vmul.f32 %v1236, 0.70710677
        %v1243 = verf.f32.pop %v1242
        %v1244 = vadd.f32 %v1243, 1.0
        %v1245 = vmul.f32 %v1241, %v1244
        %v1246 = vpack.c.bf16 %v1245, %v1245
        %v1247 = vld [vmem:[%s12] sm:$0xf]
        %v1248 = vld [vmem:[%s12 + $0x4] sm:$0xf]
        %v1249 = vld [vmem:[%s12 + $0x8] sm:$0xf]
        %v1250 = vld [vmem:[%s12 + $0xc] sm:$0xf]
        %v1251 = vld [vmem:[%s12 + $0x10] sm:$0xf]
        %v1252 = vld [vmem:[%s12 + $0x14] sm:$0xf]
        %v1253 = vld [vmem:[%s12 + $0x18] sm:$0xf]
        %v1254 = vld [vmem:[%s12 + $0x1c] sm:$0xf]
        %v1255 = vld [vmem:[%s13] sm:$0x1]
        %v1257 = vlaneseq
        %v1258 = vshrl.u32 %v1257, 7
        %v1259 = vsub.s32 0, %v1258
        %v1260 = vrot.slane %v1255, %v1259
        %v1270 = vunpack.c.l.b16 %v1247
        %v1271 = vunpack.c.l.b16 %v1248
        %v1272 = vunpack.c.l.b16 %v1249
        %v1273 = vunpack.c.l.b16 %v1250
        %v1274 = vunpack.c.l.b16 %v1251
        %v1275 = vunpack.c.l.b16 %v1252
        %v1276 = vunpack.c.l.b16 %v1253
        %v1277 = vunpack.c.l.b16 %v1254
        %v1278 = vpack.c.b16 %v1271, %v1270
        %v1279 = vpack.c.b16 %v1273, %v1272
        %v1280 = vpack.c.b16 %v1275, %v1274
        %v1281 = vpack.c.b16 %v1277, %v1276
        %vm1286 = vcmask 523264
        %v1288 = vsel %vm1286, %v1246, 0
        %1290 = vmatprep.subr.bf16.mxu0 0
        %1291 = vmatpush1.bf16.msra.mxu0 0
        %1292 = vmatprep.subr.bf16.mxu0 0
        %1293 = vmatpush1.bf16.msra.mxu0 0
        %1294 = vmatprep.subr.bf16.mxu0 0
        %1295 = vmatpush1.bf16.msra.mxu0 0
        %1296 = vmatprep.subr.bf16.mxu0 0
        %1297 = vmatpush1.bf16.msra.mxu0 0
        %1298 = vmatprep.subr.bf16.mxu0 0
        %1299 = vmatpush1.bf16.msra.mxu0 %v1281
        %1300 = vmatprep.subr.bf16.mxu0 0
        %1301 = vmatpush1.bf16.msra.mxu0 %v1280
        %1302 = vmatprep.subr.bf16.mxu0 0
        %1303 = vmatpush1.bf16.msra.mxu0 %v1279
        %1304 = vmatprep.subr.bf16.mxu0 0
        %1305 = vmatpush1.bf16.msra.mxu0 %v1278
        %1306 = vmatprep.subr.bf16.mxu0 0
        %1307 = vmatpush2.bf16.msra.mxu0 0
        %1308 = vmatprep.subr.bf16.mxu0 0
        %1309 = vmatpush2.bf16.msra.mxu0 0
        %1310 = vmatprep.subr.bf16.mxu0 0
        %1311 = vmatpush2.bf16.msra.mxu0 0
        %1312 = vmatprep.subr.bf16.mxu0 0
        %1313 = vmatpush2.bf16.msra.mxu0 0
        %1314 = vmatprep.subr.bf16.mxu0 0
        %1315 = vmatpush2.bf16.msra.mxu0 0
        %1316 = vmatprep.subr.bf16.mxu0 0
        %1317 = vmatpush2.bf16.msra.mxu0 0
        %1318 = vmatprep.subr.bf16.mxu0 0
        %1319 = vmatpush2.bf16.msra.mxu0 0
        %1320 = vmatprep.subr.bf16.mxu0 0
        %1321 = vmatpush2.bf16.msra.mxu0 0
        %1322 = vmatprep.mubr.bf16.mxu0 0
        %1323 = vmatmul.mubr.bf16.gmra.mxu0 %v1288
        %v1324 = vpop.f32.mrf.mxu0
        %v1325 = vadd.f32 %v1260, %v1324
        %v1326 = vpop.f32.mrf.mxu0
        %v1327 = vpop.f32.mrf.mxu0
        %v1328 = vpop.f32.mrf.mxu0
        %1329 = vdwg.mxu0
        %v1330 = vadd.f32 %v1173, %v1325
        %v1331 = vld [vmem:[%s14] sm:$0x1]
        %v1332 = vld [vmem:[%s15] sm:$0x1]
        %v1333 = vsel %vm557, %v1330, 0.0
        %1334 = vadd.xlane.f32.xlu0 %v1333
        %v1335 = vpop.xlane.xlu0 %1334
        %v1336 = vmul.f32 %v1335, %v1149
        %v1337 = vsub.f32 %v1330, %v1336
        %v1338 = vmul.f32 %v1337, %v1337
        %v1339 = vsel %vm557, %v1338, 0.0
        %1340 = vadd.xlane.f32.xlu0 %v1339
        %v1341 = vpop.xlane.xlu0 %1340
        %v1342 = vmul.f32 %v1341, %v1149
        %v1343 = vadd.f32 %v1342, 1e-05
        %v1344 = vrsqrt.pop %v1343
        %v1345 = vmul.f32 %v1337, %v1344
        %v1347 = vlaneseq
        %v1348 = vshrl.u32 %v1347, 7
        %v1349 = vsub.s32 0, %v1348
        %v1350 = vrot.slane %v1331, %v1349
        %v1352 = vmul.f32 %v1345, %v1350
        %v1354 = vlaneseq
        %v1355 = vshrl.u32 %v1354, 7
        %v1356 = vsub.s32 0, %v1355
        %v1357 = vrot.slane %v1332, %v1356
        %v1359 = vadd.f32 %v1352, %v1357
        %1360 = vst.msk [vmem:[%s523] sm:$0xff] %vm557, %v1359
        %s1361 = sand.u32 %s384, 1
        %s1362 = scalar_lea.sflag [#allocation3], %s1361
        %s1363 = sand.u32 %s384, 1
        %s1364 = smul.addr %s1363, 8
        %s1365 = scalar_lea.vmem [#allocation2], %s1364
        // Predicated region
        $region85: #{forward.3} parent=83 // pred_check
          %p1366 = pneg %p394
        $region86: #{forward.3} parent=83 // pred_check_branch
          %1368 = sbr.rel (%p1366) target = $region88
        $region87: #{forward.3} parent=83 // pred_region
          %s1370 = ssub.s32 128, 128
          %1371 = vsyncadd %s1362, %s1370
          %s1372 = smul.addr %s30, 128
          %s1373 = scalar_lea.hbm %s16, %s1372
          %s1375 = sshll.u32 %s1365, 4
          %s1376 = int_to_ptr.vmem [resolvable:$true] %s1375
          %1378 = dma.vmem_to_hbm [thread:$0]  %s1376, 128, %s1373, %s1362
        $region88: #{forward.3} parent=83 // pred_fallthru
          _
      $region84: #{forward.3} parent=5 // pred_fallthru
        _
      %p1379 = scmp.le.s32.totalorder 2, %s25
      // Predicated region
      $region89: #{forward.3} parent=5 // pred_check
        %p1380 = pneg %p1379
      $region90: #{forward.3} parent=5 // pred_check_branch
        %1382 = sbr.rel (%p1380) target = $region92
      $region91: #{forward.3} parent=5 // pred_region
        %s1383 = ssub.s32 %s25, 2
        // Predicated region
        $region93: #{forward.3} parent=91 // pred_check
          %p1384 = pneg %p400
        $region94: #{forward.3} parent=91 // pred_check_branch
          %1386 = sbr.rel (%p1384) target = $region96
        $region95: #{forward.3} parent=91 // pred_region
          %s1387 = sand.u32 %s385, 1
          %s1388 = scalar_lea.sflag [#allocation3], %s1387
          %s1389 = sand.u32 %s385, 1
          %s1390 = smul.addr %s1389, 8
          %s1391 = scalar_lea.vmem [#allocation2], %s1390
          %1392 = dma.done %s1388, 128
        $region96: #{forward.3} parent=91 // pred_fallthru
          _
      $region92: #{forward.3} parent=5 // pred_fallthru
        _
    $region6: #{forward.3} parent=1 // loop_footer
      %s29 = sadd.s32 1, %s25
    $region7: #{forward.3} parent=1 // loop_footer_branch
      %24 = sbr.rel target = $region3
    $region8: #{forward.3} parent=1 // loop_exit
      _
    %1393 = vsyncpa [#allocation3], 1
    %s1394 = scalar_lea.sflag [#allocation3], 1
    %1395 = vsyncpa %s1394, 1

// kernel: forward.2
$region0: #{forward.2}
  #allocation0 [shape = 'u32[]', space=smem, size = 0x4, offset = 0x4, fixed_abs, tag = 'smem constant byte address 0x4 - core index']
  #allocation1 [shape = 'u32[144,128]{1,0:T(1,128)}', space=vmem, size = 0x12000, scoped, tag = 'internal scratch']
  %s0 = inlined_call_operand.vmem [shape: f32[2,8,32], index: 0, kind: input, shape index: {}]
  %s1 = inlined_call_operand.vmem [shape: s32[2,1,8], index: 1, kind: input, shape index: {}]
  %s2 = inlined_call_operand.vmem [shape: f32[1,32], index: 2, kind: input, shape index: {}]
  %s3 = inlined_call_operand.vmem [shape: f32[1,32], index: 3, kind: input, shape index: {}]
  %s4 = inlined_call_operand.vmem [shape: bf16[32,96], index: 4, kind: input, shape index: {}]
  %s5 = inlined_call_operand.vmem [shape: f32[1,96], index: 5, kind: input, shape index: {}]
  %s6 = inlined_call_operand.vmem [shape: bf16[32,32], index: 6, kind: input, shape index: {}]
  %s7 = inlined_call_operand.vmem [shape: f32[1,32], index: 7, kind: input, shape index: {}]
  %s8 = inlined_call_operand.vmem [shape: f32[1,32], index: 8, kind: input, shape index: {}]
  %s9 = inlined_call_operand.vmem [shape: f32[1,32], index: 9, kind: input, shape index: {}]
  %s10 = inlined_call_operand.vmem [shape: bf16[32,64], index: 10, kind: input, shape index: {}]
  %s11 = inlined_call_operand.vmem [shape: f32[1,64], index: 11, kind: input, shape index: {}]
  %s12 = inlined_call_operand.vmem [shape: bf16[64,32], index: 12, kind: input, shape index: {}]
  %s13 = inlined_call_operand.vmem [shape: f32[1,32], index: 13, kind: input, shape index: {}]
  %s14 = inlined_call_operand.vmem [shape: f32[1,32], index: 14, kind: input, shape index: {}]
  %s15 = inlined_call_operand.vmem [shape: f32[1,32], index: 15, kind: input, shape index: {}]
  %s16 = inlined_call_operand.vmem [shape: f32[2,8,32], index: 16, kind: output, shape index: {}]
  %s17 = sld [smem:[#allocation0]]
  $region97: #{forward.2} parent=0
    _
  %s19 = ssub.s32 1, %s17
  %s20 = scalar_select 0, %s19, %s17
  loop: start=0, step=1, limit=4
  $region2: #{forward.2} parent=0 // loop_pre_header
    _
  $region3: #{forward.2} parent=0 // loop_header
    %s22 = sphi 0, %s26
    %p23 = scmp.ge.s32.totalorder %s22, 4
    %s32 = sphi 0, %s34
    %s35 = sphi 0, %s32
    %s36 = sphi 0, %s35
    %s52 = sphi 0, %s36
    %s58 = sphi 0, %s60
    %s61 = sphi 0, %s58
    %s62 = sphi 0, %s61
    %s78 = sphi 0, %s62
    %s82 = sphi 0, %s82
    %s84 = sphi 0, %s82
    %s85 = sphi 0, %s84
    %s99 = sphi 0, %s85
    %s103 = sphi 0, %s103
    %s105 = sphi 0, %s103
    %s106 = sphi 0, %s105
    %s120 = sphi 0, %s106
    %s124 = sphi 0, %s124
    %s126 = sphi 0, %s124
    %s127 = sphi 0, %s126
    %s141 = sphi 0, %s127
    %s145 = sphi 0, %s145
    %s147 = sphi 0, %s145
    %s148 = sphi 0, %s147
    %s162 = sphi 0, %s148
    %s166 = sphi 0, %s166
    %s168 = sphi 0, %s166
    %s169 = sphi 0, %s168
    %s183 = sphi 0, %s169
    %s187 = sphi 0, %s187
    %s189 = sphi 0, %s187
    %s190 = sphi 0, %s189
    %s204 = sphi 0, %s190
    %s208 = sphi 0, %s208
    %s210 = sphi 0, %s208
    %s211 = sphi 0, %s210
    %s225 = sphi 0, %s211
    %s229 = sphi 0, %s229
    %s231 = sphi 0, %s229
    %s232 = sphi 0, %s231
    %s246 = sphi 0, %s232
    %s250 = sphi 0, %s250
    %s252 = sphi 0, %s250
    %s253 = sphi 0, %s252
    %s267 = sphi 0, %s253
    %s271 = sphi 0, %s271
    %s273 = sphi 0, %s271
    %s274 = sphi 0, %s273
    %s288 = sphi 0, %s274
    %s292 = sphi 0, %s292
    %s294 = sphi 0, %s292
    %s295 = sphi 0, %s294
    %s309 = sphi 0, %s295
    %s313 = sphi 0, %s313
    %s315 = sphi 0, %s313
    %s316 = sphi 0, %s315
    %s330 = sphi 0, %s316
    %s334 = sphi 0, %s334
    %s336 = sphi 0, %s334
    %s337 = sphi 0, %s336
    %s351 = sphi 0, %s337
    %s355 = sphi 0, %s355
    %s357 = sphi 0, %s355
    %s358 = sphi 0, %s357
    %s372 = sphi 0, %s358
    %s378 = sphi 0, %s380
    %s381 = sphi 0, %s378
    %s382 = sphi 0, %s381
    %s398 = sphi 0, %s382
  $region4: #{forward.2} parent=0 // loop_header_branch
    %25 = sbr.rel (%p23) target = $region8
  $region5: #{forward.2} parent=0 // loop_body
    %s27 = ssub.s32 %s22, 1
    %s28 = ssub.s32 %s22, 2
    %s29 = sadd.s32 %s22, 1
    %s30 = ssub.s32 %s22, %s29
    %p31 = scmp.eq.s32.totalorder %s30, 0
    %s33 = sadd.s32 %s32, 1
    %s34 = scalar_select %p31, %s32, %s33
    %p37 = pneg %p31
    %p38 = scmp.eq.s32.totalorder %s22, 1
    %p39 = por %p37, %p38
    %p40 = scmp.ne.s32.totalorder %s32, %s35
    %p41 = scmp.eq.s32.totalorder %s22, 0
    %p42 = por %p40, %p41
    %p43 = scmp.ne.s32.totalorder %s32, %s35
    %p44 = scmp.eq.s32.totalorder %s27, 1
    %p45 = por %p43, %p44
    %p46 = scmp.ne.s32.totalorder %s35, %s36
    %p47 = scmp.eq.s32.totalorder %s27, 0
    %p48 = por %p46, %p47
    %p49 = scmp.ne.s32.totalorder %s35, %s36
    %p50 = scmp.eq.s32.totalorder %s28, 1
    %p51 = por %p49, %p50
    %p53 = scmp.ne.s32.totalorder %s36, %s52
    %p54 = scmp.eq.s32.totalorder %s28, 0
    %p55 = por %p53, %p54
    %s56 = ssub.s32 %s22, %s29
    %p57 = scmp.eq.s32.totalorder %s56, 0
    %s59 = sadd.s32 %s58, 1
    %s60 = scalar_select %p57, %s58, %s59
    %p63 = pneg %p57
    %p64 = scmp.eq.s32.totalorder %s22, 1
    %p65 = por %p63, %p64
    %p66 = scmp.ne.s32.totalorder %s58, %s61
    %p67 = scmp.eq.s32.totalorder %s22, 0
    %p68 = por %p66, %p67
    %p69 = scmp.ne.s32.totalorder %s58, %s61
    %p70 = scmp.eq.s32.totalorder %s27, 1
    %p71 = por %p69, %p70
    %p72 = scmp.ne.s32.totalorder %s61, %s62
    %p73 = scmp.eq.s32.totalorder %s27, 0
    %p74 = por %p72, %p73
    %p75 = scmp.ne.s32.totalorder %s61, %s62
    %p76 = scmp.eq.s32.totalorder %s28, 1
    %p77 = por %p75, %p76
    %p79 = scmp.ne.s32.totalorder %s62, %s78
    %p80 = scmp.eq.s32.totalorder %s28, 0
    %p81 = por %p79, %p80
    %s83 = sadd.s32 %s82, 1
    %p86 = scmp.eq.s32.totalorder %s22, 1
    %p87 = scmp.ne.s32.totalorder %s82, %s84
    %p88 = scmp.eq.s32.totalorder %s22, 0
    %p89 = por %p87, %p88
    %p90 = scmp.ne.s32.totalorder %s82, %s84
    %p91 = scmp.eq.s32.totalorder %s27, 1
    %p92 = por %p90, %p91
    %p93 = scmp.ne.s32.totalorder %s84, %s85
    %p94 = scmp.eq.s32.totalorder %s27, 0
    %p95 = por %p93, %p94
    %p96 = scmp.ne.s32.totalorder %s84, %s85
    %p97 = scmp.eq.s32.totalorder %s28, 1
    %p98 = por %p96, %p97
    %p100 = scmp.ne.s32.totalorder %s85, %s99
    %p101 = scmp.eq.s32.totalorder %s28, 0
    %p102 = por %p100, %p101
    %s104 = sadd.s32 %s103, 1
    %p107 = scmp.eq.s32.totalorder %s22, 1
    %p108 = scmp.ne.s32.totalorder %s103, %s105
    %p109 = scmp.eq.s32.totalorder %s22, 0
    %p110 = por %p108, %p109
    %p111 = scmp.ne.s32.totalorder %s103, %s105
    %p112 = scmp.eq.s32.totalorder %s27, 1
    %p113 = por %p111, %p112
    %p114 = scmp.ne.s32.totalorder %s105, %s106
    %p115 = scmp.eq.s32.totalorder %s27, 0
    %p116 = por %p114, %p115
    %p117 = scmp.ne.s32.totalorder %s105, %s106
    %p118 = scmp.eq.s32.totalorder %s28, 1
    %p119 = por %p117, %p118
    %p121 = scmp.ne.s32.totalorder %s106, %s120
    %p122 = scmp.eq.s32.totalorder %s28, 0
    %p123 = por %p121, %p122
    %s125 = sadd.s32 %s124, 1
    %p128 = scmp.eq.s32.totalorder %s22, 1
    %p129 = scmp.ne.s32.totalorder %s124, %s126
    %p130 = scmp.eq.s32.totalorder %s22, 0
    %p131 = por %p129, %p130
    %p132 = scmp.ne.s32.totalorder %s124, %s126
    %p133 = scmp.eq.s32.totalorder %s27, 1
    %p134 = por %p132, %p133
    %p135 = scmp.ne.s32.totalorder %s126, %s127
    %p136 = scmp.eq.s32.totalorder %s27, 0
    %p137 = por %p135, %p136
    %p138 = scmp.ne.s32.totalorder %s126, %s127
    %p139 = scmp.eq.s32.totalorder %s28, 1
    %p140 = por %p138, %p139
    %p142 = scmp.ne.s32.totalorder %s127, %s141
    %p143 = scmp.eq.s32.totalorder %s28, 0
    %p144 = por %p142, %p143
    %s146 = sadd.s32 %s145, 1
    %p149 = scmp.eq.s32.totalorder %s22, 1
    %p150 = scmp.ne.s32.totalorder %s145, %s147
    %p151 = scmp.eq.s32.totalorder %s22, 0
    %p152 = por %p150, %p151
    %p153 = scmp.ne.s32.totalorder %s145, %s147
    %p154 = scmp.eq.s32.totalorder %s27, 1
    %p155 = por %p153, %p154
    %p156 = scmp.ne.s32.totalorder %s147, %s148
    %p157 = scmp.eq.s32.totalorder %s27, 0
    %p158 = por %p156, %p157
    %p159 = scmp.ne.s32.totalorder %s147, %s148
    %p160 = scmp.eq.s32.totalorder %s28, 1
    %p161 = por %p159, %p160
    %p163 = scmp.ne.s32.totalorder %s148, %s162
    %p164 = scmp.eq.s32.totalorder %s28, 0
    %p165 = por %p163, %p164
    %s167 = sadd.s32 %s166, 1
    %p170 = scmp.eq.s32.totalorder %s22, 1
    %p171 = scmp.ne.s32.totalorder %s166, %s168
    %p172 = scmp.eq.s32.totalorder %s22, 0
    %p173 = por %p171, %p172
    %p174 = scmp.ne.s32.totalorder %s166, %s168
    %p175 = scmp.eq.s32.totalorder %s27, 1
    %p176 = por %p174, %p175
    %p177 = scmp.ne.s32.totalorder %s168, %s169
    %p178 = scmp.eq.s32.totalorder %s27, 0
    %p179 = por %p177, %p178
    %p180 = scmp.ne.s32.totalorder %s168, %s169
    %p181 = scmp.eq.s32.totalorder %s28, 1
    %p182 = por %p180, %p181
    %p184 = scmp.ne.s32.totalorder %s169, %s183
    %p185 = scmp.eq.s32.totalorder %s28, 0
    %p186 = por %p184, %p185
    %s188 = sadd.s32 %s187, 1
    %p191 = scmp.eq.s32.totalorder %s22, 1
    %p192 = scmp.ne.s32.totalorder %s187, %s189
    %p193 = scmp.eq.s32.totalorder %s22, 0
    %p194 = por %p192, %p193
    %p195 = scmp.ne.s32.totalorder %s187, %s189
    %p196 = scmp.eq.s32.totalorder %s27, 1
    %p197 = por %p195, %p196
    %p198 = scmp.ne.s32.totalorder %s189, %s190
    %p199 = scmp.eq.s32.totalorder %s27, 0
    %p200 = por %p198, %p199
    %p201 = scmp.ne.s32.totalorder %s189, %s190
    %p202 = scmp.eq.s32.totalorder %s28, 1
    %p203 = por %p201, %p202
    %p205 = scmp.ne.s32.totalorder %s190, %s204
    %p206 = scmp.eq.s32.totalorder %s28, 0
    %p207 = por %p205, %p206
    %s209 = sadd.s32 %s208, 1
    %p212 = scmp.eq.s32.totalorder %s22, 1
    %p213 = scmp.ne.s32.totalorder %s208, %s210
    %p214 = scmp.eq.s32.totalorder %s22, 0
    %p215 = por %p213, %p214
    %p216 = scmp.ne.s32.totalorder %s208, %s210
    %p217 = scmp.eq.s32.totalorder %s27, 1
    %p218 = por %p216, %p217
    %p219 = scmp.ne.s32.totalorder %s210, %s211
    %p220 = scmp.eq.s32.totalorder %s27, 0
    %p221 = por %p219, %p220
    %p222 = scmp.ne.s32.totalorder %s210, %s211
    %p223 = scmp.eq.s32.totalorder %s28, 1
    %p224 = por %p222, %p223
    %p226 = scmp.ne.s32.totalorder %s211, %s225
    %p227 = scmp.eq.s32.totalorder %s28, 0
    %p228 = por %p226, %p227
    %s230 = sadd.s32 %s229, 1
    %p233 = scmp.eq.s32.totalorder %s22, 1
    %p234 = scmp.ne.s32.totalorder %s229, %s231
    %p235 = scmp.eq.s32.totalorder %s22, 0
    %p236 = por %p234, %p235
    %p237 = scmp.ne.s32.totalorder %s229, %s231
    %p238 = scmp.eq.s32.totalorder %s27, 1
    %p239 = por %p237, %p238
    %p240 = scmp.ne.s32.totalorder %s231, %s232
    %p241 = scmp.eq.s32.totalorder %s27, 0
    %p242 = por %p240, %p241
    %p243 = scmp.ne.s32.totalorder %s231, %s232
    %p244 = scmp.eq.s32.totalorder %s28, 1
    %p245 = por %p243, %p244
    %p247 = scmp.ne.s32.totalorder %s232, %s246
    %p248 = scmp.eq.s32.totalorder %s28, 0
    %p249 = por %p247, %p248
    %s251 = sadd.s32 %s250, 1
    %p254 = scmp.eq.s32.totalorder %s22, 1
    %p255 = scmp.ne.s32.totalorder %s250, %s252
    %p256 = scmp.eq.s32.totalorder %s22, 0
    %p257 = por %p255, %p256
    %p258 = scmp.ne.s32.totalorder %s250, %s252
    %p259 = scmp.eq.s32.totalorder %s27, 1
    %p260 = por %p258, %p259
    %p261 = scmp.ne.s32.totalorder %s252, %s253
    %p262 = scmp.eq.s32.totalorder %s27, 0
    %p263 = por %p261, %p262
    %p264 = scmp.ne.s32.totalorder %s252, %s253
    %p265 = scmp.eq.s32.totalorder %s28, 1
    %p266 = por %p264, %p265
    %p268 = scmp.ne.s32.totalorder %s253, %s267
    %p269 = scmp.eq.s32.totalorder %s28, 0
    %p270 = por %p268, %p269
    %s272 = sadd.s32 %s271, 1
    %p275 = scmp.eq.s32.totalorder %s22, 1
    %p276 = scmp.ne.s32.totalorder %s271, %s273
    %p277 = scmp.eq.s32.totalorder %s22, 0
    %p278 = por %p276, %p277
    %p279 = scmp.ne.s32.totalorder %s271, %s273
    %p280 = scmp.eq.s32.totalorder %s27, 1
    %p281 = por %p279, %p280
    %p282 = scmp.ne.s32.totalorder %s273, %s274
    %p283 = scmp.eq.s32.totalorder %s27, 0
    %p284 = por %p282, %p283
    %p285 = scmp.ne.s32.totalorder %s273, %s274
    %p286 = scmp.eq.s32.totalorder %s28, 1
    %p287 = por %p285, %p286
    %p289 = scmp.ne.s32.totalorder %s274, %s288
    %p290 = scmp.eq.s32.totalorder %s28, 0
    %p291 = por %p289, %p290
    %s293 = sadd.s32 %s292, 1
    %p296 = scmp.eq.s32.totalorder %s22, 1
    %p297 = scmp.ne.s32.totalorder %s292, %s294
    %p298 = scmp.eq.s32.totalorder %s22, 0
    %p299 = por %p297, %p298
    %p300 = scmp.ne.s32.totalorder %s292, %s294
    %p301 = scmp.eq.s32.totalorder %s27, 1
    %p302 = por %p300, %p301
    %p303 = scmp.ne.s32.totalorder %s294, %s295
    %p304 = scmp.eq.s32.totalorder %s27, 0
    %p305 = por %p303, %p304
    %p306 = scmp.ne.s32.totalorder %s294, %s295
    %p307 = scmp.eq.s32.totalorder %s28, 1
    %p308 = por %p306, %p307
    %p310 = scmp.ne.s32.totalorder %s295, %s309
    %p311 = scmp.eq.s32.totalorder %s28, 0
    %p312 = por %p310, %p311
    %s314 = sadd.s32 %s313, 1
    %p317 = scmp.eq.s32.totalorder %s22, 1
    %p318 = scmp.ne.s32.totalorder %s313, %s315
    %p319 = scmp.eq.s32.totalorder %s22, 0
    %p320 = por %p318, %p319
    %p321 = scmp.ne.s32.totalorder %s313, %s315
    %p322 = scmp.eq.s32.totalorder %s27, 1
    %p323 = por %p321, %p322
    %p324 = scmp.ne.s32.totalorder %s315, %s316
    %p325 = scmp.eq.s32.totalorder %s27, 0
    %p326 = por %p324, %p325
    %p327 = scmp.ne.s32.totalorder %s315, %s316
    %p328 = scmp.eq.s32.totalorder %s28, 1
    %p329 = por %p327, %p328
    %p331 = scmp.ne.s32.totalorder %s316, %s330
    %p332 = scmp.eq.s32.totalorder %s28, 0
    %p333 = por %p331, %p332
    %s335 = sadd.s32 %s334, 1
    %p338 = scmp.eq.s32.totalorder %s22, 1
    %p339 = scmp.ne.s32.totalorder %s334, %s336
    %p340 = scmp.eq.s32.totalorder %s22, 0
    %p341 = por %p339, %p340
    %p342 = scmp.ne.s32.totalorder %s334, %s336
    %p343 = scmp.eq.s32.totalorder %s27, 1
    %p344 = por %p342, %p343
    %p345 = scmp.ne.s32.totalorder %s336, %s337
    %p346 = scmp.eq.s32.totalorder %s27, 0
    %p347 = por %p345, %p346
    %p348 = scmp.ne.s32.totalorder %s336, %s337
    %p349 = scmp.eq.s32.totalorder %s28, 1
    %p350 = por %p348, %p349
    %p352 = scmp.ne.s32.totalorder %s337, %s351
    %p353 = scmp.eq.s32.totalorder %s28, 0
    %p354 = por %p352, %p353
    %s356 = sadd.s32 %s355, 1
    %p359 = scmp.eq.s32.totalorder %s22, 1
    %p360 = scmp.ne.s32.totalorder %s355, %s357
    %p361 = scmp.eq.s32.totalorder %s22, 0
    %p362 = por %p360, %p361
    %p363 = scmp.ne.s32.totalorder %s355, %s357
    %p364 = scmp.eq.s32.totalorder %s27, 1
    %p365 = por %p363, %p364
    %p366 = scmp.ne.s32.totalorder %s357, %s358
    %p367 = scmp.eq.s32.totalorder %s27, 0
    %p368 = por %p366, %p367
    %p369 = scmp.ne.s32.totalorder %s357, %s358
    %p370 = scmp.eq.s32.totalorder %s28, 1
    %p371 = por %p369, %p370
    %p373 = scmp.ne.s32.totalorder %s358, %s372
    %p374 = scmp.eq.s32.totalorder %s28, 0
    %p375 = por %p373, %p374
    %s376 = ssub.s32 %s22, %s29
    %p377 = scmp.eq.s32.totalorder %s376, 0
    %s379 = sadd.s32 %s378, 1
    %s380 = scalar_select %p377, %s378, %s379
    %p383 = pneg %p377
    %p384 = scmp.eq.s32.totalorder %s22, 1
    %p385 = por %p383, %p384
    %p386 = scmp.ne.s32.totalorder %s378, %s381
    %p387 = scmp.eq.s32.totalorder %s22, 0
    %p388 = por %p386, %p387
    %p389 = scmp.ne.s32.totalorder %s378, %s381
    %p390 = scmp.eq.s32.totalorder %s27, 1
    %p391 = por %p389, %p390
    %p392 = scmp.ne.s32.totalorder %s381, %s382
    %p393 = scmp.eq.s32.totalorder %s27, 0
    %p394 = por %p392, %p393
    %p395 = scmp.ne.s32.totalorder %s381, %s382
    %p396 = scmp.eq.s32.totalorder %s28, 1
    %p397 = por %p395, %p396
    %p399 = scmp.ne.s32.totalorder %s382, %s398
    %p400 = scmp.eq.s32.totalorder %s28, 0
    %p401 = por %p399, %p400
    %p402 = scmp.le.s32.totalorder 1, %s22
    %p403 = scmp.lt.s32.totalorder %s22, 3
    %p404 = pnand %p402, %p403
    %p405 = pneg %p404
    // Predicated region
    $region9: #{forward.2} parent=5 // pred_check
      _
    $region10: #{forward.2} parent=5 // pred_check_branch
      %407 = sbr.rel (%p404) target = $region12
    $region11: #{forward.2} parent=5 // pred_region
      %s408 = ssub.s32 %s22, 1
      // Predicated region
      $region13: #{forward.2} parent=11 // pred_check
        %p409 = pneg %p95
      $region14: #{forward.2} parent=11 // pred_check_branch
        %411 = sbr.rel (%p409) target = $region16
      $region15: #{forward.2} parent=11 // pred_region
        _
      $region16: #{forward.2} parent=11 // pred_fallthru
        _
      // Predicated region
      $region17: #{forward.2} parent=11 // pred_check
        %p412 = pneg %p116
      $region18: #{forward.2} parent=11 // pred_check_branch
        %414 = sbr.rel (%p412) target = $region20
      $region19: #{forward.2} parent=11 // pred_region
        _
      $region20: #{forward.2} parent=11 // pred_fallthru
        _
      // Predicated region
      $region21: #{forward.2} parent=11 // pred_check
        %p415 = pneg %p137
      $region22: #{forward.2} parent=11 // pred_check_branch
        %417 = sbr.rel (%p415) target = $region24
      $region23: #{forward.2} parent=11 // pred_region
        _
      $region24: #{forward.2} parent=11 // pred_fallthru
        _
      // Predicated region
      $region25: #{forward.2} parent=11 // pred_check
        %p418 = pneg %p158
      $region26: #{forward.2} parent=11 // pred_check_branch
        %420 = sbr.rel (%p418) target = $region28
      $region27: #{forward.2} parent=11 // pred_region
        _
      $region28: #{forward.2} parent=11 // pred_fallthru
        _
      // Predicated region
      $region29: #{forward.2} parent=11 // pred_check
        %p421 = pneg %p179
      $region30: #{forward.2} parent=11 // pred_check_branch
        %423 = sbr.rel (%p421) target = $region32
      $region31: #{forward.2} parent=11 // pred_region
        _
      $region32: #{forward.2} parent=11 // pred_fallthru
        _
      // Predicated region
      $region33: #{forward.2} parent=11 // pred_check
        %p424 = pneg %p200
      $region34: #{forward.2} parent=11 // pred_check_branch
        %426 = sbr.rel (%p424) target = $region36
      $region35: #{forward.2} parent=11 // pred_region
        _
      $region36: #{forward.2} parent=11 // pred_fallthru
        _
      // Predicated region
      $region37: #{forward.2} parent=11 // pred_check
        %p427 = pneg %p221
      $region38: #{forward.2} parent=11 // pred_check_branch
        %429 = sbr.rel (%p427) target = $region40
      $region39: #{forward.2} parent=11 // pred_region
        _
      $region40: #{forward.2} parent=11 // pred_fallthru
        _
      // Predicated region
      $region41: #{forward.2} parent=11 // pred_check
        %p430 = pneg %p242
      $region42: #{forward.2} parent=11 // pred_check_branch
        %432 = sbr.rel (%p430) target = $region44
      $region43: #{forward.2} parent=11 // pred_region
        _
      $region44: #{forward.2} parent=11 // pred_fallthru
        _
      // Predicated region
      $region45: #{forward.2} parent=11 // pred_check
        %p433 = pneg %p263
      $region46: #{forward.2} parent=11 // pred_check_branch
        %435 = sbr.rel (%p433) target = $region48
      $region47: #{forward.2} parent=11 // pred_region
        _
      $region48: #{forward.2} parent=11 // pred_fallthru
        _
      // Predicated region
      $region49: #{forward.2} parent=11 // pred_check
        %p436 = pneg %p284
      $region50: #{forward.2} parent=11 // pred_check_branch
        %438 = sbr.rel (%p436) target = $region52
      $region51: #{forward.2} parent=11 // pred_region
        _
      $region52: #{forward.2} parent=11 // pred_fallthru
        _
      // Predicated region
      $region53: #{forward.2} parent=11 // pred_check
        %p439 = pneg %p305
      $region54: #{forward.2} parent=11 // pred_check_branch
        %441 = sbr.rel (%p439) target = $region56
      $region55: #{forward.2} parent=11 // pred_region
        _
      $region56: #{forward.2} parent=11 // pred_fallthru
        _
      // Predicated region
      $region57: #{forward.2} parent=11 // pred_check
        %p442 = pneg %p326
      $region58: #{forward.2} parent=11 // pred_check_branch
        %444 = sbr.rel (%p442) target = $region60
      $region59: #{forward.2} parent=11 // pred_region
        _
      $region60: #{forward.2} parent=11 // pred_fallthru
        _
      // Predicated region
      $region61: #{forward.2} parent=11 // pred_check
        %p445 = pneg %p347
      $region62: #{forward.2} parent=11 // pred_check_branch
        %447 = sbr.rel (%p445) target = $region64
      $region63: #{forward.2} parent=11 // pred_region
        _
      $region64: #{forward.2} parent=11 // pred_fallthru
        _
      // Predicated region
      $region65: #{forward.2} parent=11 // pred_check
        %p448 = pneg %p368
      $region66: #{forward.2} parent=11 // pred_check_branch
        %450 = sbr.rel (%p448) target = $region68
      $region67: #{forward.2} parent=11 // pred_region
        _
      $region68: #{forward.2} parent=11 // pred_fallthru
        _
    $region12: #{forward.2} parent=5 // pred_fallthru
      _
    %p451 = scmp.lt.s32.totalorder %s22, 2
    // Predicated region
    $region69: #{forward.2} parent=5 // pred_check
      %p452 = pneg %p451
    $region70: #{forward.2} parent=5 // pred_check_branch
      %454 = sbr.rel (%p452) target = $region72
    $region71: #{forward.2} parent=5 // pred_region
      // Predicated region
      $region73: #{forward.2} parent=71 // pred_check
        %p455 = pneg %p42
      $region74: #{forward.2} parent=71 // pred_check_branch
        %457 = sbr.rel (%p455) target = $region76
      $region75: #{forward.2} parent=71 // pred_region
        %p458 = scmp.lt.s32.totalorder %s22, 1
        %s459 = scalar_select %p458, %s22, 1
        %s460 = smul.addr %s459, 8
        %s461 = scalar_lea.vmem %s0, %s460
      $region76: #{forward.2} parent=71 // pred_fallthru
        _
      // Predicated region
      $region77: #{forward.2} parent=71 // pred_check
        %p462 = pneg %p68
      $region78: #{forward.2} parent=71 // pred_check_branch
        %464 = sbr.rel (%p462) target = $region80
      $region79: #{forward.2} parent=71 // pred_region
        %p465 = scmp.lt.s32.totalorder %s22, 1
        %s466 = scalar_select %p465, %s22, 1
        %s467 = scalar_lea.vmem %s1, %s466
      $region80: #{forward.2} parent=71 // pred_fallthru
        _
    $region72: #{forward.2} parent=5 // pred_fallthru
      _
    %p468 = scmp.le.s32.totalorder 1, %s22
    %p469 = scmp.lt.s32.totalorder %s22, 3
    %p470 = pnand %p468, %p469
    %p471 = pneg %p470
    // Predicated region
    $region81: #{forward.2} parent=5 // pred_check
      _
    $region82: #{forward.2} parent=5 // pred_check_branch
      %473 = sbr.rel (%p470) target = $region84
    $region83: #{forward.2} parent=5 // pred_region
      %s474 = ssub.s32 %s22, 1
      %p475 = scmp.lt.s32.totalorder %s27, 1
      %s476 = scalar_select %p475, %s27, 1
      %s477 = smul.addr %s476, 8
      %s478 = scalar_lea.vmem %s0, %s477
      %p479 = pneg %p48
      %p480 = pneg %p45
      %p481 = scmp.lt.s32.totalorder %s27, 1
      %s482 = scalar_select %p481, %s27, 1
      %s483 = scalar_lea.vmem %s1, %s482
      %p484 = pneg %p74
      %p485 = pneg %p71
      %p486 = pneg %p95
      %p487 = pneg %p92
      %p488 = pneg %p116
      %p489 = pneg %p113
      %p490 = pneg %p137
      %p491 = pneg %p134
      %p492 = pneg %p158
      %p493 = pneg %p155
      %p494 = pneg %p179
      %p495 = pneg %p176
      %p496 = pneg %p200
      %p497 = pneg %p197
      %p498 = pneg %p221
      %p499 = pneg %p218
      %p500 = pneg %p242
      %p501 = pneg %p239
      %p502 = pneg %p263
      %p503 = pneg %p260
      %p504 = pneg %p284
      %p505 = pneg %p281
      %p506 = pneg %p305
      %p507 = pneg %p302
      %p508 = pneg %p326
      %p509 = pneg %p323
      %p510 = pneg %p347
      %p511 = pneg %p344
      %p512 = pneg %p368
      %p513 = pneg %p365
      %p514 = pneg %p394
      %p515 = pneg %p391
      %p516 = scmp.lt.s32.totalorder %s27, 1
      %s517 = scalar_select %p516, %s27, 1
      %s518 = smul.addr %s517, 8
      %s519 = scalar_lea.vmem %s16, %s518
      %p520 = scmp.lt.s32.totalorder %s27, 1
      %s521 = scalar_select %p520, %s27, 1
      %s522 = smul.addr %s521, 8
      %s523 = scalar_lea.vmem %s0, %s522
      %p524 = scmp.lt.s32.totalorder %s27, 1
      %s525 = scalar_select %p524, %s27, 1
      %s526 = scalar_lea.vmem %s1, %s525
      %p527 = scmp.lt.s32.totalorder %s27, 1
      %s528 = scalar_select %p527, %s27, 1
      %s529 = smul.addr %s528, 8
      %s530 = scalar_lea.vmem %s16, %s529
      %v532 = vld [vmem:[%s523] sm:$0xff]
      %v533 = vld [vmem:[%s2] sm:$0x1]
      %v534 = vld [vmem:[%s3] sm:$0x1]
      %vm535 = vcmask 261120
      %v536 = vsel %vm535, %v532, 0.0
      %537 = vadd.xlane.f32.xlu0 %v536
      %v538 = vpop.xlane.xlu0 %537
      %v539 = vrcp.pop 32.0
      %v540 = vmul.f32 %v538, %v539
      %v541 = vsub.f32 %v532, %v540
      %v542 = vmul.f32 %v541, %v541
      %v543 = vsel %vm535, %v542, 0.0
      %544 = vadd.xlane.f32.xlu0 %v543
      %v545 = vpop.xlane.xlu0 %544
      %v546 = vmul.f32 %v545, %v539
      %v547 = vadd.f32 %v546, 1e-12
      %v548 = vrsqrt.pop %v547
      %v549 = vmul.f32 %v541, %v548
      %v551 = vlaneseq
      %v552 = vshrl.u32 %v551, 7
      %v553 = vsub.s32 0, %v552
      %v554 = vrot.slane %v533, %v553
      %v556 = vmul.f32 %v549, %v554
      %v558 = vlaneseq
      %v559 = vshrl.u32 %v558, 7
      %v560 = vsub.s32 0, %v559
      %v561 = vrot.slane %v534, %v560
      %v563 = vadd.f32 %v556, %v561
      %v564 = vpack.c.bf16 %v563, %v563
      %v565 = vld [vmem:[%s4] sm:$0xf]
      %v566 = vld [vmem:[%s4 + $0x4] sm:$0xf]
      %v567 = vld [vmem:[%s4 + $0x8] sm:$0xf]
      %v568 = vld [vmem:[%s4 + $0xc] sm:$0xf]
      %v569 = vld [vmem:[%s5] sm:$0x1]
      %v571 = vlaneseq
      %v572 = vshrl.u32 %v571, 7
      %v573 = vsub.s32 0, %v572
      %v574 = vrot.slane %v569, %v573
      %v580 = vunpack.c.l.b16 %v565
      %v581 = vunpack.c.l.b16 %v566
      %v582 = vunpack.c.l.b16 %v567
      %v583 = vunpack.c.l.b16 %v568
      %v584 = vpack.c.b16 %v581, %v580
      %v585 = vpack.c.b16 %v583, %v582
      %v589 = vsel %vm535, %v564, 0
      %591 = vmatprep.subr.bf16.mxu0 0
      %592 = vmatpush1.bf16.msra.mxu0 0
      %593 = vmatprep.subr.bf16.mxu0 0
      %594 = vmatpush1.bf16.msra.mxu0 0
      %595 = vmatprep.subr.bf16.mxu0 0
      %596 = vmatpush1.bf16.msra.mxu0 0
      %597 = vmatprep.subr.bf16.mxu0 0
      %598 = vmatpush1.bf16.msra.mxu0 0
      %599 = vmatprep.subr.bf16.mxu0 0
      %600 = vmatpush1.bf16.msra.mxu0 0
      %601 = vmatprep.subr.bf16.mxu0 0
      %602 = vmatpush1.bf16.msra.mxu0 0
      %603 = vmatprep.subr.bf16.mxu0 0
      %604 = vmatpush1.bf16.msra.mxu0 %v585
      %605 = vmatprep.subr.bf16.mxu0 0
      %606 = vmatpush1.bf16.msra.mxu0 %v584
      %607 = vmatprep.subr.bf16.mxu0 0
      %608 = vmatpush2.bf16.msra.mxu0 0
      %609 = vmatprep.subr.bf16.mxu0 0
      %610 = vmatpush2.bf16.msra.mxu0 0
      %611 = vmatprep.subr.bf16.mxu0 0
      %612 = vmatpush2.bf16.msra.mxu0 0
      %613 = vmatprep.subr.bf16.mxu0 0
      %614 = vmatpush2.bf16.msra.mxu0 0
      %615 = vmatprep.subr.bf16.mxu0 0
      %616 = vmatpush2.bf16.msra.mxu0 0
      %617 = vmatprep.subr.bf16.mxu0 0
      %618 = vmatpush2.bf16.msra.mxu0 0
      %619 = vmatprep.subr.bf16.mxu0 0
      %620 = vmatpush2.bf16.msra.mxu0 0
      %621 = vmatprep.subr.bf16.mxu0 0
      %622 = vmatpush2.bf16.msra.mxu0 0
      %623 = vmatprep.mubr.bf16.mxu0 0
      %624 = vmatmul.mubr.bf16.gmra.mxu0 %v589
      %v625 = vpop.f32.mrf.mxu0
      %v626 = vadd.f32 %v574, %v625
      %v627 = vpop.f32.mrf.mxu0
      %v628 = vpop.f32.mrf.mxu0
      %v629 = vpop.f32.mrf.mxu0
      %630 = vdwg.mxu0
      %v631 = vpack.c.bf16 %v626, %v626
      %v632 = vld [vmem:[%s526] sm:$0x1]
      %634 = vrot.lane.b32.xlu0 %v631, 96
      %v635 = vpop.permute.xlu0 %634
      %vm636 = vcmask 64512
      %v638 = vsel %vm636, %v631, 0
      %v641 = vsel %vm636, %v635, 0
      %643 = vmatprep.subr.bf16.mxu0 0
      %644 = vmatpush1.bf16.xpose.msra.mxu0 0
      %645 = vmatprep.subr.bf16.mxu0 0
      %646 = vmatpush1.bf16.xpose.msra.mxu0 0
      %647 = vmatprep.subr.bf16.mxu0 0
      %648 = vmatpush1.bf16.xpose.msra.mxu0 0
      %649 = vmatprep.subr.bf16.mxu0 0
      %650 = vmatpush1.bf16.xpose.msra.mxu0 0
      %651 = vmatprep.subr.bf16.mxu0 0
      %652 = vmatpush1.bf16.xpose.msra.mxu0 0
      %653 = vmatprep.subr.bf16.mxu0 0
      %654 = vmatpush1.bf16.xpose.msra.mxu0 0
      %655 = vmatprep.subr.bf16.mxu0 0
      %656 = vmatpush1.bf16.xpose.msra.mxu0 0
      %657 = vmatprep.subr.bf16.mxu0 0
      %658 = vmatpush1.bf16.xpose.msra.mxu0 %v641
      %659 = vmatprep.subr.bf16.mxu0 0
      %660 = vmatpush2.bf16.xpose.msra.mxu0 0
      %661 = vmatprep.subr.bf16.mxu0 0
      %662 = vmatpush2.bf16.xpose.msra.mxu0 0
      %663 = vmatprep.subr.bf16.mxu0 0
      %664 = vmatpush2.bf16.xpose.msra.mxu0 0
      %665 = vmatprep.subr.bf16.mxu0 0
      %666 = vmatpush2.bf16.xpose.msra.mxu0 0
      %667 = vmatprep.subr.bf16.mxu0 0
      %668 = vmatpush2.bf16.xpose.msra.mxu0 0
      %669 = vmatprep.subr.bf16.mxu0 0
      %670 = vmatpush2.bf16.xpose.msra.mxu0 0
      %671 = vmatprep.subr.bf16.mxu0 0
      %672 = vmatpush2.bf16.xpose.msra.mxu0 0
      %673 = vmatprep.subr.bf16.mxu0 0
      %674 = vmatpush2.bf16.xpose.msra.mxu0 0
      %675 = vmatprep.mubr.bf16.mxu0 0
      %676 = vmatmul.mubr.bf16.gmra.mxu0 %v638
      %v677 = vpop.f32.mrf.mxu0
      %v678 = vadd.f32 0.0, %v677
      %v679 = vpop.f32.mrf.mxu0
      %v680 = vpop.f32.mrf.mxu0
      %v681 = vpop.f32.mrf.mxu0
      %682 = vdwg.mxu0
      %v683 = vmul.f32 %v678, 0.35355338
      %vm684 = vcmp.eq.s32.totalorder %v632, 0
      %v685 = vsel %vm684, 1, 0
      %v686 = vlaneseq
      %v687 = vshrl.u32 %v686, 7
      %v688 = vsub.s32 0, %v687
      %v689 = vrot.slane %v685, %v688
      %vm690 = vcmp.eq.s32.totalorder %v689, 1
      %v691 = vsel %vm690, -1e+09, %v683
      %v692 = vsel %vm636, %v691, -inf
      %693 = vmax.xlane.f32.xlu0 %v692
      %v694 = vpop.xlane.xlu0 %693
      %v695 = vsub.f32 %v691, %v694
      %v696 = vmul.f32 %v695, 1.442695
      %v697 = vpow.pop %v696
      %v698 = vsel %vm636, %v697, 0.0
      %699 = vadd.xlane.f32.xlu0 %v698
      %v700 = vpop.xlane.xlu0 %699
      %v701 = vrcp.pop %v700
      %v702 = vmul.f32 %v697, %v701
      %v703 = vpack.c.bf16 %v702, %v702
      %704 = vrot.lane.b32.xlu0 %v631, 64
      %v705 = vpop.permute.xlu0 %704
      %v707 = vsel %vm636, %v703, 0
      %vm709 = vcmask 1043456
      %v711 = vsel %vm709, %v705, 0
      %713 = vmatprep.subr.bf16.mxu0 0
      %714 = vmatpush1.bf16.msra.mxu0 0
      %715 = vmatprep.subr.bf16.mxu0 0
      %716 = vmatpush1.bf16.msra.mxu0 0
      %717 = vmatprep.subr.bf16.mxu0 0
      %718 = vmatpush1.bf16.msra.mxu0 0
      %719 = vmatprep.subr.bf16.mxu0 0
      %720 = vmatpush1.bf16.msra.mxu0 0
      %721 = vmatprep.subr.bf16.mxu0 0
      %722 = vmatpush1.bf16.msra.mxu0 0
      %723 = vmatprep.subr.bf16.mxu0 0
      %724 = vmatpush1.bf16.msra.mxu0 0
      %725 = vmatprep.subr.bf16.mxu0 0
      %726 = vmatpush1.bf16.msra.mxu0 0
      %727 = vmatprep.subr.bf16.mxu0 0
      %728 = vmatpush1.bf16.msra.mxu0 %v711
      %729 = vmatprep.subr.bf16.mxu0 0
      %730 = vmatpush2.bf16.msra.mxu0 0
      %731 = vmatprep.subr.bf16.mxu0 0
      %732 = vmatpush2.bf16.msra.mxu0 0
      %733 = vmatprep.subr.bf16.mxu0 0
      %734 = vmatpush2.bf16.msra.mxu0 0
      %735 = vmatprep.subr.bf16.mxu0 0
      %736 = vmatpush2.bf16.msra.mxu0 0
      %737 = vmatprep.subr.bf16.mxu0 0
      %738 = vmatpush2.bf16.msra.mxu0 0
      %739 = vmatprep.subr.bf16.mxu0 0
      %740 = vmatpush2.bf16.msra.mxu0 0
      %741 = vmatprep.subr.bf16.mxu0 0
      %742 = vmatpush2.bf16.msra.mxu0 0
      %743 = vmatprep.subr.bf16.mxu0 0
      %744 = vmatpush2.bf16.msra.mxu0 0
      %745 = vmatprep.mubr.bf16.mxu0 0
      %746 = vmatmul.mubr.bf16.gmra.mxu0 %v707
      %v747 = vpop.f32.mrf.mxu0
      %v748 = vadd.f32 0.0, %v747
      %v749 = vpop.f32.mrf.mxu0
      %v750 = vpop.f32.mrf.mxu0
      %v751 = vpop.f32.mrf.mxu0
      %752 = vdwg.mxu0
      %753 = vrot.lane.b32.xlu0 %v631, 120
      %v754 = vpop.permute.xlu0 %753
      %755 = vrot.lane.b32.xlu0 %v631, 88
      %v756 = vpop.permute.xlu0 %755
      %v758 = vsel %vm636, %v754, 0
      %v761 = vsel %vm636, %v756, 0
      %763 = vmatprep.subr.bf16.mxu0 0
      %764 = vmatpush1.bf16.xpose.msra.mxu0 0
      %765 = vmatprep.subr.bf16.mxu0 0
      %766 = vmatpush1.bf16.xpose.msra.mxu0 0
      %767 = vmatprep.subr.bf16.mxu0 0
      %768 = vmatpush1.bf16.xpose.msra.mxu0 0
      %769 = vmatprep.subr.bf16.mxu0 0
      %770 = vmatpush1.bf16.xpose.msra.mxu0 0
      %771 = vmatprep.subr.bf16.mxu0 0
      %772 = vmatpush1.bf16.xpose.msra.mxu0 0
      %773 = vmatprep.subr.bf16.mxu0 0
      %774 = vmatpush1.bf16.xpose.msra.mxu0 0
      %775 = vmatprep.subr.bf16.mxu0 0
      %776 = vmatpush1.bf16.xpose.msra.mxu0 0
      %777 = vmatprep.subr.bf16.mxu0 0
      %778 = vmatpush1.bf16.xpose.msra.mxu0 %v761
      %779 = vmatprep.subr.bf16.mxu0 0
      %780 = vmatpush2.bf16.xpose.msra.mxu0 0
      %781 = vmatprep.subr.bf16.mxu0 0
      %782 = vmatpush2.bf16.xpose.msra.mxu0 0
      %783 = vmatprep.subr.bf16.mxu0 0
      %784 = vmatpush2.bf16.xpose.msra.mxu0 0
      %785 = vmatprep.subr.bf16.mxu0 0
      %786 = vmatpush2.bf16.xpose.msra.mxu0 0
      %787 = vmatprep.subr.bf16.mxu0 0
      %788 = vmatpush2.bf16.xpose.msra.mxu0 0
      %789 = vmatprep.subr.bf16.mxu0 0
      %790 = vmatpush2.bf16.xpose.msra.mxu0 0
      %791 = vmatprep.subr.bf16.mxu0 0
      %792 = vmatpush2.bf16.xpose.msra.mxu0 0
      %793 = vmatprep.subr.bf16.mxu0 0
      %794 = vmatpush2.bf16.xpose.msra.mxu0 0
      %795 = vmatprep.mubr.bf16.mxu0 0
      %796 = vmatmul.mubr.bf16.gmra.mxu0 %v758
      %v797 = vpop.f32.mrf.mxu0
      %v798 = vadd.f32 0.0, %v797
      %v799 = vpop.f32.mrf.mxu0
      %v800 = vpop.f32.mrf.mxu0
      %v801 = vpop.f32.mrf.mxu0
      %802 = vdwg.mxu0
      %v803 = vmul.f32 %v798, 0.35355338
      %v804 = vsel %vm690, -1e+09, %v803
      %v805 = vsel %vm636, %v804, -inf
      %806 = vmax.xlane.f32.xlu0 %v805
      %v807 = vpop.xlane.xlu0 %806
      %v808 = vsub.f32 %v804, %v807
      %v809 = vmul.f32 %v808, 1.442695
      %v810 = vpow.pop %v809
      %v811 = vsel %vm636, %v810, 0.0
      %812 = vadd.xlane.f32.xlu0 %v811
      %v813 = vpop.xlane.xlu0 %812
      %v814 = vrcp.pop %v813
      %v815 = vmul.f32 %v810, %v814
      %v816 = vpack.c.bf16 %v815, %v815
      %817 = vrot.lane.b32.xlu0 %v631, 56
      %v818 = vpop.permute.xlu0 %817
      %v820 = vsel %vm636, %v816, 0
      %v823 = vsel %vm709, %v818, 0
      %825 = vmatprep.subr.bf16.mxu0 0
      %826 = vmatpush1.bf16.msra.mxu0 0
      %827 = vmatprep.subr.bf16.mxu0 0
      %828 = vmatpush1.bf16.msra.mxu0 0
      %829 = vmatprep.subr.bf16.mxu0 0
      %830 = vmatpush1.bf16.msra.mxu0 0
      %831 = vmatprep.subr.bf16.mxu0 0
      %832 = vmatpush1.bf16.msra.mxu0 0
      %833 = vmatprep.subr.bf16.mxu0 0
      %834 = vmatpush1.bf16.msra.mxu0 0
      %835 = vmatprep.subr.bf16.mxu0 0
      %836 = vmatpush1.bf16.msra.mxu0 0
      %837 = vmatprep.subr.bf16.mxu0 0
      %838 = vmatpush1.bf16.msra.mxu0 0
      %839 = vmatprep.subr.bf16.mxu0 0
      %840 = vmatpush1.bf16.msra.mxu0 %v823
      %841 = vmatprep.subr.bf16.mxu0 0
      %842 = vmatpush2.bf16.msra.mxu0 0
      %843 = vmatprep.subr.bf16.mxu0 0
      %844 = vmatpush2.bf16.msra.mxu0 0
      %845 = vmatprep.subr.bf16.mxu0 0
      %846 = vmatpush2.bf16.msra.mxu0 0
      %847 = vmatprep.subr.bf16.mxu0 0
      %848 = vmatpush2.bf16.msra.mxu0 0
      %849 = vmatprep.subr.bf16.mxu0 0
      %850 = vmatpush2.bf16.msra.mxu0 0
      %851 = vmatprep.subr.bf16.mxu0 0
      %852 = vmatpush2.bf16.msra.mxu0 0
      %853 = vmatprep.subr.bf16.mxu0 0
      %854 = vmatpush2.bf16.msra.mxu0 0
      %855 = vmatprep.subr.bf16.mxu0 0
      %856 = vmatpush2.bf16.msra.mxu0 0
      %857 = vmatprep.mubr.bf16.mxu0 0
      %858 = vmatmul.mubr.bf16.gmra.mxu0 %v820
      %v859 = vpop.f32.mrf.mxu0
      %v860 = vadd.f32 0.0, %v859
      %v861 = vpop.f32.mrf.mxu0
      %v862 = vpop.f32.mrf.mxu0
      %v863 = vpop.f32.mrf.mxu0
      %864 = vdwg.mxu0
      %865 = vrot.lane.b32.xlu0 %v631, 112
      %v866 = vpop.permute.xlu0 %865
      %867 = vrot.lane.b32.xlu0 %v631, 80
      %v868 = vpop.permute.xlu0 %867
      %v870 = vsel %vm636, %v866, 0
      %v873 = vsel %vm636, %v868, 0
      %875 = vmatprep.subr.bf16.mxu0 0
      %876 = vmatpush1.bf16.xpose.msra.mxu0 0
      %877 = vmatprep.subr.bf16.mxu0 0
      %878 = vmatpush1.bf16.xpose.msra.mxu0 0
      %879 = vmatprep.subr.bf16.mxu0 0
      %880 = vmatpush1.bf16.xpose.msra.mxu0 0
      %881 = vmatprep.subr.bf16.mxu0 0
      %882 = vmatpush1.bf16.xpose.msra.mxu0 0
      %883 = vmatprep.subr.bf16.mxu0 0
      %884 = vmatpush1.bf16.xpose.msra.mxu0 0
      %885 = vmatprep.subr.bf16.mxu0 0
      %886 = vmatpush1.bf16.xpose.msra.mxu0 0
      %887 = vmatprep.subr.bf16.mxu0 0
      %888 = vmatpush1.bf16.xpose.msra.mxu0 0
      %889 = vmatprep.subr.bf16.mxu0 0
      %890 = vmatpush1.bf16.xpose.msra.mxu0 %v873
      %891 = vmatprep.subr.bf16.mxu0 0
      %892 = vmatpush2.bf16.xpose.msra.mxu0 0
      %893 = vmatprep.subr.bf16.mxu0 0
      %894 = vmatpush2.bf16.xpose.msra.mxu0 0
      %895 = vmatprep.subr.bf16.mxu0 0
      %896 = vmatpush2.bf16.xpose.msra.mxu0 0
      %897 = vmatprep.subr.bf16.mxu0 0
      %898 = vmatpush2.bf16.xpose.msra.mxu0 0
      %899 = vmatprep.subr.bf16.mxu0 0
      %900 = vmatpush2.bf16.xpose.msra.mxu0 0
      %901 = vmatprep.subr.bf16.mxu0 0
      %902 = vmatpush2.bf16.xpose.msra.mxu0 0
      %903 = vmatprep.subr.bf16.mxu0 0
      %904 = vmatpush2.bf16.xpose.msra.mxu0 0
      %905 = vmatprep.subr.bf16.mxu0 0
      %906 = vmatpush2.bf16.xpose.msra.mxu0 0
      %907 = vmatprep.mubr.bf16.mxu0 0
      %908 = vmatmul.mubr.bf16.gmra.mxu0 %v870
      %v909 = vpop.f32.mrf.mxu0
      %v910 = vadd.f32 0.0, %v909
      %v911 = vpop.f32.mrf.mxu0
      %v912 = vpop.f32.mrf.mxu0
      %v913 = vpop.f32.mrf.mxu0
      %914 = vdwg.mxu0
      %v915 = vmul.f32 %v910, 0.35355338
      %v916 = vsel %vm690, -1e+09, %v915
      %v917 = vsel %vm636, %v916, -inf
      %918 = vmax.xlane.f32.xlu0 %v917
      %v919 = vpop.xlane.xlu0 %918
      %v920 = vsub.f32 %v916, %v919
      %v921 = vmul.f32 %v920, 1.442695
      %v922 = vpow.pop %v921
      %v923 = vsel %vm636, %v922, 0.0
      %924 = vadd.xlane.f32.xlu0 %v923
      %v925 = vpop.xlane.xlu0 %924
      %v926 = vrcp.pop %v925
      %v927 = vmul.f32 %v922, %v926
      %v928 = vpack.c.bf16 %v927, %v927
      %929 = vrot.lane.b32.xlu0 %v631, 48
      %v930 = vpop.permute.xlu0 %929
      %v932 = vsel %vm636, %v928, 0
      %v935 = vsel %vm709, %v930, 0
      %937 = vmatprep.subr.bf16.mxu0 0
      %938 = vmatpush1.bf16.msra.mxu0 0
      %939 = vmatprep.subr.bf16.mxu0 0
      %940 = vmatpush1.bf16.msra.mxu0 0
      %941 = vmatprep.subr.bf16.mxu0 0
      %942 = vmatpush1.bf16.msra.mxu0 0
      %943 = vmatprep.subr.bf16.mxu0 0
      %944 = vmatpush1.bf16.msra.mxu0 0
      %945 = vmatprep.subr.bf16.mxu0 0
      %946 = vmatpush1.bf16.msra.mxu0 0
      %947 = vmatprep.subr.bf16.mxu0 0
      %948 = vmatpush1.bf16.msra.mxu0 0
      %949 = vmatprep.subr.bf16.mxu0 0
      %950 = vmatpush1.bf16.msra.mxu0 0
      %951 = vmatprep.subr.bf16.mxu0 0
      %952 = vmatpush1.bf16.msra.mxu0 %v935
      %953 = vmatprep.subr.bf16.mxu0 0
      %954 = vmatpush2.bf16.msra.mxu0 0
      %955 = vmatprep.subr.bf16.mxu0 0
      %956 = vmatpush2.bf16.msra.mxu0 0
      %957 = vmatprep.subr.bf16.mxu0 0
      %958 = vmatpush2.bf16.msra.mxu0 0
      %959 = vmatprep.subr.bf16.mxu0 0
      %960 = vmatpush2.bf16.msra.mxu0 0
      %961 = vmatprep.subr.bf16.mxu0 0
      %962 = vmatpush2.bf16.msra.mxu0 0
      %963 = vmatprep.subr.bf16.mxu0 0
      %964 = vmatpush2.bf16.msra.mxu0 0
      %965 = vmatprep.subr.bf16.mxu0 0
      %966 = vmatpush2.bf16.msra.mxu0 0
      %967 = vmatprep.subr.bf16.mxu0 0
      %968 = vmatpush2.bf16.msra.mxu0 0
      %969 = vmatprep.mubr.bf16.mxu0 0
      %970 = vmatmul.mubr.bf16.gmra.mxu0 %v932
      %v971 = vpop.f32.mrf.mxu0
      %v972 = vadd.f32 0.0, %v971
      %v973 = vpop.f32.mrf.mxu0
      %v974 = vpop.f32.mrf.mxu0
      %v975 = vpop.f32.mrf.mxu0
      %976 = vdwg.mxu0
      %977 = vrot.lane.b32.xlu0 %v631, 104
      %v978 = vpop.permute.xlu0 %977
      %979 = vrot.lane.b32.xlu0 %v631, 72
      %v980 = vpop.permute.xlu0 %979
      %v982 = vsel %vm636, %v978, 0
      %v985 = vsel %vm636, %v980, 0
      %987 = vmatprep.subr.bf16.mxu0 0
      %988 = vmatpush1.bf16.xpose.msra.mxu0 0
      %989 = vmatprep.subr.bf16.mxu0 0
      %990 = vmatpush1.bf16.xpose.msra.mxu0 0
      %991 = vmatprep.subr.bf16.mxu0 0
      %992 = vmatpush1.bf16.xpose.msra.mxu0 0
      %993 = vmatprep.subr.bf16.mxu0 0
      %994 = vmatpush1.bf16.xpose.msra.mxu0 0
      %995 = vmatprep.subr.bf16.mxu0 0
      %996 = vmatpush1.bf16.xpose.msra.mxu0 0
      %997 = vmatprep.subr.bf16.mxu0 0
      %998 = vmatpush1.bf16.xpose.msra.mxu0 0
      %999 = vmatprep.subr.bf16.mxu0 0
      %1000 = vmatpush1.bf16.xpose.msra.mxu0 0
      %1001 = vmatprep.subr.bf16.mxu0 0
      %1002 = vmatpush1.bf16.xpose.msra.mxu0 %v985
      %1003 = vmatprep.subr.bf16.mxu0 0
      %1004 = vmatpush2.bf16.xpose.msra.mxu0 0
      %1005 = vmatprep.subr.bf16.mxu0 0
      %1006 = vmatpush2.bf16.xpose.msra.mxu0 0
      %1007 = vmatprep.subr.bf16.mxu0 0
      %1008 = vmatpush2.bf16.xpose.msra.mxu0 0
      %1009 = vmatprep.subr.bf16.mxu0 0
      %1010 = vmatpush2.bf16.xpose.msra.mxu0 0
      %1011 = vmatprep.subr.bf16.mxu0 0
      %1012 = vmatpush2.bf16.xpose.msra.mxu0 0
      %1013 = vmatprep.subr.bf16.mxu0 0
      %1014 = vmatpush2.bf16.xpose.msra.mxu0 0
      %1015 = vmatprep.subr.bf16.mxu0 0
      %1016 = vmatpush2.bf16.xpose.msra.mxu0 0
      %1017 = vmatprep.subr.bf16.mxu0 0
      %1018 = vmatpush2.bf16.xpose.msra.mxu0 0
      %1019 = vmatprep.mubr.bf16.mxu0 0
      %1020 = vmatmul.mubr.bf16.gmra.mxu0 %v982
      %v1021 = vpop.f32.mrf.mxu0
      %v1022 = vadd.f32 0.0, %v1021
      %v1023 = vpop.f32.mrf.mxu0
      %v1024 = vpop.f32.mrf.mxu0
      %v1025 = vpop.f32.mrf.mxu0
      %1026 = vdwg.mxu0
      %v1027 = vmul.f32 %v1022, 0.35355338
      %v1028 = vsel %vm690, -1e+09, %v1027
      %v1029 = vsel %vm636, %v1028, -inf
      %1030 = vmax.xlane.f32.xlu0 %v1029
      %v1031 = vpop.xlane.xlu0 %1030
      %v1032 = vsub.f32 %v1028, %v1031
      %v1033 = vmul.f32 %v1032, 1.442695
      %v1034 = vpow.pop %v1033
      %v1035 = vsel %vm636, %v1034, 0.0
      %1036 = vadd.xlane.f32.xlu0 %v1035
      %v1037 = vpop.xlane.xlu0 %1036
      %v1038 = vrcp.pop %v1037
      %v1039 = vmul.f32 %v1034, %v1038
      %v1040 = vpack.c.bf16 %v1039, %v1039
      %1041 = vrot.lane.b32.xlu0 %v631, 40
      %v1042 = vpop.permute.xlu0 %1041
      %v1044 = vsel %vm636, %v1040, 0
      %v1047 = vsel %vm709, %v1042, 0
      %1049 = vmatprep.subr.bf16.mxu0 0
      %1050 = vmatpush1.bf16.msra.mxu0 0
      %1051 = vmatprep.subr.bf16.mxu0 0
      %1052 = vmatpush1.bf16.msra.mxu0 0
      %1053 = vmatprep.subr.bf16.mxu0 0
      %1054 = vmatpush1.bf16.msra.mxu0 0
      %1055 = vmatprep.subr.bf16.mxu0 0
      %1056 = vmatpush1.bf16.msra.mxu0 0
      %1057 = vmatprep.subr.bf16.mxu0 0
      %1058 = vmatpush1.bf16.msra.mxu0 0
      %1059 = vmatprep.subr.bf16.mxu0 0
      %1060 = vmatpush1.bf16.msra.mxu0 0
      %1061 = vmatprep.subr.bf16.mxu0 0
      %1062 = vmatpush1.bf16.msra.mxu0 0
      %1063 = vmatprep.subr.bf16.mxu0 0
      %1064 = vmatpush1.bf16.msra.mxu0 %v1047
      %1065 = vmatprep.subr.bf16.mxu0 0
      %1066 = vmatpush2.bf16.msra.mxu0 0
      %1067 = vmatprep.subr.bf16.mxu0 0
      %1068 = vmatpush2.bf16.msra.mxu0 0
      %1069 = vmatprep.subr.bf16.mxu0 0
      %1070 = vmatpush2.bf16.msra.mxu0 0
      %1071 = vmatprep.subr.bf16.mxu0 0
      %1072 = vmatpush2.bf16.msra.mxu0 0
      %1073 = vmatprep.subr.bf16.mxu0 0
      %1074 = vmatpush2.bf16.msra.mxu0 0
      %1075 = vmatprep.subr.bf16.mxu0 0
      %1076 = vmatpush2.bf16.msra.mxu0 0
      %1077 = vmatprep.subr.bf16.mxu0 0
      %1078 = vmatpush2.bf16.msra.mxu0 0
      %1079 = vmatprep.subr.bf16.mxu0 0
      %1080 = vmatpush2.bf16.msra.mxu0 0
      %1081 = vmatprep.mubr.bf16.mxu0 0
      %1082 = vmatmul.mubr.bf16.gmra.mxu0 %v1044
      %v1083 = vpop.f32.mrf.mxu0
      %v1084 = vadd.f32 0.0, %v1083
      %v1085 = vpop.f32.mrf.mxu0
      %v1086 = vpop.f32.mrf.mxu0
      %v1087 = vpop.f32.mrf.mxu0
      %1088 = vdwg.mxu0
      %1090 = vrot.lane.b32.xlu0 %v860, 8
      %v1091 = vpop.permute.xlu0 %1090
      %1094 = vrot.lane.b32.xlu0 %v972, 16
      %v1095 = vpop.permute.xlu0 %1094
      %1098 = vrot.lane.b32.xlu0 %v1084, 24
      %v1099 = vpop.permute.xlu0 %1098
      %v1101 = vsel %vm636, %v748, %v1091
      %vm1102 = vcmask 130048
      %v1103 = vsel %vm1102, %v1101, %v1095
      %vm1104 = vcmask 195584
      %v1105 = vsel %vm1104, %v1103, %v1099
      %v1106 = vpack.c.bf16 %v1105, %v1105
      %v1107 = vld [vmem:[%s6] sm:$0xf]
      %v1108 = vld [vmem:[%s6 + $0x4] sm:$0xf]
      %v1109 = vld [vmem:[%s6 + $0x8] sm:$0xf]
      %v1110 = vld [vmem:[%s6 + $0xc] sm:$0xf]
      %v1111 = vld [vmem:[%s7] sm:$0x1]
      %v1113 = vlaneseq
      %v1114 = vshrl.u32 %v1113, 7
      %v1115 = vsub.s32 0, %v1114
      %v1116 = vrot.slane %v1111, %v1115
      %v1122 = vunpack.c.l.b16 %v1107
      %v1123 = vunpack.c.l.b16 %v1108
      %v1124 = vunpack.c.l.b16 %v1109
      %v1125 = vunpack.c.l.b16 %v1110
      %v1126 = vpack.c.b16 %v1123, %v1122
      %v1127 = vpack.c.b16 %v1125, %v1124
      %v1131 = vsel %vm535, %v1106, 0
      %1133 = vmatprep.subr.bf16.mxu0 0
      %1134 = vmatpush1.bf16.msra.mxu0 0
      %1135 = vmatprep.subr.bf16.mxu0 0
      %1136 = vmatpush1.bf16.msra.mxu0 0
      %1137 = vmatprep.subr.bf16.mxu0 0
      %1138 = vmatpush1.bf16.msra.mxu0 0
      %1139 = vmatprep.subr.bf16.mxu0 0
      %1140 = vmatpush1.bf16.msra.mxu0 0
      %1141 = vmatprep.subr.bf16.mxu0 0
      %1142 = vmatpush1.bf16.msra.mxu0 0
      %1143 = vmatprep.subr.bf16.mxu0 0
      %1144 = vmatpush1.bf16.msra.mxu0 0
      %1145 = vmatprep.subr.bf16.mxu0 0
      %1146 = vmatpush1.bf16.msra.mxu0 %v1127
      %1147 = vmatprep.subr.bf16.mxu0 0
      %1148 = vmatpush1.bf16.msra.mxu0 %v1126
      %1149 = vmatprep.subr.bf16.mxu0 0
      %1150 = vmatpush2.bf16.msra.mxu0 0
      %1151 = vmatprep.subr.bf16.mxu0 0
      %1152 = vmatpush2.bf16.msra.mxu0 0
      %1153 = vmatprep.subr.bf16.mxu0 0
      %1154 = vmatpush2.bf16.msra.mxu0 0
      %1155 = vmatprep.subr.bf16.mxu0 0
      %1156 = vmatpush2.bf16.msra.mxu0 0
      %1157 = vmatprep.subr.bf16.mxu0 0
      %1158 = vmatpush2.bf16.msra.mxu0 0
      %1159 = vmatprep.subr.bf16.mxu0 0
      %1160 = vmatpush2.bf16.msra.mxu0 0
      %1161 = vmatprep.subr.bf16.mxu0 0
      %1162 = vmatpush2.bf16.msra.mxu0 0
      %1163 = vmatprep.subr.bf16.mxu0 0
      %1164 = vmatpush2.bf16.msra.mxu0 0
      %1165 = vmatprep.mubr.bf16.mxu0 0
      %1166 = vmatmul.mubr.bf16.gmra.mxu0 %v1131
      %v1167 = vpop.f32.mrf.mxu0
      %v1168 = vadd.f32 %v1116, %v1167
      %v1169 = vpop.f32.mrf.mxu0
      %v1170 = vpop.f32.mrf.mxu0
      %v1171 = vpop.f32.mrf.mxu0
      %1172 = vdwg.mxu0
      %v1173 = vadd.f32 %v563, %v1168
      %v1174 = vld [vmem:[%s8] sm:$0x1]
      %v1175 = vld [vmem:[%s9] sm:$0x1]
      %v1176 = vsel %vm535, %v1173, 0.0
      %1177 = vadd.xlane.f32.xlu0 %v1176
      %v1178 = vpop.xlane.xlu0 %1177
      %v1179 = vmul.f32 %v1178, %v539
      %v1180 = vsub.f32 %v1173, %v1179
      %v1181 = vmul.f32 %v1180, %v1180
      %v1182 = vsel %vm535, %v1181, 0.0
      %1183 = vadd.xlane.f32.xlu0 %v1182
      %v1184 = vpop.xlane.xlu0 %1183
      %v1185 = vmul.f32 %v1184, %v539
      %v1186 = vadd.f32 %v1185, 1e-05
      %v1187 = vrsqrt.pop %v1186
      %v1188 = vmul.f32 %v1180, %v1187
      %v1190 = vlaneseq
      %v1191 = vshrl.u32 %v1190, 7
      %v1192 = vsub.s32 0, %v1191
      %v1193 = vrot.slane %v1174, %v1192
      %v1195 = vmul.f32 %v1188, %v1193
      %v1197 = vlaneseq
      %v1198 = vshrl.u32 %v1197, 7
      %v1199 = vsub.s32 0, %v1198
      %v1200 = vrot.slane %v1175, %v1199
      %v1202 = vadd.f32 %v1195, %v1200
      %v1203 = vpack.c.bf16 %v1202, %v1202
      %v1204 = vld [vmem:[%s10] sm:$0xf]
      %v1205 = vld [vmem:[%s10 + $0x4] sm:$0xf]
      %v1206 = vld [vmem:[%s10 + $0x8] sm:$0xf]
      %v1207 = vld [vmem:[%s10 + $0xc] sm:$0xf]
      %v1208 = vld [vmem:[%s11] sm:$0x1]
      %v1210 = vlaneseq
      %v1211 = vshrl.u32 %v1210, 7
      %v1212 = vsub.s32 0, %v1211
      %v1213 = vrot.slane %v1208, %v1212
      %v1219 = vunpack.c.l.b16 %v1204
      %v1220 = vunpack.c.l.b16 %v1205
      %v1221 = vunpack.c.l.b16 %v1206
      %v1222 = vunpack.c.l.b16 %v1207
      %v1223 = vpack.c.b16 %v1220, %v1219
      %v1224 = vpack.c.b16 %v1222, %v1221
      %v1228 = vsel %vm535, %v1203, 0
      %1230 = vmatprep.subr.bf16.mxu0 0
      %1231 = vmatpush1.bf16.msra.mxu0 0
      %1232 = vmatprep.subr.bf16.mxu0 0
      %1233 = vmatpush1.bf16.msra.mxu0 0
      %1234 = vmatprep.subr.bf16.mxu0 0
      %1235 = vmatpush1.bf16.msra.mxu0 0
      %1236 = vmatprep.subr.bf16.mxu0 0
      %1237 = vmatpush1.bf16.msra.mxu0 0
      %1238 = vmatprep.subr.bf16.mxu0 0
      %1239 = vmatpush1.bf16.msra.mxu0 0
      %1240 = vmatprep.subr.bf16.mxu0 0
      %1241 = vmatpush1.bf16.msra.mxu0 0
      %1242 = vmatprep.subr.bf16.mxu0 0
      %1243 = vmatpush1.bf16.msra.mxu0 %v1224
      %1244 = vmatprep.subr.bf16.mxu0 0
      %1245 = vmatpush1.bf16.msra.mxu0 %v1223
      %1246 = vmatprep.subr.bf16.mxu0 0
      %1247 = vmatpush2.bf16.msra.mxu0 0
      %1248 = vmatprep.subr.bf16.mxu0 0
      %1249 = vmatpush2.bf16.msra.mxu0 0
      %1250 = vmatprep.subr.bf16.mxu0 0
      %1251 = vmatpush2.bf16.msra.mxu0 0
      %1252 = vmatprep.subr.bf16.mxu0 0
      %1253 = vmatpush2.bf16.msra.mxu0 0
      %1254 = vmatprep.subr.bf16.mxu0 0
      %1255 = vmatpush2.bf16.msra.mxu0 0
      %1256 = vmatprep.subr.bf16.mxu0 0
      %1257 = vmatpush2.bf16.msra.mxu0 0
      %1258 = vmatprep.subr.bf16.mxu0 0
      %1259 = vmatpush2.bf16.msra.mxu0 0
      %1260 = vmatprep.subr.bf16.mxu0 0
      %1261 = vmatpush2.bf16.msra.mxu0 0
      %1262 = vmatprep.mubr.bf16.mxu0 0
      %1263 = vmatmul.mubr.bf16.gmra.mxu0 %v1228
      %v1264 = vpop.f32.mrf.mxu0
      %v1265 = vadd.f32 %v1213, %v1264
      %v1266 = vpop.f32.mrf.mxu0
      %v1267 = vpop.f32.mrf.mxu0
      %v1268 = vpop.f32.mrf.mxu0
      %1269 = vdwg.mxu0
      %v1270 = vmul.f32 %v1265, 0.5
      %v1271 = vmul.f32 %v1265, 0.70710677
      %v1272 = verf.f32.pop %v1271
      %v1273 = vadd.f32 %v1272, 1.0
      %v1274 = vmul.f32 %v1270, %v1273
      %v1275 = vpack.c.bf16 %v1274, %v1274
      %v1276 = vld [vmem:[%s12] sm:$0xf]
      %v1277 = vld [vmem:[%s12 + $0x4] sm:$0xf]
      %v1278 = vld [vmem:[%s12 + $0x8] sm:$0xf]
      %v1279 = vld [vmem:[%s12 + $0xc] sm:$0xf]
      %v1280 = vld [vmem:[%s12 + $0x10] sm:$0xf]
      %v1281 = vld [vmem:[%s12 + $0x14] sm:$0xf]
      %v1282 = vld [vmem:[%s12 + $0x18] sm:$0xf]
      %v1283 = vld [vmem:[%s12 + $0x1c] sm:$0xf]
      %v1284 = vld [vmem:[%s13] sm:$0x1]
      %v1286 = vlaneseq
      %v1287 = vshrl.u32 %v1286, 7
      %v1288 = vsub.s32 0, %v1287
      %v1289 = vrot.slane %v1284, %v1288
      %v1299 = vunpack.c.l.b16 %v1276
      %v1300 = vunpack.c.l.b16 %v1277
      %v1301 = vunpack.c.l.b16 %v1278
      %v1302 = vunpack.c.l.b16 %v1279
      %v1303 = vunpack.c.l.b16 %v1280
      %v1304 = vunpack.c.l.b16 %v1281
      %v1305 = vunpack.c.l.b16 %v1282
      %v1306 = vunpack.c.l.b16 %v1283
      %v1307 = vpack.c.b16 %v1300, %v1299
      %v1308 = vpack.c.b16 %v1302, %v1301
      %v1309 = vpack.c.b16 %v1304, %v1303
      %v1310 = vpack.c.b16 %v1306, %v1305
      %vm1315 = vcmask 523264
      %v1317 = vsel %vm1315, %v1275, 0
      %1319 = vmatprep.subr.bf16.mxu0 0
      %1320 = vmatpush1.bf16.msra.mxu0 0
      %1321 = vmatprep.subr.bf16.mxu0 0
      %1322 = vmatpush1.bf16.msra.mxu0 0
      %1323 = vmatprep.subr.bf16.mxu0 0
      %1324 = vmatpush1.bf16.msra.mxu0 0
      %1325 = vmatprep.subr.bf16.mxu0 0
      %1326 = vmatpush1.bf16.msra.mxu0 0
      %1327 = vmatprep.subr.bf16.mxu0 0
      %1328 = vmatpush1.bf16.msra.mxu0 %v1310
      %1329 = vmatprep.subr.bf16.mxu0 0
      %1330 = vmatpush1.bf16.msra.mxu0 %v1309
      %1331 = vmatprep.subr.bf16.mxu0 0
      %1332 = vmatpush1.bf16.msra.mxu0 %v1308
      %1333 = vmatprep.subr.bf16.mxu0 0
      %1334 = vmatpush1.bf16.msra.mxu0 %v1307
      %1335 = vmatprep.subr.bf16.mxu0 0
      %1336 = vmatpush2.bf16.msra.mxu0 0
      %1337 = vmatprep.subr.bf16.mxu0 0
      %1338 = vmatpush2.bf16.msra.mxu0 0
      %1339 = vmatprep.subr.bf16.mxu0 0
      %1340 = vmatpush2.bf16.msra.mxu0 0
      %1341 = vmatprep.subr.bf16.mxu0 0
      %1342 = vmatpush2.bf16.msra.mxu0 0
      %1343 = vmatprep.subr.bf16.mxu0 0
      %1344 = vmatpush2.bf16.msra.mxu0 0
      %1345 = vmatprep.subr.bf16.mxu0 0
      %1346 = vmatpush2.bf16.msra.mxu0 0
      %1347 = vmatprep.subr.bf16.mxu0 0
      %1348 = vmatpush2.bf16.msra.mxu0 0
      %1349 = vmatprep.subr.bf16.mxu0 0
      %1350 = vmatpush2.bf16.msra.mxu0 0
      %1351 = vmatprep.mubr.bf16.mxu0 0
      %1352 = vmatmul.mubr.bf16.gmra.mxu0 %v1317
      %v1353 = vpop.f32.mrf.mxu0
      %v1354 = vadd.f32 %v1289, %v1353
      %v1355 = vpop.f32.mrf.mxu0
      %v1356 = vpop.f32.mrf.mxu0
      %v1357 = vpop.f32.mrf.mxu0
      %1358 = vdwg.mxu0
      %v1359 = vadd.f32 %v1202, %v1354
      %v1360 = vld [vmem:[%s14] sm:$0x1]
      %v1361 = vld [vmem:[%s15] sm:$0x1]
      %v1362 = vsel %vm535, %v1359, 0.0
      %1363 = vadd.xlane.f32.xlu0 %v1362
      %v1364 = vpop.xlane.xlu0 %1363
      %v1365 = vmul.f32 %v1364, %v539
      %v1366 = vsub.f32 %v1359, %v1365
      %v1367 = vmul.f32 %v1366, %v1366
      %v1368 = vsel %vm535, %v1367, 0.0
      %1369 = vadd.xlane.f32.xlu0 %v1368
      %v1370 = vpop.xlane.xlu0 %1369
      %v1371 = vmul.f32 %v1370, %v539
      %v1372 = vadd.f32 %v1371, 1e-05
      %v1373 = vrsqrt.pop %v1372
      %v1374 = vmul.f32 %v1366, %v1373
      %v1376 = vlaneseq
      %v1377 = vshrl.u32 %v1376, 7
      %v1378 = vsub.s32 0, %v1377
      %v1379 = vrot.slane %v1360, %v1378
      %v1381 = vmul.f32 %v1374, %v1379
      %v1383 = vlaneseq
      %v1384 = vshrl.u32 %v1383, 7
      %v1385 = vsub.s32 0, %v1384
      %v1386 = vrot.slane %v1361, %v1385
      %v1388 = vadd.f32 %v1381, %v1386
      %1389 = vst.msk [vmem:[%s530] sm:$0xff] %vm535, %v1388
      %p1390 = scmp.lt.s32.totalorder %s27, 1
      %s1391 = scalar_select %p1390, %s27, 1
      %s1392 = smul.addr %s1391, 8
      %s1393 = scalar_lea.vmem %s16, %s1392
      // Predicated region
      $region85: #{forward.2} parent=83 // pred_check
        %p1394 = pneg %p391
      $region86: #{forward.2} parent=83 // pred_check_branch
        %1396 = sbr.rel (%p1394) target = $region88
      $region87: #{forward.2} parent=83 // pred_region
        _
      $region88: #{forward.2} parent=83 // pred_fallthru
        _
    $region84: #{forward.2} parent=5 // pred_fallthru
      _
    %p1397 = scmp.le.s32.totalorder 2, %s22
    // Predicated region
    $region89: #{forward.2} parent=5 // pred_check
      %p1398 = pneg %p1397
    $region90: #{forward.2} parent=5 // pred_check_branch
      %1400 = sbr.rel (%p1398) target = $region92
    $region91: #{forward.2} parent=5 // pred_region
      %s1401 = ssub.s32 %s22, 2
      // Predicated region
      $region93: #{forward.2} parent=91 // pred_check
        %p1402 = pneg %p397
      $region94: #{forward.2} parent=91 // pred_check_branch
        %1404 = sbr.rel (%p1402) target = $region96
      $region95: #{forward.2} parent=91 // pred_region
        %p1405 = scmp.lt.s32.totalorder %s28, 1
        %s1406 = scalar_select %p1405, %s28, 1
        %s1407 = smul.addr %s1406, 8
        %s1408 = scalar_lea.vmem %s16, %s1407
      $region96: #{forward.2} parent=91 // pred_fallthru
        _
    $region92: #{forward.2} parent=5 // pred_fallthru
      _
  $region6: #{forward.2} parent=0 // loop_footer
    %s26 = sadd.s32 1, %s22
  $region7: #{forward.2} parent=0 // loop_footer_branch
    %21 = sbr.rel target = $region3
  $region8: #{forward.2} parent=0 // loop_exit
    _

</llo_original>
